<compile_context>
chip_gen: v5e
topology: v5e:2x2
jax: 0.10.0
libtpu: 0.0.40
codegen_flags: <defaults>
</compile_context>

<pallas_src>
import numpy as np

import jax
import jax.numpy as jnp
from jax import lax
from jax.experimental import pallas as pl
from jax.experimental.pallas import tpu as pltpu


# ----------------------------- fused kernel -----------------------------

def _cnn_fused_kernel(x_ref, s1_ref, b1_ref, s2_ref, b2_ref,
                      fc1w_ref, fc1b_ref, fc2w_ref, fc2b_ref, out_ref):
    f32 = jnp.float32
    BN, H, W = x_ref.shape
    H2, H4 = H // 2, H // 4
    half1 = s1_ref.shape[1] // 2          # W2 * C1
    half2 = s2_ref.shape[1] // 2          # W4 * C2
    n_h4 = fc1w_ref.shape[0]              # H4

    # ---------------- conv1: banded MXU matmul (f32) ----------------
    x = x_ref[...]                                            # (BN, H, W)
    zr = jnp.zeros((BN, 1, W), f32)
    up = jnp.concatenate([zr, x[:, :H - 1, :]], axis=1)       # row h-1 (0 at top)
    dn = jnp.concatenate([x[:, 1:, :], zr], axis=1)           # row h+1 (0 at bot)
    lhs1 = jnp.concatenate([up, x, dn], axis=2).reshape(BN * H, 3 * W)
    y1 = jnp.dot(lhs1, s1_ref[...], preferred_element_type=f32) + b1_ref[...]
    # 2x2 max-pool + relu: S1 output columns are (even w | odd w), so the
    # w-pool is an aligned lane-slice max; the h-pool is a sublane-pair max.
    y1 = jnp.maximum(y1[:, :half1], y1[:, half1:])            # pool over w
    y1 = jnp.max(y1.reshape(BN * H2, 2, half1), axis=1)       # pool over h
    p1 = jnp.maximum(y1, 0.0).reshape(BN, H2, half1)          # (BN, H2, W2*C1)

    # ---------------- conv2: banded MXU matmul (bf16 operands) ----------------
    zr2 = jnp.zeros((BN, 1, half1), f32)
    up2 = jnp.concatenate([zr2, p1[:, :H2 - 1, :]], axis=1)
    dn2 = jnp.concatenate([p1[:, 1:, :], zr2], axis=1)
    lhs2 = jnp.concatenate([up2, p1, dn2], axis=2).reshape(BN * H2, 3 * half1)
    y2 = jnp.dot(lhs2.astype(s2_ref.dtype), s2_ref[...],
                 preferred_element_type=f32) + b2_ref[...]
    y2 = jnp.maximum(y2[:, :half2], y2[:, half2:])            # pool over w
    y2 = jnp.max(y2.reshape(BN * H4, 2, half2), axis=1)       # pool over h
    p2 = jnp.maximum(y2, 0.0).reshape(BN, H4, half2)          # (BN, H4, W4*C2)

    # -------- fc1 + relu: weight pre-reshaped to (H4, W4*C2, HID) --------
    p2b = p2.astype(fc1w_ref.dtype)
    hid = fc1b_ref[...]                                       # (1, HID) broadcast
    for h4 in range(n_h4):
        hid = hid + jnp.dot(p2b[:, h4, :], fc1w_ref[h4],
                            preferred_element_type=f32)
    hid = jnp.maximum(hid, 0.0)

    # ---------------- fc2 + log_softmax (f32) ----------------
    logits = (jnp.dot(hid, fc2w_ref[...], preferred_element_type=f32)
              + fc2b_ref[...])
    m = jnp.max(logits, axis=-1, keepdims=True)
    lse = m + jnp.log(jnp.sum(jnp.exp(logits - m), axis=-1, keepdims=True))
    out_ref[...] = (logits - lse).astype(out_ref.dtype)


# ----------------------------- wrapper -----------------------------

@jax.jit
def cnn_forward(x_nchw, kparams):
    N, C_in, H, W = x_nchw.shape
    assert C_in == 1, "kernel is specialized for in_channels=1 (module default)"
    assert H % 4 == 0 and W % 4 == 0, "img_size must be divisible by 4"
    # TODO(synk): in_channels > 1 — fold C_in into the banded lhs columns the
    # same way the conv2 stage already does (row layout (BN, H, W*C_in)).

    NCLS = kparams["fc2_b"].shape[-1]
    x = x_nchw.reshape(N, H, W)            # squeeze the size-1 channel axis

    # batch block: up to 32 images / step; cdiv gridding with zero-padded tail
    if N >= 64:
        BN = 32
    elif N >= 16:
        BN = 16
    else:
        BN = 8
    n_blocks = pl.cdiv(N, BN)
    n_pad = n_blocks * BN
    if n_pad != N:
        x = jnp.concatenate([x, jnp.zeros((n_pad - N, H, W), x.dtype)], axis=0)

    out = pl.pallas_call(
        _cnn_fused_kernel,
        out_shape=jax.ShapeDtypeStruct((n_pad, NCLS), jnp.float32),
        grid=(n_blocks,),
        in_specs=[
            pl.BlockSpec((BN, H, W), lambda i: (i, 0, 0)),              # images
            pl.BlockSpec(kparams["s1"].shape, lambda i: (0, 0)),        # conv1 S
            pl.BlockSpec(kparams["b1"].shape, lambda i: (0, 0)),        # conv1 b
            pl.BlockSpec(kparams["s2"].shape, lambda i: (0, 0)),        # conv2 S
            pl.BlockSpec(kparams["b2"].shape, lambda i: (0, 0)),        # conv2 b
            pl.BlockSpec(kparams["fc1_w"].shape, lambda i: (0, 0, 0)),  # fc1 w
            pl.BlockSpec(kparams["fc1_b"].shape, lambda i: (0, 0)),     # fc1 b
            pl.BlockSpec(kparams["fc2_w"].shape, lambda i: (0, 0)),     # fc2 w
            pl.BlockSpec(kparams["fc2_b"].shape, lambda i: (0, 0)),     # fc2 b
        ],
        out_specs=pl.BlockSpec((BN, NCLS), lambda i: (i, 0)),
        compiler_params=pltpu.CompilerParams(
            dimension_semantics=("parallel",)),
    )(x, kparams["s1"], kparams["b1"], kparams["s2"], kparams["b2"],
      kparams["fc1_w"], kparams["fc1_b"], kparams["fc2_w"], kparams["fc2_b"])
    return out[:N]


# ----------------------------- weight packing -----------------------------

def _banded_conv_matrix(w_hwio, w_in, c_in, c_out):
    """HWIO 3x3 conv weight -> banded matrix S (3*w_in*c_in, w_in*c_out) so that
    [row h-1 | row h | row h+1] @ S is the SAME-padded conv for every (w, c_out).
    Output columns are ordered even-w first / odd-w second (pool-friendly)."""
    w_half = w_in // 2
    s = np.zeros((3 * w_in * c_in, w_in * c_out), np.float32)
    for dy in range(3):
        for u in range(w_in):                     # source column
            for dx in range(3):
                w = u - dx + 1                    # output column this tap feeds
                if 0 <= w < w_in:
                    col = (w % 2) * (w_half * c_out) + (w // 2) * c_out
                    row = (dy * w_in + u) * c_in
                    s[row:row + c_in, col:col + c_out] = w_hwio[dy, dx]
    return s


def pack_params(params, img_size):
    """One-time repack of PyTorch-layout weights into the kernel's layout."""
    H = W = img_size
    W2, H4, W4 = W // 2, img_size // 4, img_size // 4
    c_in = params["conv1_w"].shape[1]
    C1 = params["conv1_b"].shape[0]
    C2 = params["conv2_b"].shape[0]
    HID = params["fc1_b"].shape[0]
    NCLS = params["fc2_b"].shape[0]

    w1 = np.transpose(np.asarray(params["conv1_w"]), (2, 3, 1, 0))   # HWIO
    w2 = np.transpose(np.asarray(params["conv2_w"]), (2, 3, 1, 0))   # HWIO

    s1 = _banded_conv_matrix(w1, W, c_in, C1)        # (3*W*c_in, W*C1)    f32
    s2 = _banded_conv_matrix(w2, W2, C1, C2)         # (3*W2*C1, W2*C2)    bf16

    b1 = jnp.tile(params["conv1_b"], (W,)).reshape(1, W * C1)
    b2 = jnp.tile(params["conv2_b"], (W2,)).reshape(1, W2 * C2)

    # fc1: (out, in=C*H*W) -> (H4, W4*C2, HID) so the kernel contracts the
    # pooled (b, h4, w4*C2+c) activation directly (no flatten pass).
    fc1 = params["fc1_w"].reshape(HID, C2, H4, W4)
    fc1 = jnp.transpose(fc1, (2, 3, 1, 0)).reshape(H4, W4 * C2, HID)
    fc2 = params["fc2_w"].T

    return dict(
        s1=jnp.asarray(s1, jnp.float32),
        b1=b1.astype(jnp.float32),
        s2=jnp.asarray(s2, jnp.bfloat16),            # bf16 MXU operands
        b2=b2.astype(jnp.float32),
        fc1_w=fc1.astype(jnp.bfloat16),              # bf16 MXU operands
        fc1_b=params["fc1_b"].reshape(1, HID).astype(jnp.float32),
        fc2_w=fc2.astype(jnp.float32),
        fc2_b=params["fc2_b"].reshape(1, NCLS).astype(jnp.float32),
    )


# ----------------------------- init + reference -----------------------------

def init_params(key, in_channels=1, num_classes=10, img_size=16):
    """PyTorch-layout params (Conv2d OIHW, Linear (out,in)), kaiming / zero bias."""
    k1, k2, k3, k4 = jax.random.split(key, 4)
    f = img_size // 4

    def kaiming(k, shape, fan_in):
        return jax.random.normal(k, shape, jnp.float32) * jnp.sqrt(2.0 / fan_in)

    return dict(
        conv1_w=kaiming(k1, (32, in_channels, 3, 3), 9 * in_channels),
        conv1_b=jnp.zeros((32,), jnp.float32),
        conv2_w=kaiming(k2, (64, 32, 3, 3), 9 * 32),
        conv2_b=jnp.zeros((64,), jnp.float32),
        fc1_w=kaiming(k3, (64, 64 * f * f), 64 * f * f),
        fc1_b=jnp.zeros((64,), jnp.float32),
        fc2_w=kaiming(k4, (num_classes, 64), 64),
        fc2_b=jnp.zeros((num_classes,), jnp.float32),
    )


def cnn_reference(x_nchw, params):
    """Pure-XLA reference with PyTorch semantics (for correctness checking)."""
    dn = ("NCHW", "OIHW", "NCHW")
    y = lax.conv_general_dilated(x_nchw, params["conv1_w"], (1, 1), "SAME",
                                 dimension_numbers=dn)
    y = y + params["conv1_b"][None, :, None, None]
    y = lax.reduce_window(y, -jnp.inf, lax.max, (1, 1, 2, 2), (1, 1, 2, 2), "VALID")
    y = jnp.maximum(y, 0.0)
    y = lax.conv_general_dilated(y, params["conv2_w"], (1, 1), "SAME",
                                 dimension_numbers=dn)
    y = y + params["conv2_b"][None, :, None, None]
    y = lax.reduce_window(y, -jnp.inf, lax.max, (1, 1, 2, 2), (1, 1, 2, 2), "VALID")
    y = jnp.maximum(y, 0.0)
    y = y.reshape(y.shape[0], -1)                        # (C, H, W) flatten order
    y = jnp.maximum(y @ params["fc1_w"].T + params["fc1_b"], 0.0)
    logits = y @ params["fc2_w"].T + params["fc2_b"]
    return jax.nn.log_softmax(logits, axis=-1)


if __name__ == "__main__":
    key = jax.random.PRNGKey(0)
    kx, kp = jax.random.split(key)
    img_size = 16                       # small shape consistent with the module
    batch, in_channels, num_classes = 2, 1, 10

    x = jax.random.normal(kx, (batch, in_channels, img_size, img_size), jnp.float32)
    params = init_params(kp, in_channels=in_channels,
                         num_classes=num_classes, img_size=img_size)
    kparams = pack_params(params, img_size)             # one-time weight repack

    out = cnn_forward(x, kparams)
    out = jax.block_until_ready(out)

    assert out.shape == (batch, num_classes)
    assert bool(jnp.all(jnp.isfinite(out)))
    # log_softmax rows must normalize in probability space
    assert bool(jnp.allclose(jnp.sum(jnp.exp(out), axis=-1), 1.0, atol=1e-4))
    # numerical check vs a pure-XLA f32 reference (tolerance reflects bf16 MXU
    # operands in the conv2 / fc1 matmuls)
    ref = cnn_reference(x, params)
    assert bool(jnp.allclose(out, ref, atol=1e-1)), "kernel mismatch vs reference"

    print("KERNEL_OK")
</pallas_src>

<mosaic_0001>
module attributes {stable_mosaic.version = 11 : i64} {
  func.func @_cnn_fused_kernel(%arg0: i32, %arg1: memref<8x16x16xf32, #tpu.memory_space<vmem>>, %arg2: memref<48x512xf32, #tpu.memory_space<vmem>>, %arg3: memref<1x512xf32, #tpu.memory_space<vmem>>, %arg4: memref<768x512xbf16, #tpu.memory_space<vmem>>, %arg5: memref<1x512xf32, #tpu.memory_space<vmem>>, %arg6: memref<4x256x64xbf16, #tpu.memory_space<vmem>>, %arg7: memref<1x64xf32, #tpu.memory_space<vmem>>, %arg8: memref<64x10xf32, #tpu.memory_space<vmem>>, %arg9: memref<1x10xf32, #tpu.memory_space<vmem>>, %arg10: memref<8x10xf32, #tpu.memory_space<vmem>>) attributes {dimension_semantics = [#tpu.dimension_semantics<parallel>], iteration_bounds = array<i64: 1>, scalar_prefetch = 0 : i64, scratch_operands = 0 : i64, tpu.core_type = #tpu.core_type<tc>, window_params = [{transform_indices = @transform_0, window_bounds = array<i64: 8, 16, 16>}, {pipeline_mode = #tpu.pipeline_mode<synchronous>, transform_indices = @transform_1, window_bounds = array<i64: 48, 512>}, {pipeline_mode = #tpu.pipeline_mode<synchronous>, transform_indices = @transform_2, window_bounds = array<i64: 1, 512>}, {pipeline_mode = #tpu.pipeline_mode<synchronous>, transform_indices = @transform_3, window_bounds = array<i64: 768, 512>}, {pipeline_mode = #tpu.pipeline_mode<synchronous>, transform_indices = @transform_4, window_bounds = array<i64: 1, 512>}, {pipeline_mode = #tpu.pipeline_mode<synchronous>, transform_indices = @transform_5, window_bounds = array<i64: 4, 256, 64>}, {pipeline_mode = #tpu.pipeline_mode<synchronous>, transform_indices = @transform_6, window_bounds = array<i64: 1, 64>}, {pipeline_mode = #tpu.pipeline_mode<synchronous>, transform_indices = @transform_7, window_bounds = array<i64: 64, 10>}, {pipeline_mode = #tpu.pipeline_mode<synchronous>, transform_indices = @transform_8, window_bounds = array<i64: 1, 10>}, {transform_indices = @transform_9, window_bounds = array<i64: 8, 10>}]} {
    %c0 = arith.constant 0 : index
    %c0_0 = arith.constant 0 : index
    %c0_1 = arith.constant 0 : index
    %0 = vector.load %arg1[%c0, %c0_0, %c0_1] : memref<8x16x16xf32, #tpu.memory_space<vmem>>, vector<8x16x16xf32>
    %cst = arith.constant 0.000000e+00 : f32
    %1 = vector.broadcast %cst : f32 to vector<8x1x16xf32>
    %2 = vector.extract_strided_slice %0 {offsets = [0, 0, 0], sizes = [8, 15, 16], strides = [1, 1, 1]} : vector<8x16x16xf32> to vector<8x15x16xf32>
    %3 = tpu.concatenate %1, %2 in 1 : vector<8x1x16xf32>, vector<8x15x16xf32> -> vector<8x16x16xf32>
    %4 = vector.extract_strided_slice %0 {offsets = [0, 1, 0], sizes = [8, 15, 16], strides = [1, 1, 1]} : vector<8x16x16xf32> to vector<8x15x16xf32>
    %5 = tpu.concatenate %4, %1 in 1 : vector<8x15x16xf32>, vector<8x1x16xf32> -> vector<8x16x16xf32>
    %6 = tpu.concatenate %3, %0, %5 in 2 : vector<8x16x16xf32>, vector<8x16x16xf32>, vector<8x16x16xf32> -> vector<8x16x48xf32>
    %7 = vector.shape_cast %6 : vector<8x16x48xf32> to vector<128x48xf32>
    %c0_2 = arith.constant 0 : index
    %c0_3 = arith.constant 0 : index
    %8 = vector.load %arg2[%c0_2, %c0_3] : memref<48x512xf32, #tpu.memory_space<vmem>>, vector<48x512xf32>
    %cst_4 = arith.constant dense<0.000000e+00> : vector<128x512xf32>
    %9 = tpu.matmul %7, %8, %cst_4 {dimension_numbers = #tpu.dot_dimension_numbers<[1], [0], [0], [1], [0, 0, 1, 1], [], []>} : vector<128x48xf32>, vector<48x512xf32>, vector<128x512xf32> -> vector<128x512xf32>
    %c0_5 = arith.constant 0 : index
    %c0_6 = arith.constant 0 : index
    %10 = vector.load %arg3[%c0_5, %c0_6] : memref<1x512xf32, #tpu.memory_space<vmem>>, vector<1x512xf32>
    %11 = vector.broadcast %10 : vector<1x512xf32> to vector<128x512xf32>
    %12 = arith.addf %9, %11 : vector<128x512xf32>
    %13 = vector.extract_strided_slice %12 {offsets = [0, 0], sizes = [128, 256], strides = [1, 1]} : vector<128x512xf32> to vector<128x256xf32>
    %14 = vector.extract_strided_slice %12 {offsets = [0, 256], sizes = [128, 256], strides = [1, 1]} : vector<128x512xf32> to vector<128x256xf32>
    %15 = arith.maximumf %13, %14 : vector<128x256xf32>
    %16 = vector.shape_cast %15 : vector<128x256xf32> to vector<64x2x256xf32>
    %cst_7 = arith.constant dense<0xFF800000> : vector<64x256xf32>
    %17 = vector.multi_reduction <maximumf>, %16, %cst_7 [1] : vector<64x2x256xf32> to vector<64x256xf32>
    %cst_8 = arith.constant 0.000000e+00 : f32
    %18 = vector.broadcast %cst_8 : f32 to vector<64x256xf32>
    %19 = arith.maximumf %17, %18 : vector<64x256xf32>
    %20 = vector.shape_cast %19 : vector<64x256xf32> to vector<8x8x256xf32>
    %cst_9 = arith.constant 0.000000e+00 : f32
    %21 = vector.broadcast %cst_9 : f32 to vector<8x1x256xf32>
    %22 = vector.extract_strided_slice %20 {offsets = [0, 0, 0], sizes = [8, 7, 256], strides = [1, 1, 1]} : vector<8x8x256xf32> to vector<8x7x256xf32>
    %23 = tpu.concatenate %21, %22 in 1 : vector<8x1x256xf32>, vector<8x7x256xf32> -> vector<8x8x256xf32>
    %24 = vector.extract_strided_slice %20 {offsets = [0, 1, 0], sizes = [8, 7, 256], strides = [1, 1, 1]} : vector<8x8x256xf32> to vector<8x7x256xf32>
    %25 = tpu.concatenate %24, %21 in 1 : vector<8x7x256xf32>, vector<8x1x256xf32> -> vector<8x8x256xf32>
    %26 = tpu.concatenate %23, %20, %25 in 2 : vector<8x8x256xf32>, vector<8x8x256xf32>, vector<8x8x256xf32> -> vector<8x8x768xf32>
    %27 = vector.shape_cast %26 : vector<8x8x768xf32> to vector<64x768xf32>
    %28 = arith.truncf %27 : vector<64x768xf32> to vector<64x768xbf16>
    %c0_10 = arith.constant 0 : index
    %c0_11 = arith.constant 0 : index
    %29 = vector.load %arg4[%c0_10, %c0_11] : memref<768x512xbf16, #tpu.memory_space<vmem>>, vector<768x512xbf16>
    %cst_12 = arith.constant dense<0.000000e+00> : vector<64x512xf32>
    %30 = tpu.matmul %28, %29, %cst_12 {dimension_numbers = #tpu.dot_dimension_numbers<[1], [0], [0], [1], [0, 0, 1, 1], [], []>} : vector<64x768xbf16>, vector<768x512xbf16>, vector<64x512xf32> -> vector<64x512xf32>
    %c0_13 = arith.constant 0 : index
    %c0_14 = arith.constant 0 : index
    %31 = vector.load %arg5[%c0_13, %c0_14] : memref<1x512xf32, #tpu.memory_space<vmem>>, vector<1x512xf32>
    %32 = vector.broadcast %31 : vector<1x512xf32> to vector<64x512xf32>
    %33 = arith.addf %30, %32 : vector<64x512xf32>
    %34 = vector.extract_strided_slice %33 {offsets = [0, 0], sizes = [64, 256], strides = [1, 1]} : vector<64x512xf32> to vector<64x256xf32>
    %35 = vector.extract_strided_slice %33 {offsets = [0, 256], sizes = [64, 256], strides = [1, 1]} : vector<64x512xf32> to vector<64x256xf32>
    %36 = arith.maximumf %34, %35 : vector<64x256xf32>
    %37 = vector.shape_cast %36 : vector<64x256xf32> to vector<32x2x256xf32>
    %cst_15 = arith.constant dense<0xFF800000> : vector<32x256xf32>
    %38 = vector.multi_reduction <maximumf>, %37, %cst_15 [1] : vector<32x2x256xf32> to vector<32x256xf32>
    %cst_16 = arith.constant 0.000000e+00 : f32
    %39 = vector.broadcast %cst_16 : f32 to vector<32x256xf32>
    %40 = arith.maximumf %38, %39 : vector<32x256xf32>
    %41 = vector.shape_cast %40 : vector<32x256xf32> to vector<8x4x256xf32>
    %42 = arith.truncf %41 : vector<8x4x256xf32> to vector<8x4x256xbf16>
    %c0_17 = arith.constant 0 : index
    %c0_18 = arith.constant 0 : index
    %43 = vector.load %arg7[%c0_17, %c0_18] : memref<1x64xf32, #tpu.memory_space<vmem>>, vector<1x64xf32>
    %44 = vector.extract_strided_slice %42 {offsets = [0, 0, 0], sizes = [8, 1, 256], strides = [1, 1, 1]} : vector<8x4x256xbf16> to vector<8x1x256xbf16>
    %45 = vector.shape_cast %44 : vector<8x1x256xbf16> to vector<8x256xbf16>
    %c0_19 = arith.constant 0 : index
    %c0_20 = arith.constant 0 : index
    %c0_21 = arith.constant 0 : index
    %46 = vector.load %arg6[%c0_19, %c0_20, %c0_21] : memref<4x256x64xbf16, #tpu.memory_space<vmem>>, vector<1x256x64xbf16>
    %47 = vector.shape_cast %46 : vector<1x256x64xbf16> to vector<256x64xbf16>
    %cst_22 = arith.constant dense<0.000000e+00> : vector<8x64xf32>
    %48 = tpu.matmul %45, %47, %cst_22 {dimension_numbers = #tpu.dot_dimension_numbers<[1], [0], [0], [1], [0, 0, 1, 1], [], []>} : vector<8x256xbf16>, vector<256x64xbf16>, vector<8x64xf32> -> vector<8x64xf32>
    %49 = vector.broadcast %43 : vector<1x64xf32> to vector<8x64xf32>
    %50 = arith.addf %49, %48 : vector<8x64xf32>
    %51 = vector.extract_strided_slice %42 {offsets = [0, 1, 0], sizes = [8, 1, 256], strides = [1, 1, 1]} : vector<8x4x256xbf16> to vector<8x1x256xbf16>
    %52 = vector.shape_cast %51 : vector<8x1x256xbf16> to vector<8x256xbf16>
    %c1 = arith.constant 1 : index
    %c0_23 = arith.constant 0 : index
    %c0_24 = arith.constant 0 : index
    %53 = vector.load %arg6[%c1, %c0_23, %c0_24] : memref<4x256x64xbf16, #tpu.memory_space<vmem>>, vector<1x256x64xbf16>
    %54 = vector.shape_cast %53 : vector<1x256x64xbf16> to vector<256x64xbf16>
    %cst_25 = arith.constant dense<0.000000e+00> : vector<8x64xf32>
    %55 = tpu.matmul %52, %54, %cst_25 {dimension_numbers = #tpu.dot_dimension_numbers<[1], [0], [0], [1], [0, 0, 1, 1], [], []>} : vector<8x256xbf16>, vector<256x64xbf16>, vector<8x64xf32> -> vector<8x64xf32>
    %56 = arith.addf %50, %55 : vector<8x64xf32>
    %57 = vector.extract_strided_slice %42 {offsets = [0, 2, 0], sizes = [8, 1, 256], strides = [1, 1, 1]} : vector<8x4x256xbf16> to vector<8x1x256xbf16>
    %58 = vector.shape_cast %57 : vector<8x1x256xbf16> to vector<8x256xbf16>
    %c2 = arith.constant 2 : index
    %c0_26 = arith.constant 0 : index
    %c0_27 = arith.constant 0 : index
    %59 = vector.load %arg6[%c2, %c0_26, %c0_27] : memref<4x256x64xbf16, #tpu.memory_space<vmem>>, vector<1x256x64xbf16>
    %60 = vector.shape_cast %59 : vector<1x256x64xbf16> to vector<256x64xbf16>
    %cst_28 = arith.constant dense<0.000000e+00> : vector<8x64xf32>
    %61 = tpu.matmul %58, %60, %cst_28 {dimension_numbers = #tpu.dot_dimension_numbers<[1], [0], [0], [1], [0, 0, 1, 1], [], []>} : vector<8x256xbf16>, vector<256x64xbf16>, vector<8x64xf32> -> vector<8x64xf32>
    %62 = arith.addf %56, %61 : vector<8x64xf32>
    %63 = vector.extract_strided_slice %42 {offsets = [0, 3, 0], sizes = [8, 1, 256], strides = [1, 1, 1]} : vector<8x4x256xbf16> to vector<8x1x256xbf16>
    %64 = vector.shape_cast %63 : vector<8x1x256xbf16> to vector<8x256xbf16>
    %c3 = arith.constant 3 : index
    %c0_29 = arith.constant 0 : index
    %c0_30 = arith.constant 0 : index
    %65 = vector.load %arg6[%c3, %c0_29, %c0_30] : memref<4x256x64xbf16, #tpu.memory_space<vmem>>, vector<1x256x64xbf16>
    %66 = vector.shape_cast %65 : vector<1x256x64xbf16> to vector<256x64xbf16>
    %cst_31 = arith.constant dense<0.000000e+00> : vector<8x64xf32>
    %67 = tpu.matmul %64, %66, %cst_31 {dimension_numbers = #tpu.dot_dimension_numbers<[1], [0], [0], [1], [0, 0, 1, 1], [], []>} : vector<8x256xbf16>, vector<256x64xbf16>, vector<8x64xf32> -> vector<8x64xf32>
    %68 = arith.addf %62, %67 : vector<8x64xf32>
    %cst_32 = arith.constant 0.000000e+00 : f32
    %69 = vector.broadcast %cst_32 : f32 to vector<8x64xf32>
    %70 = arith.maximumf %68, %69 : vector<8x64xf32>
    %c0_33 = arith.constant 0 : index
    %c0_34 = arith.constant 0 : index
    %71 = vector.load %arg8[%c0_33, %c0_34] : memref<64x10xf32, #tpu.memory_space<vmem>>, vector<64x10xf32>
    %cst_35 = arith.constant dense<0.000000e+00> : vector<8x10xf32>
    %72 = tpu.matmul %70, %71, %cst_35 {dimension_numbers = #tpu.dot_dimension_numbers<[1], [0], [0], [1], [0, 0, 1, 1], [], []>} : vector<8x64xf32>, vector<64x10xf32>, vector<8x10xf32> -> vector<8x10xf32>
    %c0_36 = arith.constant 0 : index
    %c0_37 = arith.constant 0 : index
    %73 = vector.load %arg9[%c0_36, %c0_37] : memref<1x10xf32, #tpu.memory_space<vmem>>, vector<1x10xf32>
    %74 = vector.broadcast %73 : vector<1x10xf32> to vector<8x10xf32>
    %75 = arith.addf %72, %74 : vector<8x10xf32>
    %cst_38 = arith.constant dense<0xFF800000> : vector<8xf32>
    %76 = vector.multi_reduction <maximumf>, %75, %cst_38 [1] : vector<8x10xf32> to vector<8xf32>
    %77 = vector.shape_cast %76 : vector<8xf32> to vector<8x1xf32>
    %78 = vector.broadcast %77 : vector<8x1xf32> to vector<8x10xf32>
    %79 = arith.subf %75, %78 : vector<8x10xf32>
    %80 = math.exp %79 : vector<8x10xf32>
    %cst_39 = arith.constant dense<0.000000e+00> : vector<8xf32>
    %81 = vector.multi_reduction <add>, %80, %cst_39 [1] : vector<8x10xf32> to vector<8xf32>
    %82 = vector.shape_cast %81 : vector<8xf32> to vector<8x1xf32>
    %83 = math.log %82 : vector<8x1xf32>
    %84 = arith.addf %77, %83 : vector<8x1xf32>
    %85 = vector.broadcast %84 : vector<8x1xf32> to vector<8x10xf32>
    %86 = arith.subf %75, %85 : vector<8x10xf32>
    %c0_40 = arith.constant 0 : index
    %c0_41 = arith.constant 0 : index
    %87 = vector.load %arg10[%c0_40, %c0_41] : memref<8x10xf32, #tpu.memory_space<vmem>>, vector<8x10xf32>
    tpu.vector_store %arg10[%c0_40, %c0_41], %86 {strides = array<i32>} : memref<8x10xf32, #tpu.memory_space<vmem>>, vector<8x10xf32>,
    return
  }
  func.func @transform_0(%arg0: i32) -> (i32, i32, i32) {
    %c0_i32 = arith.constant 0 : i32
    %c0_i32_0 = arith.constant 0 : i32
    %c0_i32_1 = arith.constant 0 : i32
    return %arg0, %c0_i32, %c0_i32_0 : i32, i32, i32
  }
  func.func @transform_1(%arg0: i32) -> (i32, i32) {
    %c0_i32 = arith.constant 0 : i32
    %c0_i32_0 = arith.constant 0 : i32
    %c0_i32_1 = arith.constant 0 : i32
    return %c0_i32, %c0_i32_0 : i32, i32
  }
  func.func @transform_2(%arg0: i32) -> (i32, i32) {
    %c0_i32 = arith.constant 0 : i32
    %c0_i32_0 = arith.constant 0 : i32
    %c0_i32_1 = arith.constant 0 : i32
    return %c0_i32, %c0_i32_0 : i32, i32
  }
  func.func @transform_3(%arg0: i32) -> (i32, i32) {
    %c0_i32 = arith.constant 0 : i32
    %c0_i32_0 = arith.constant 0 : i32
    %c0_i32_1 = arith.constant 0 : i32
    return %c0_i32, %c0_i32_0 : i32, i32
  }
  func.func @transform_4(%arg0: i32) -> (i32, i32) {
    %c0_i32 = arith.constant 0 : i32
    %c0_i32_0 = arith.constant 0 : i32
    %c0_i32_1 = arith.constant 0 : i32
    return %c0_i32, %c0_i32_0 : i32, i32
  }
  func.func @transform_5(%arg0: i32) -> (i32, i32, i32) {
    %c0_i32 = arith.constant 0 : i32
    %c0_i32_0 = arith.constant 0 : i32
    %c0_i32_1 = arith.constant 0 : i32
    %c0_i32_2 = arith.constant 0 : i32
    return %c0_i32, %c0_i32_0, %c0_i32_1 : i32, i32, i32
  }
  func.func @transform_6(%arg0: i32) -> (i32, i32) {
    %c0_i32 = arith.constant 0 : i32
    %c0_i32_0 = arith.constant 0 : i32
    %c0_i32_1 = arith.constant 0 : i32
    return %c0_i32, %c0_i32_0 : i32, i32
  }
  func.func @transform_7(%arg0: i32) -> (i32, i32) {
    %c0_i32 = arith.constant 0 : i32
    %c0_i32_0 = arith.constant 0 : i32
    %c0_i32_1 = arith.constant 0 : i32
    return %c0_i32, %c0_i32_0 : i32, i32
  }
  func.func @transform_8(%arg0: i32) -> (i32, i32) {
    %c0_i32 = arith.constant 0 : i32
    %c0_i32_0 = arith.constant 0 : i32
    %c0_i32_1 = arith.constant 0 : i32
    return %c0_i32, %c0_i32_0 : i32, i32
  }
  func.func @transform_9(%arg0: i32) -> (i32, i32) {
    %c0_i32 = arith.constant 0 : i32
    %c0_i32_0 = arith.constant 0 : i32
    return %arg0, %c0_i32 : i32, i32
  }
}

</mosaic_0001>

<llo_original>
// kernel: cnn_forward.1
$region0: #{cnn_forward.1}
  #allocation0 [shape = 'u32[]', space=smem, size = 0x4, offset = 0x4, fixed_abs, tag = 'smem constant byte address 0x4 - core index']
  #allocation1 [shape = 'u32[72,128]{1,0:T(1,128)}', space=vmem, size = 0x9000, scoped, tag = 'internal scratch']
  %s0 = inlined_call_operand.vmem [shape: f32[8,16,16], index: 0, kind: input, shape index: {}]
  %s1 = inlined_call_operand.vmem [shape: f32[48,512], index: 1, kind: input, shape index: {}]
  %s2 = inlined_call_operand.vmem [shape: f32[1,512], index: 2, kind: input, shape index: {}]
  %s3 = inlined_call_operand.hbm [shape: bf16[768,512], index: 3, kind: input, shape index: {}]
  %s4 = inlined_call_operand.vmem [shape: f32[1,512], index: 4, kind: input, shape index: {}]
  %s5 = inlined_call_operand.vmem [shape: bf16[4,256,64], index: 5, kind: input, shape index: {}]
  %s6 = inlined_call_operand.vmem [shape: f32[1,64], index: 6, kind: input, shape index: {}]
  %s7 = inlined_call_operand.vmem [shape: f32[64,10], index: 7, kind: input, shape index: {}]
  %s8 = inlined_call_operand.vmem [shape: f32[1,10], index: 8, kind: input, shape index: {}]
  %s9 = inlined_call_operand.vmem [shape: f32[8,10], index: 9, kind: output, shape index: {}]
  %s10 = sld [smem:[#allocation0]]
  $region50: #{cnn_forward.1} parent=0
    _
  %s12 = ssub.s32 1, %s10
  %s13 = scalar_select 0, %s12, %s10
  $region1: #{cnn_forward.1} parent=0
    #allocation2 [shape = 'u8[786432]{0}', space=vmem, size = 0xc0000, scoped, tag = 'input window, operand 3, single buffered']
    #allocation3 [shape = 's32[1]{0}', space=sflag, size = 0x4, scoped, tag = 'scoped memory for cnn_forward.1']
    %14 = vsyncpa [#allocation3], 0
    // Predicated region
    $region2: #{cnn_forward.1} parent=1 // pred_check
      _
    $region3: #{cnn_forward.1} parent=1 // pred_check_branch
      %16 = sbr.rel (0) target = $region5
    $region4: #{cnn_forward.1} parent=1 // pred_region
      _
    $region5: #{cnn_forward.1} parent=1 // pred_fallthru
      _
    // Predicated region
    $region6: #{cnn_forward.1} parent=1 // pred_check
      _
    $region7: #{cnn_forward.1} parent=1 // pred_check_branch
      %18 = sbr.rel (0) target = $region9
    $region8: #{cnn_forward.1} parent=1 // pred_region
      _
    $region9: #{cnn_forward.1} parent=1 // pred_fallthru
      _
    // Predicated region
    $region10: #{cnn_forward.1} parent=1 // pred_check
      _
    $region11: #{cnn_forward.1} parent=1 // pred_check_branch
      %20 = sbr.rel (0) target = $region13
    $region12: #{cnn_forward.1} parent=1 // pred_region
      _
    $region13: #{cnn_forward.1} parent=1 // pred_fallthru
      _
    // Predicated region
    $region14: #{cnn_forward.1} parent=1 // pred_check
      _
    $region15: #{cnn_forward.1} parent=1 // pred_check_branch
      %22 = sbr.rel (0) target = $region17
    $region16: #{cnn_forward.1} parent=1 // pred_region
      %24 = vsyncadd [#allocation3], 0
      %s25 = sshll.u32 %s3, 4
      %s26 = int_to_ptr.hbm [resolvable:$true] %s25
      %s27 = sshll.u32 [#allocation2], 4
      %s28 = int_to_ptr.vmem [resolvable:$true] %s27
      %33 = dma.hbm_to_vmem [thread:$0]  %s26, 24576, %s28, [#allocation3], 256, 256, 16
    $region17: #{cnn_forward.1} parent=1 // pred_fallthru
      _
    // Predicated region
    $region18: #{cnn_forward.1} parent=1 // pred_check
      _
    $region19: #{cnn_forward.1} parent=1 // pred_check_branch
      %35 = sbr.rel (0) target = $region21
    $region20: #{cnn_forward.1} parent=1 // pred_region
      _
    $region21: #{cnn_forward.1} parent=1 // pred_fallthru
      _
    // Predicated region
    $region22: #{cnn_forward.1} parent=1 // pred_check
      _
    $region23: #{cnn_forward.1} parent=1 // pred_check_branch
      %37 = sbr.rel (0) target = $region25
    $region24: #{cnn_forward.1} parent=1 // pred_region
      _
    $region25: #{cnn_forward.1} parent=1 // pred_fallthru
      _
    // Predicated region
    $region26: #{cnn_forward.1} parent=1 // pred_check
      _
    $region27: #{cnn_forward.1} parent=1 // pred_check_branch
      %39 = sbr.rel (0) target = $region29
    $region28: #{cnn_forward.1} parent=1 // pred_region
      _
    $region29: #{cnn_forward.1} parent=1 // pred_fallthru
      _
    // Predicated region
    $region30: #{cnn_forward.1} parent=1 // pred_check
      _
    $region31: #{cnn_forward.1} parent=1 // pred_check_branch
      %41 = sbr.rel (0) target = $region33
    $region32: #{cnn_forward.1} parent=1 // pred_region
      _
    $region33: #{cnn_forward.1} parent=1 // pred_fallthru
      _
    // Predicated region
    $region34: #{cnn_forward.1} parent=1 // pred_check
      _
    $region35: #{cnn_forward.1} parent=1 // pred_check_branch
      %43 = sbr.rel (0) target = $region37
    $region36: #{cnn_forward.1} parent=1 // pred_region
      _
    $region37: #{cnn_forward.1} parent=1 // pred_fallthru
      _
    // Predicated region
    $region38: #{cnn_forward.1} parent=1 // pred_check
      _
    $region39: #{cnn_forward.1} parent=1 // pred_check_branch
      %45 = sbr.rel (0) target = $region41
    $region40: #{cnn_forward.1} parent=1 // pred_region
      %47 = dma.done [#allocation3], 24576
    $region41: #{cnn_forward.1} parent=1 // pred_fallthru
      _
    %v48 = vld [vmem:[%s0] sm:$0xff]
    %v49 = vld [vmem:[%s0 + $0x8] sm:$0xff]
    %v50 = vld [vmem:[%s0 + $0x10] sm:$0xff]
    %v51 = vld [vmem:[%s0 + $0x18] sm:$0xff]
    %v52 = vld [vmem:[%s0 + $0x20] sm:$0xff]
    %v53 = vld [vmem:[%s0 + $0x28] sm:$0xff]
    %v54 = vld [vmem:[%s0 + $0x30] sm:$0xff]
    %v55 = vld [vmem:[%s0 + $0x38] sm:$0xff]
    %v56 = vld [vmem:[%s0 + $0x40] sm:$0xff]
    %v57 = vld [vmem:[%s0 + $0x48] sm:$0xff]
    %v58 = vld [vmem:[%s0 + $0x50] sm:$0xff]
    %v59 = vld [vmem:[%s0 + $0x58] sm:$0xff]
    %v60 = vld [vmem:[%s0 + $0x60] sm:$0xff]
    %v61 = vld [vmem:[%s0 + $0x68] sm:$0xff]
    %v62 = vld [vmem:[%s0 + $0x70] sm:$0xff]
    %v63 = vld [vmem:[%s0 + $0x78] sm:$0xff]
    %vm80 = vcmask 1040384
    %v81 = vrot.slane %v48, 7
    %v82 = vrot.slane %v49, 7
    %v83 = vsel %vm80, %v81, %v82
    %v84 = vrot.slane %v50, 7
    %v85 = vrot.slane %v51, 7
    %v86 = vsel %vm80, %v84, %v85
    %v87 = vrot.slane %v52, 7
    %v88 = vrot.slane %v53, 7
    %v89 = vsel %vm80, %v87, %v88
    %v90 = vrot.slane %v54, 7
    %v91 = vrot.slane %v55, 7
    %v92 = vsel %vm80, %v90, %v91
    %v93 = vrot.slane %v56, 7
    %v94 = vrot.slane %v57, 7
    %v95 = vsel %vm80, %v93, %v94
    %v96 = vrot.slane %v58, 7
    %v97 = vrot.slane %v59, 7
    %v98 = vsel %vm80, %v96, %v97
    %v99 = vrot.slane %v60, 7
    %v100 = vrot.slane %v61, 7
    %v101 = vsel %vm80, %v99, %v100
    %v102 = vrot.slane %v62, 7
    %v103 = vrot.slane %v63, 7
    %v104 = vsel %vm80, %v102, %v103
    %v121 = vsel %vm80, 0.0, %v81
    %v122 = vsel %vm80, 0.0, %v84
    %v123 = vsel %vm80, 0.0, %v87
    %v124 = vsel %vm80, 0.0, %v90
    %v125 = vsel %vm80, 0.0, %v93
    %v126 = vsel %vm80, 0.0, %v96
    %v127 = vsel %vm80, 0.0, %v99
    %v128 = vsel %vm80, 0.0, %v102
    %vm129 = vcmask 1046528
    %v130 = vrot.slane %v48, 1
    %v131 = vrot.slane %v49, 1
    %v132 = vsel %vm129, %v130, %v131
    %v133 = vrot.slane %v50, 1
    %v134 = vrot.slane %v51, 1
    %v135 = vsel %vm129, %v133, %v134
    %v136 = vrot.slane %v52, 1
    %v137 = vrot.slane %v53, 1
    %v138 = vsel %vm129, %v136, %v137
    %v139 = vrot.slane %v54, 1
    %v140 = vrot.slane %v55, 1
    %v141 = vsel %vm129, %v139, %v140
    %v142 = vrot.slane %v56, 1
    %v143 = vrot.slane %v57, 1
    %v144 = vsel %vm129, %v142, %v143
    %v145 = vrot.slane %v58, 1
    %v146 = vrot.slane %v59, 1
    %v147 = vsel %vm129, %v145, %v146
    %v148 = vrot.slane %v60, 1
    %v149 = vrot.slane %v61, 1
    %v150 = vsel %vm129, %v148, %v149
    %v151 = vrot.slane %v62, 1
    %v152 = vrot.slane %v63, 1
    %v153 = vsel %vm129, %v151, %v152
    %v162 = vsel %vm129, %v131, 0.0
    %v163 = vsel %vm129, %v134, 0.0
    %v164 = vsel %vm129, %v137, 0.0
    %v165 = vsel %vm129, %v140, 0.0
    %v166 = vsel %vm129, %v143, 0.0
    %v167 = vsel %vm129, %v146, 0.0
    %v168 = vsel %vm129, %v149, 0.0
    %v169 = vsel %vm129, %v152, 0.0
    %170 = vrot.lane.b32.xlu0 %v48, 16
    %v171 = vpop.permute.xlu0 %170
    %172 = vrot.lane.b32.xlu0 %v49, 16
    %v173 = vpop.permute.xlu0 %172
    %174 = vrot.lane.b32.xlu0 %v50, 16
    %v175 = vpop.permute.xlu0 %174
    %176 = vrot.lane.b32.xlu0 %v51, 16
    %v177 = vpop.permute.xlu0 %176
    %178 = vrot.lane.b32.xlu0 %v52, 16
    %v179 = vpop.permute.xlu0 %178
    %180 = vrot.lane.b32.xlu0 %v53, 16
    %v181 = vpop.permute.xlu0 %180
    %182 = vrot.lane.b32.xlu0 %v54, 16
    %v183 = vpop.permute.xlu0 %182
    %184 = vrot.lane.b32.xlu0 %v55, 16
    %v185 = vpop.permute.xlu0 %184
    %186 = vrot.lane.b32.xlu0 %v56, 16
    %v187 = vpop.permute.xlu0 %186
    %188 = vrot.lane.b32.xlu0 %v57, 16
    %v189 = vpop.permute.xlu0 %188
    %190 = vrot.lane.b32.xlu0 %v58, 16
    %v191 = vpop.permute.xlu0 %190
    %192 = vrot.lane.b32.xlu0 %v59, 16
    %v193 = vpop.permute.xlu0 %192
    %194 = vrot.lane.b32.xlu0 %v60, 16
    %v195 = vpop.permute.xlu0 %194
    %196 = vrot.lane.b32.xlu0 %v61, 16
    %v197 = vpop.permute.xlu0 %196
    %198 = vrot.lane.b32.xlu0 %v62, 16
    %v199 = vpop.permute.xlu0 %198
    %200 = vrot.lane.b32.xlu0 %v63, 16
    %v201 = vpop.permute.xlu0 %200
    %226 = vrot.lane.b32.xlu0 %v132, 32
    %v227 = vpop.permute.xlu0 %226
    %228 = vrot.lane.b32.xlu0 %v162, 32
    %v229 = vpop.permute.xlu0 %228
    %230 = vrot.lane.b32.xlu0 %v135, 32
    %v231 = vpop.permute.xlu0 %230
    %232 = vrot.lane.b32.xlu0 %v163, 32
    %v233 = vpop.permute.xlu0 %232
    %234 = vrot.lane.b32.xlu0 %v138, 32
    %v235 = vpop.permute.xlu0 %234
    %236 = vrot.lane.b32.xlu0 %v164, 32
    %v237 = vpop.permute.xlu0 %236
    %238 = vrot.lane.b32.xlu0 %v141, 32
    %v239 = vpop.permute.xlu0 %238
    %240 = vrot.lane.b32.xlu0 %v165, 32
    %v241 = vpop.permute.xlu0 %240
    %242 = vrot.lane.b32.xlu0 %v144, 32
    %v243 = vpop.permute.xlu0 %242
    %244 = vrot.lane.b32.xlu0 %v166, 32
    %v245 = vpop.permute.xlu0 %244
    %246 = vrot.lane.b32.xlu0 %v147, 32
    %v247 = vpop.permute.xlu0 %246
    %248 = vrot.lane.b32.xlu0 %v167, 32
    %v249 = vpop.permute.xlu0 %248
    %250 = vrot.lane.b32.xlu0 %v150, 32
    %v251 = vpop.permute.xlu0 %250
    %252 = vrot.lane.b32.xlu0 %v168, 32
    %v253 = vpop.permute.xlu0 %252
    %254 = vrot.lane.b32.xlu0 %v153, 32
    %v255 = vpop.permute.xlu0 %254
    %256 = vrot.lane.b32.xlu0 %v169, 32
    %v257 = vpop.permute.xlu0 %256
    %vm274 = vcmask 130048
    %v275 = vsel %vm274, %v121, %v171
    %v276 = vsel %vm274, %v83, %v173
    %v277 = vsel %vm274, %v122, %v175
    %v278 = vsel %vm274, %v86, %v177
    %v279 = vsel %vm274, %v123, %v179
    %v280 = vsel %vm274, %v89, %v181
    %v281 = vsel %vm274, %v124, %v183
    %v282 = vsel %vm274, %v92, %v185
    %v283 = vsel %vm274, %v125, %v187
    %v284 = vsel %vm274, %v95, %v189
    %v285 = vsel %vm274, %v126, %v191
    %v286 = vsel %vm274, %v98, %v193
    %v287 = vsel %vm274, %v127, %v195
    %v288 = vsel %vm274, %v101, %v197
    %v289 = vsel %vm274, %v128, %v199
    %v290 = vsel %vm274, %v104, %v201
    %vm291 = vcmask 261120
    %v292 = vsel %vm291, %v275, %v227
    %v293 = vsel %vm291, %v276, %v229
    %v294 = vsel %vm291, %v277, %v231
    %v295 = vsel %vm291, %v278, %v233
    %v296 = vsel %vm291, %v279, %v235
    %v297 = vsel %vm291, %v280, %v237
    %v298 = vsel %vm291, %v281, %v239
    %v299 = vsel %vm291, %v282, %v241
    %v300 = vsel %vm291, %v283, %v243
    %v301 = vsel %vm291, %v284, %v245
    %v302 = vsel %vm291, %v285, %v247
    %v303 = vsel %vm291, %v286, %v249
    %v304 = vsel %vm291, %v287, %v251
    %v305 = vsel %vm291, %v288, %v253
    %v306 = vsel %vm291, %v289, %v255
    %v307 = vsel %vm291, %v290, %v257
    %v308 = vld [vmem:[%s1] sm:$0xff]
    %v309 = vld [vmem:[%s1 + $0x8] sm:$0xff]
    %v310 = vld [vmem:[%s1 + $0x10] sm:$0xff]
    %v311 = vld [vmem:[%s1 + $0x18] sm:$0xff]
    %v312 = vld [vmem:[%s1 + $0x20] sm:$0xff]
    %v313 = vld [vmem:[%s1 + $0x28] sm:$0xff]
    %v314 = vld [vmem:[%s1 + $0x30] sm:$0xff]
    %v315 = vld [vmem:[%s1 + $0x38] sm:$0xff]
    %v316 = vld [vmem:[%s1 + $0x40] sm:$0xff]
    %v317 = vld [vmem:[%s1 + $0x48] sm:$0xff]
    %v318 = vld [vmem:[%s1 + $0x50] sm:$0xff]
    %v319 = vld [vmem:[%s1 + $0x58] sm:$0xff]
    %v320 = vld [vmem:[%s1 + $0x60] sm:$0xff]
    %v321 = vld [vmem:[%s1 + $0x68] sm:$0xff]
    %v322 = vld [vmem:[%s1 + $0x70] sm:$0xff]
    %v323 = vld [vmem:[%s1 + $0x78] sm:$0xff]
    %v324 = vld [vmem:[%s1 + $0x80] sm:$0xff]
    %v325 = vld [vmem:[%s1 + $0x88] sm:$0xff]
    %v326 = vld [vmem:[%s1 + $0x90] sm:$0xff]
    %v327 = vld [vmem:[%s1 + $0x98] sm:$0xff]
    %v328 = vld [vmem:[%s1 + $0xa0] sm:$0xff]
    %v329 = vld [vmem:[%s1 + $0xa8] sm:$0xff]
    %v330 = vld [vmem:[%s1 + $0xb0] sm:$0xff]
    %v331 = vld [vmem:[%s1 + $0xb8] sm:$0xff]
    %v332 = vld [vmem:[%s2] sm:$0xf]
    %v334 = vperm.slane %v332, 0
    %v335 = vperm.slane %v332, 1
    %v336 = vperm.slane %v332, 2
    %v337 = vperm.slane %v332, 3
    %vm342 = vcmask 392192
    %v344 = vsel %vm342, %v292, 0
    %v347 = vsel %vm342, %v293, 0
    %v350 = vsel %vm342, %v294, 0
    %v353 = vsel %vm342, %v295, 0
    %v356 = vsel %vm342, %v296, 0
    %v359 = vsel %vm342, %v297, 0
    %v362 = vsel %vm342, %v298, 0
    %v365 = vsel %vm342, %v299, 0
    %v368 = vsel %vm342, %v300, 0
    %v371 = vsel %vm342, %v301, 0
    %v374 = vsel %vm342, %v302, 0
    %v377 = vsel %vm342, %v303, 0
    %v380 = vsel %vm342, %v304, 0
    %v383 = vsel %vm342, %v305, 0
    %v386 = vsel %vm342, %v306, 0
    %v389 = vsel %vm342, %v307, 0
    %391 = vmatpush.msra.mxu0 0.0
    %392 = vmatpush.msra.mxu0 0.0
    %393 = vmatpush.msra.mxu0 0.0
    %394 = vmatpush.msra.mxu0 0.0
    %395 = vmatpush.msra.mxu0 0.0
    %396 = vmatpush.msra.mxu0 0.0
    %397 = vmatpush.msra.mxu0 0.0
    %398 = vmatpush.msra.mxu0 0.0
    %399 = vmatpush.msra.mxu0 0.0
    %400 = vmatpush.msra.mxu0 0.0
    %401 = vmatpush.msra.mxu0 %v328
    %402 = vmatpush.msra.mxu0 %v324
    %403 = vmatpush.msra.mxu0 %v320
    %404 = vmatpush.msra.mxu0 %v316
    %405 = vmatpush.msra.mxu0 %v312
    %406 = vmatpush.msra.mxu0 %v308
    %407 = vmatmul.f32.gmra.mxu0 %v344
    %v408 = vpop.f32.mrf.mxu0
    %v409 = vadd.f32 %v334, %v408
    %410 = vmatmul.f32.gmra.mxu0 %v347
    %v411 = vpop.f32.mrf.mxu0
    %v412 = vadd.f32 %v334, %v411
    %413 = vmatmul.f32.gmra.mxu0 %v350
    %v414 = vpop.f32.mrf.mxu0
    %v415 = vadd.f32 %v334, %v414
    %416 = vmatmul.f32.gmra.mxu0 %v353
    %v417 = vpop.f32.mrf.mxu0
    %v418 = vadd.f32 %v334, %v417
    %419 = vmatmul.f32.gmra.mxu0 %v356
    %v420 = vpop.f32.mrf.mxu0
    %v421 = vadd.f32 %v334, %v420
    %422 = vmatmul.f32.gmra.mxu0 %v359
    %v423 = vpop.f32.mrf.mxu0
    %v424 = vadd.f32 %v334, %v423
    %425 = vmatmul.f32.gmra.mxu0 %v362
    %v426 = vpop.f32.mrf.mxu0
    %v427 = vadd.f32 %v334, %v426
    %428 = vmatmul.f32.gmra.mxu0 %v365
    %v429 = vpop.f32.mrf.mxu0
    %v430 = vadd.f32 %v334, %v429
    %431 = vmatmul.f32.gmra.mxu0 %v368
    %v432 = vpop.f32.mrf.mxu0
    %v433 = vadd.f32 %v334, %v432
    %434 = vmatmul.f32.gmra.mxu0 %v371
    %v435 = vpop.f32.mrf.mxu0
    %v436 = vadd.f32 %v334, %v435
    %437 = vmatmul.f32.gmra.mxu0 %v374
    %v438 = vpop.f32.mrf.mxu0
    %v439 = vadd.f32 %v334, %v438
    %440 = vmatmul.f32.gmra.mxu0 %v377
    %v441 = vpop.f32.mrf.mxu0
    %v442 = vadd.f32 %v334, %v441
    %443 = vmatmul.f32.gmra.mxu0 %v380
    %v444 = vpop.f32.mrf.mxu0
    %v445 = vadd.f32 %v334, %v444
    %446 = vmatmul.f32.gmra.mxu0 %v383
    %v447 = vpop.f32.mrf.mxu0
    %v448 = vadd.f32 %v334, %v447
    %449 = vmatmul.f32.gmra.mxu0 %v386
    %v450 = vpop.f32.mrf.mxu0
    %v451 = vadd.f32 %v334, %v450
    %452 = vmatmul.f32.gmra.mxu0 %v389
    %v453 = vpop.f32.mrf.mxu0
    %v454 = vadd.f32 %v334, %v453
    %455 = vdwg.mxu0
    %456 = vmatpush.msra.mxu0 0.0
    %457 = vmatpush.msra.mxu0 0.0
    %458 = vmatpush.msra.mxu0 0.0
    %459 = vmatpush.msra.mxu0 0.0
    %460 = vmatpush.msra.mxu0 0.0
    %461 = vmatpush.msra.mxu0 0.0
    %462 = vmatpush.msra.mxu0 0.0
    %463 = vmatpush.msra.mxu0 0.0
    %464 = vmatpush.msra.mxu0 0.0
    %465 = vmatpush.msra.mxu0 0.0
    %466 = vmatpush.msra.mxu0 %v329
    %467 = vmatpush.msra.mxu0 %v325
    %468 = vmatpush.msra.mxu0 %v321
    %469 = vmatpush.msra.mxu0 %v317
    %470 = vmatpush.msra.mxu0 %v313
    %471 = vmatpush.msra.mxu0 %v309
    %472 = vmatmul.f32.gmra.mxu0 %v344
    %v473 = vpop.f32.mrf.mxu0
    %v474 = vadd.f32 %v335, %v473
    %475 = vmatmul.f32.gmra.mxu0 %v347
    %v476 = vpop.f32.mrf.mxu0
    %v477 = vadd.f32 %v335, %v476
    %478 = vmatmul.f32.gmra.mxu0 %v350
    %v479 = vpop.f32.mrf.mxu0
    %v480 = vadd.f32 %v335, %v479
    %481 = vmatmul.f32.gmra.mxu0 %v353
    %v482 = vpop.f32.mrf.mxu0
    %v483 = vadd.f32 %v335, %v482
    %484 = vmatmul.f32.gmra.mxu0 %v356
    %v485 = vpop.f32.mrf.mxu0
    %v486 = vadd.f32 %v335, %v485
    %487 = vmatmul.f32.gmra.mxu0 %v359
    %v488 = vpop.f32.mrf.mxu0
    %v489 = vadd.f32 %v335, %v488
    %490 = vmatmul.f32.gmra.mxu0 %v362
    %v491 = vpop.f32.mrf.mxu0
    %v492 = vadd.f32 %v335, %v491
    %493 = vmatmul.f32.gmra.mxu0 %v365
    %v494 = vpop.f32.mrf.mxu0
    %v495 = vadd.f32 %v335, %v494
    %496 = vmatmul.f32.gmra.mxu0 %v368
    %v497 = vpop.f32.mrf.mxu0
    %v498 = vadd.f32 %v335, %v497
    %499 = vmatmul.f32.gmra.mxu0 %v371
    %v500 = vpop.f32.mrf.mxu0
    %v501 = vadd.f32 %v335, %v500
    %502 = vmatmul.f32.gmra.mxu0 %v374
    %v503 = vpop.f32.mrf.mxu0
    %v504 = vadd.f32 %v335, %v503
    %505 = vmatmul.f32.gmra.mxu0 %v377
    %v506 = vpop.f32.mrf.mxu0
    %v507 = vadd.f32 %v335, %v506
    %508 = vmatmul.f32.gmra.mxu0 %v380
    %v509 = vpop.f32.mrf.mxu0
    %v510 = vadd.f32 %v335, %v509
    %511 = vmatmul.f32.gmra.mxu0 %v383
    %v512 = vpop.f32.mrf.mxu0
    %v513 = vadd.f32 %v335, %v512
    %514 = vmatmul.f32.gmra.mxu0 %v386
    %v515 = vpop.f32.mrf.mxu0
    %v516 = vadd.f32 %v335, %v515
    %517 = vmatmul.f32.gmra.mxu0 %v389
    %v518 = vpop.f32.mrf.mxu0
    %v519 = vadd.f32 %v335, %v518
    %520 = vdwg.mxu0
    %521 = vmatpush.msra.mxu0 0.0
    %522 = vmatpush.msra.mxu0 0.0
    %523 = vmatpush.msra.mxu0 0.0
    %524 = vmatpush.msra.mxu0 0.0
    %525 = vmatpush.msra.mxu0 0.0
    %526 = vmatpush.msra.mxu0 0.0
    %527 = vmatpush.msra.mxu0 0.0
    %528 = vmatpush.msra.mxu0 0.0
    %529 = vmatpush.msra.mxu0 0.0
    %530 = vmatpush.msra.mxu0 0.0
    %531 = vmatpush.msra.mxu0 %v330
    %532 = vmatpush.msra.mxu0 %v326
    %533 = vmatpush.msra.mxu0 %v322
    %534 = vmatpush.msra.mxu0 %v318
    %535 = vmatpush.msra.mxu0 %v314
    %536 = vmatpush.msra.mxu0 %v310
    %537 = vmatmul.f32.gmra.mxu0 %v344
    %v538 = vpop.f32.mrf.mxu0
    %v539 = vadd.f32 %v336, %v538
    %540 = vmatmul.f32.gmra.mxu0 %v347
    %v541 = vpop.f32.mrf.mxu0
    %v542 = vadd.f32 %v336, %v541
    %543 = vmatmul.f32.gmra.mxu0 %v350
    %v544 = vpop.f32.mrf.mxu0
    %v545 = vadd.f32 %v336, %v544
    %546 = vmatmul.f32.gmra.mxu0 %v353
    %v547 = vpop.f32.mrf.mxu0
    %v548 = vadd.f32 %v336, %v547
    %549 = vmatmul.f32.gmra.mxu0 %v356
    %v550 = vpop.f32.mrf.mxu0
    %v551 = vadd.f32 %v336, %v550
    %552 = vmatmul.f32.gmra.mxu0 %v359
    %v553 = vpop.f32.mrf.mxu0
    %v554 = vadd.f32 %v336, %v553
    %555 = vmatmul.f32.gmra.mxu0 %v362
    %v556 = vpop.f32.mrf.mxu0
    %v557 = vadd.f32 %v336, %v556
    %558 = vmatmul.f32.gmra.mxu0 %v365
    %v559 = vpop.f32.mrf.mxu0
    %v560 = vadd.f32 %v336, %v559
    %561 = vmatmul.f32.gmra.mxu0 %v368
    %v562 = vpop.f32.mrf.mxu0
    %v563 = vadd.f32 %v336, %v562
    %564 = vmatmul.f32.gmra.mxu0 %v371
    %v565 = vpop.f32.mrf.mxu0
    %v566 = vadd.f32 %v336, %v565
    %567 = vmatmul.f32.gmra.mxu0 %v374
    %v568 = vpop.f32.mrf.mxu0
    %v569 = vadd.f32 %v336, %v568
    %570 = vmatmul.f32.gmra.mxu0 %v377
    %v571 = vpop.f32.mrf.mxu0
    %v572 = vadd.f32 %v336, %v571
    %573 = vmatmul.f32.gmra.mxu0 %v380
    %v574 = vpop.f32.mrf.mxu0
    %v575 = vadd.f32 %v336, %v574
    %576 = vmatmul.f32.gmra.mxu0 %v383
    %v577 = vpop.f32.mrf.mxu0
    %v578 = vadd.f32 %v336, %v577
    %579 = vmatmul.f32.gmra.mxu0 %v386
    %v580 = vpop.f32.mrf.mxu0
    %v581 = vadd.f32 %v336, %v580
    %582 = vmatmul.f32.gmra.mxu0 %v389
    %v583 = vpop.f32.mrf.mxu0
    %v584 = vadd.f32 %v336, %v583
    %585 = vdwg.mxu0
    %586 = vmatpush.msra.mxu0 0.0
    %587 = vmatpush.msra.mxu0 0.0
    %588 = vmatpush.msra.mxu0 0.0
    %589 = vmatpush.msra.mxu0 0.0
    %590 = vmatpush.msra.mxu0 0.0
    %591 = vmatpush.msra.mxu0 0.0
    %592 = vmatpush.msra.mxu0 0.0
    %593 = vmatpush.msra.mxu0 0.0
    %594 = vmatpush.msra.mxu0 0.0
    %595 = vmatpush.msra.mxu0 0.0
    %596 = vmatpush.msra.mxu0 %v331
    %597 = vmatpush.msra.mxu0 %v327
    %598 = vmatpush.msra.mxu0 %v323
    %599 = vmatpush.msra.mxu0 %v319
    %600 = vmatpush.msra.mxu0 %v315
    %601 = vmatpush.msra.mxu0 %v311
    %602 = vmatmul.f32.gmra.mxu0 %v344
    %v603 = vpop.f32.mrf.mxu0
    %v604 = vadd.f32 %v337, %v603
    %605 = vmatmul.f32.gmra.mxu0 %v347
    %v606 = vpop.f32.mrf.mxu0
    %v607 = vadd.f32 %v337, %v606
    %608 = vmatmul.f32.gmra.mxu0 %v350
    %v609 = vpop.f32.mrf.mxu0
    %v610 = vadd.f32 %v337, %v609
    %611 = vmatmul.f32.gmra.mxu0 %v353
    %v612 = vpop.f32.mrf.mxu0
    %v613 = vadd.f32 %v337, %v612
    %614 = vmatmul.f32.gmra.mxu0 %v356
    %v615 = vpop.f32.mrf.mxu0
    %v616 = vadd.f32 %v337, %v615
    %617 = vmatmul.f32.gmra.mxu0 %v359
    %v618 = vpop.f32.mrf.mxu0
    %v619 = vadd.f32 %v337, %v618
    %620 = vmatmul.f32.gmra.mxu0 %v362
    %v621 = vpop.f32.mrf.mxu0
    %v622 = vadd.f32 %v337, %v621
    %623 = vmatmul.f32.gmra.mxu0 %v365
    %v624 = vpop.f32.mrf.mxu0
    %v625 = vadd.f32 %v337, %v624
    %626 = vmatmul.f32.gmra.mxu0 %v368
    %v627 = vpop.f32.mrf.mxu0
    %v628 = vadd.f32 %v337, %v627
    %629 = vmatmul.f32.gmra.mxu0 %v371
    %v630 = vpop.f32.mrf.mxu0
    %v631 = vadd.f32 %v337, %v630
    %632 = vmatmul.f32.gmra.mxu0 %v374
    %v633 = vpop.f32.mrf.mxu0
    %v634 = vadd.f32 %v337, %v633
    %635 = vmatmul.f32.gmra.mxu0 %v377
    %v636 = vpop.f32.mrf.mxu0
    %v637 = vadd.f32 %v337, %v636
    %638 = vmatmul.f32.gmra.mxu0 %v380
    %v639 = vpop.f32.mrf.mxu0
    %v640 = vadd.f32 %v337, %v639
    %641 = vmatmul.f32.gmra.mxu0 %v383
    %v642 = vpop.f32.mrf.mxu0
    %v643 = vadd.f32 %v337, %v642
    %644 = vmatmul.f32.gmra.mxu0 %v386
    %v645 = vpop.f32.mrf.mxu0
    %v646 = vadd.f32 %v337, %v645
    %647 = vmatmul.f32.gmra.mxu0 %v389
    %v648 = vpop.f32.mrf.mxu0
    %v649 = vadd.f32 %v337, %v648
    %650 = vdwg.mxu0
    %v651 = vmax.f32 %v409, %v539
    %v652 = vmax.f32 %v474, %v604
    %v653 = vmax.f32 %v412, %v542
    %v654 = vmax.f32 %v477, %v607
    %v655 = vmax.f32 %v415, %v545
    %v656 = vmax.f32 %v480, %v610
    %v657 = vmax.f32 %v418, %v548
    %v658 = vmax.f32 %v483, %v613
    %v659 = vmax.f32 %v421, %v551
    %v660 = vmax.f32 %v486, %v616
    %v661 = vmax.f32 %v424, %v554
    %v662 = vmax.f32 %v489, %v619
    %v663 = vmax.f32 %v427, %v557
    %v664 = vmax.f32 %v492, %v622
    %v665 = vmax.f32 %v430, %v560
    %v666 = vmax.f32 %v495, %v625
    %v667 = vmax.f32 %v433, %v563
    %v668 = vmax.f32 %v498, %v628
    %v669 = vmax.f32 %v436, %v566
    %v670 = vmax.f32 %v501, %v631
    %v671 = vmax.f32 %v439, %v569
    %v672 = vmax.f32 %v504, %v634
    %v673 = vmax.f32 %v442, %v572
    %v674 = vmax.f32 %v507, %v637
    %v675 = vmax.f32 %v445, %v575
    %v676 = vmax.f32 %v510, %v640
    %v677 = vmax.f32 %v448, %v578
    %v678 = vmax.f32 %v513, %v643
    %v679 = vmax.f32 %v451, %v581
    %v680 = vmax.f32 %v516, %v646
    %v681 = vmax.f32 %v454, %v584
    %v682 = vmax.f32 %v519, %v649
    %v715 = vrot.slane %v652, 6
    %v716 = vrot.slane %v654, 6
    %v717 = vrot.slane %v656, 6
    %v718 = vrot.slane %v658, 6
    %v719 = vrot.slane %v660, 6
    %v720 = vrot.slane %v662, 6
    %v721 = vrot.slane %v664, 6
    %v722 = vrot.slane %v666, 6
    %v723 = vrot.slane %v668, 6
    %v724 = vrot.slane %v670, 6
    %v725 = vrot.slane %v672, 6
    %v726 = vrot.slane %v674, 6
    %v727 = vrot.slane %v676, 6
    %v728 = vrot.slane %v678, 6
    %v729 = vrot.slane %v680, 6
    %v730 = vrot.slane %v682, 6
    %vm731 = vcmask 1041408
    %v732 = vsel %vm731, %v651, %v715
    %vm733 = vcmask 1043458
    %v734 = vsel %vm733, %v651, %v715
    %v735 = vrot.slane %v734, 2
    %vm736 = vcmask 1045508
    %v737 = vsel %vm736, %v651, %v715
    %v738 = vrot.slane %v737, 4
    %vm739 = vcmask 1045504
    %v740 = vsel %vm739, %v715, %v651
    %v741 = vrot.slane %v740, 6
    %v742 = vsel %vm731, %v653, %v716
    %v743 = vsel %vm733, %v653, %v716
    %v744 = vrot.slane %v743, 2
    %v745 = vsel %vm736, %v653, %v716
    %v746 = vrot.slane %v745, 4
    %v747 = vsel %vm739, %v716, %v653
    %v748 = vrot.slane %v747, 6
    %v749 = vsel %vm731, %v655, %v717
    %v750 = vsel %vm733, %v655, %v717
    %v751 = vrot.slane %v750, 2
    %v752 = vsel %vm736, %v655, %v717
    %v753 = vrot.slane %v752, 4
    %v754 = vsel %vm739, %v717, %v655
    %v755 = vrot.slane %v754, 6
    %v756 = vsel %vm731, %v657, %v718
    %v757 = vsel %vm733, %v657, %v718
    %v758 = vrot.slane %v757, 2
    %v759 = vsel %vm736, %v657, %v718
    %v760 = vrot.slane %v759, 4
    %v761 = vsel %vm739, %v718, %v657
    %v762 = vrot.slane %v761, 6
    %v763 = vsel %vm731, %v659, %v719
    %v764 = vsel %vm733, %v659, %v719
    %v765 = vrot.slane %v764, 2
    %v766 = vsel %vm736, %v659, %v719
    %v767 = vrot.slane %v766, 4
    %v768 = vsel %vm739, %v719, %v659
    %v769 = vrot.slane %v768, 6
    %v770 = vsel %vm731, %v661, %v720
    %v771 = vsel %vm733, %v661, %v720
    %v772 = vrot.slane %v771, 2
    %v773 = vsel %vm736, %v661, %v720
    %v774 = vrot.slane %v773, 4
    %v775 = vsel %vm739, %v720, %v661
    %v776 = vrot.slane %v775, 6
    %v777 = vsel %vm731, %v663, %v721
    %v778 = vsel %vm733, %v663, %v721
    %v779 = vrot.slane %v778, 2
    %v780 = vsel %vm736, %v663, %v721
    %v781 = vrot.slane %v780, 4
    %v782 = vsel %vm739, %v721, %v663
    %v783 = vrot.slane %v782, 6
    %v784 = vsel %vm731, %v665, %v722
    %v785 = vsel %vm733, %v665, %v722
    %v786 = vrot.slane %v785, 2
    %v787 = vsel %vm736, %v665, %v722
    %v788 = vrot.slane %v787, 4
    %v789 = vsel %vm739, %v722, %v665
    %v790 = vrot.slane %v789, 6
    %v791 = vsel %vm731, %v667, %v723
    %v792 = vsel %vm733, %v667, %v723
    %v793 = vrot.slane %v792, 2
    %v794 = vsel %vm736, %v667, %v723
    %v795 = vrot.slane %v794, 4
    %v796 = vsel %vm739, %v723, %v667
    %v797 = vrot.slane %v796, 6
    %v798 = vsel %vm731, %v669, %v724
    %v799 = vsel %vm733, %v669, %v724
    %v800 = vrot.slane %v799, 2
    %v801 = vsel %vm736, %v669, %v724
    %v802 = vrot.slane %v801, 4
    %v803 = vsel %vm739, %v724, %v669
    %v804 = vrot.slane %v803, 6
    %v805 = vsel %vm731, %v671, %v725
    %v806 = vsel %vm733, %v671, %v725
    %v807 = vrot.slane %v806, 2
    %v808 = vsel %vm736, %v671, %v725
    %v809 = vrot.slane %v808, 4
    %v810 = vsel %vm739, %v725, %v671
    %v811 = vrot.slane %v810, 6
    %v812 = vsel %vm731, %v673, %v726
    %v813 = vsel %vm733, %v673, %v726
    %v814 = vrot.slane %v813, 2
    %v815 = vsel %vm736, %v673, %v726
    %v816 = vrot.slane %v815, 4
    %v817 = vsel %vm739, %v726, %v673
    %v818 = vrot.slane %v817, 6
    %v819 = vsel %vm731, %v675, %v727
    %v820 = vsel %vm733, %v675, %v727
    %v821 = vrot.slane %v820, 2
    %v822 = vsel %vm736, %v675, %v727
    %v823 = vrot.slane %v822, 4
    %v824 = vsel %vm739, %v727, %v675
    %v825 = vrot.slane %v824, 6
    %v826 = vsel %vm731, %v677, %v728
    %v827 = vsel %vm733, %v677, %v728
    %v828 = vrot.slane %v827, 2
    %v829 = vsel %vm736, %v677, %v728
    %v830 = vrot.slane %v829, 4
    %v831 = vsel %vm739, %v728, %v677
    %v832 = vrot.slane %v831, 6
    %v833 = vsel %vm731, %v679, %v729
    %v834 = vsel %vm733, %v679, %v729
    %v835 = vrot.slane %v834, 2
    %v836 = vsel %vm736, %v679, %v729
    %v837 = vrot.slane %v836, 4
    %v838 = vsel %vm739, %v729, %v679
    %v839 = vrot.slane %v838, 6
    %v840 = vsel %vm731, %v681, %v730
    %v841 = vsel %vm733, %v681, %v730
    %v842 = vrot.slane %v841, 2
    %v843 = vsel %vm736, %v681, %v730
    %v844 = vrot.slane %v843, 4
    %v845 = vsel %vm739, %v730, %v681
    %v846 = vrot.slane %v845, 6
    %847 = vst [vmem:[#allocation1] ss:$4 sm:$0xff] %v732
    %v848 = vld.sshfl [vmem:[#allocation1] sm:$0xff pattern:$0x73625140]
    %v849 = vld.sshfl [vmem:[#allocation1 + $0x8] sm:$0xff pattern:$0x73625140]
    %s850 = scalar_lea.vmem [#allocation1], 32
    %851 = vst [vmem:[%s850] ss:$4 sm:$0xff] %v735
    %v852 = vld.sshfl [vmem:[#allocation1 + $0x20] sm:$0xff pattern:$0x73625140]
    %v853 = vld.sshfl [vmem:[#allocation1 + $0x28] sm:$0xff pattern:$0x73625140]
    %854 = vst [vmem:[#allocation1] ss:$4 sm:$0xff] %v738
    %v855 = vld.sshfl [vmem:[#allocation1] sm:$0xff pattern:$0x73625140]
    %v856 = vld.sshfl [vmem:[#allocation1 + $0x8] sm:$0xff pattern:$0x73625140]
    %857 = vst [vmem:[%s850] ss:$4 sm:$0xff] %v741
    %v858 = vld.sshfl [vmem:[#allocation1 + $0x20] sm:$0xff pattern:$0x73625140]
    %v859 = vld.sshfl [vmem:[#allocation1 + $0x28] sm:$0xff pattern:$0x73625140]
    %860 = vst [vmem:[#allocation1] ss:$4 sm:$0xff] %v742
    %v861 = vld.sshfl [vmem:[#allocation1] sm:$0xff pattern:$0x73625140]
    %v862 = vld.sshfl [vmem:[#allocation1 + $0x8] sm:$0xff pattern:$0x73625140]
    %863 = vst [vmem:[%s850] ss:$4 sm:$0xff] %v744
    %v864 = vld.sshfl [vmem:[#allocation1 + $0x20] sm:$0xff pattern:$0x73625140]
    %v865 = vld.sshfl [vmem:[#allocation1 + $0x28] sm:$0xff pattern:$0x73625140]
    %866 = vst [vmem:[#allocation1] ss:$4 sm:$0xff] %v746
    %v867 = vld.sshfl [vmem:[#allocation1] sm:$0xff pattern:$0x73625140]
    %v868 = vld.sshfl [vmem:[#allocation1 + $0x8] sm:$0xff pattern:$0x73625140]
    %869 = vst [vmem:[%s850] ss:$4 sm:$0xff] %v748
    %v870 = vld.sshfl [vmem:[#allocation1 + $0x20] sm:$0xff pattern:$0x73625140]
    %v871 = vld.sshfl [vmem:[#allocation1 + $0x28] sm:$0xff pattern:$0x73625140]
    %872 = vst [vmem:[#allocation1] ss:$4 sm:$0xff] %v749
    %v873 = vld.sshfl [vmem:[#allocation1] sm:$0xff pattern:$0x73625140]
    %v874 = vld.sshfl [vmem:[#allocation1 + $0x8] sm:$0xff pattern:$0x73625140]
    %875 = vst [vmem:[%s850] ss:$4 sm:$0xff] %v751
    %v876 = vld.sshfl [vmem:[#allocation1 + $0x20] sm:$0xff pattern:$0x73625140]
    %v877 = vld.sshfl [vmem:[#allocation1 + $0x28] sm:$0xff pattern:$0x73625140]
    %878 = vst [vmem:[#allocation1] ss:$4 sm:$0xff] %v753
    %v879 = vld.sshfl [vmem:[#allocation1] sm:$0xff pattern:$0x73625140]
    %v880 = vld.sshfl [vmem:[#allocation1 + $0x8] sm:$0xff pattern:$0x73625140]
    %881 = vst [vmem:[%s850] ss:$4 sm:$0xff] %v755
    %v882 = vld.sshfl [vmem:[#allocation1 + $0x20] sm:$0xff pattern:$0x73625140]
    %v883 = vld.sshfl [vmem:[#allocation1 + $0x28] sm:$0xff pattern:$0x73625140]
    %884 = vst [vmem:[#allocation1] ss:$4 sm:$0xff] %v756
    %v885 = vld.sshfl [vmem:[#allocation1] sm:$0xff pattern:$0x73625140]
    %v886 = vld.sshfl [vmem:[#allocation1 + $0x8] sm:$0xff pattern:$0x73625140]
    %887 = vst [vmem:[%s850] ss:$4 sm:$0xff] %v758
    %v888 = vld.sshfl [vmem:[#allocation1 + $0x20] sm:$0xff pattern:$0x73625140]
    %v889 = vld.sshfl [vmem:[#allocation1 + $0x28] sm:$0xff pattern:$0x73625140]
    %890 = vst [vmem:[#allocation1] ss:$4 sm:$0xff] %v760
    %v891 = vld.sshfl [vmem:[#allocation1] sm:$0xff pattern:$0x73625140]
    %v892 = vld.sshfl [vmem:[#allocation1 + $0x8] sm:$0xff pattern:$0x73625140]
    %893 = vst [vmem:[%s850] ss:$4 sm:$0xff] %v762
    %v894 = vld.sshfl [vmem:[#allocation1 + $0x20] sm:$0xff pattern:$0x73625140]
    %v895 = vld.sshfl [vmem:[#allocation1 + $0x28] sm:$0xff pattern:$0x73625140]
    %896 = vst [vmem:[#allocation1] ss:$4 sm:$0xff] %v763
    %v897 = vld.sshfl [vmem:[#allocation1] sm:$0xff pattern:$0x73625140]
    %v898 = vld.sshfl [vmem:[#allocation1 + $0x8] sm:$0xff pattern:$0x73625140]
    %899 = vst [vmem:[%s850] ss:$4 sm:$0xff] %v765
    %v900 = vld.sshfl [vmem:[#allocation1 + $0x20] sm:$0xff pattern:$0x73625140]
    %v901 = vld.sshfl [vmem:[#allocation1 + $0x28] sm:$0xff pattern:$0x73625140]
    %902 = vst [vmem:[#allocation1] ss:$4 sm:$0xff] %v767
    %v903 = vld.sshfl [vmem:[#allocation1] sm:$0xff pattern:$0x73625140]
    %v904 = vld.sshfl [vmem:[#allocation1 + $0x8] sm:$0xff pattern:$0x73625140]
    %905 = vst [vmem:[%s850] ss:$4 sm:$0xff] %v769
    %v906 = vld.sshfl [vmem:[#allocation1 + $0x20] sm:$0xff pattern:$0x73625140]
    %v907 = vld.sshfl [vmem:[#allocation1 + $0x28] sm:$0xff pattern:$0x73625140]
    %908 = vst [vmem:[#allocation1] ss:$4 sm:$0xff] %v770
    %v909 = vld.sshfl [vmem:[#allocation1] sm:$0xff pattern:$0x73625140]
    %v910 = vld.sshfl [vmem:[#allocation1 + $0x8] sm:$0xff pattern:$0x73625140]
    %911 = vst [vmem:[%s850] ss:$4 sm:$0xff] %v772
    %v912 = vld.sshfl [vmem:[#allocation1 + $0x20] sm:$0xff pattern:$0x73625140]
    %v913 = vld.sshfl [vmem:[#allocation1 + $0x28] sm:$0xff pattern:$0x73625140]
    %914 = vst [vmem:[#allocation1] ss:$4 sm:$0xff] %v774
    %v915 = vld.sshfl [vmem:[#allocation1] sm:$0xff pattern:$0x73625140]
    %v916 = vld.sshfl [vmem:[#allocation1 + $0x8] sm:$0xff pattern:$0x73625140]
    %917 = vst [vmem:[%s850] ss:$4 sm:$0xff] %v776
    %v918 = vld.sshfl [vmem:[#allocation1 + $0x20] sm:$0xff pattern:$0x73625140]
    %v919 = vld.sshfl [vmem:[#allocation1 + $0x28] sm:$0xff pattern:$0x73625140]
    %920 = vst [vmem:[#allocation1] ss:$4 sm:$0xff] %v777
    %v921 = vld.sshfl [vmem:[#allocation1] sm:$0xff pattern:$0x73625140]
    %v922 = vld.sshfl [vmem:[#allocation1 + $0x8] sm:$0xff pattern:$0x73625140]
    %923 = vst [vmem:[%s850] ss:$4 sm:$0xff] %v779
    %v924 = vld.sshfl [vmem:[#allocation1 + $0x20] sm:$0xff pattern:$0x73625140]
    %v925 = vld.sshfl [vmem:[#allocation1 + $0x28] sm:$0xff pattern:$0x73625140]
    %926 = vst [vmem:[#allocation1] ss:$4 sm:$0xff] %v781
    %v927 = vld.sshfl [vmem:[#allocation1] sm:$0xff pattern:$0x73625140]
    %v928 = vld.sshfl [vmem:[#allocation1 + $0x8] sm:$0xff pattern:$0x73625140]
    %929 = vst [vmem:[%s850] ss:$4 sm:$0xff] %v783
    %v930 = vld.sshfl [vmem:[#allocation1 + $0x20] sm:$0xff pattern:$0x73625140]
    %v931 = vld.sshfl [vmem:[#allocation1 + $0x28] sm:$0xff pattern:$0x73625140]
    %932 = vst [vmem:[#allocation1] ss:$4 sm:$0xff] %v784
    %v933 = vld.sshfl [vmem:[#allocation1] sm:$0xff pattern:$0x73625140]
    %v934 = vld.sshfl [vmem:[#allocation1 + $0x8] sm:$0xff pattern:$0x73625140]
    %935 = vst [vmem:[%s850] ss:$4 sm:$0xff] %v786
    %v936 = vld.sshfl [vmem:[#allocation1 + $0x20] sm:$0xff pattern:$0x73625140]
    %v937 = vld.sshfl [vmem:[#allocation1 + $0x28] sm:$0xff pattern:$0x73625140]
    %938 = vst [vmem:[#allocation1] ss:$4 sm:$0xff] %v788
    %v939 = vld.sshfl [vmem:[#allocation1] sm:$0xff pattern:$0x73625140]
    %v940 = vld.sshfl [vmem:[#allocation1 + $0x8] sm:$0xff pattern:$0x73625140]
    %941 = vst [vmem:[%s850] ss:$4 sm:$0xff] %v790
    %v942 = vld.sshfl [vmem:[#allocation1 + $0x20] sm:$0xff pattern:$0x73625140]
    %v943 = vld.sshfl [vmem:[#allocation1 + $0x28] sm:$0xff pattern:$0x73625140]
    %944 = vst [vmem:[#allocation1] ss:$4 sm:$0xff] %v791
    %v945 = vld.sshfl [vmem:[#allocation1] sm:$0xff pattern:$0x73625140]
    %v946 = vld.sshfl [vmem:[#allocation1 + $0x8] sm:$0xff pattern:$0x73625140]
    %947 = vst [vmem:[%s850] ss:$4 sm:$0xff] %v793
    %v948 = vld.sshfl [vmem:[#allocation1 + $0x20] sm:$0xff pattern:$0x73625140]
    %v949 = vld.sshfl [vmem:[#allocation1 + $0x28] sm:$0xff pattern:$0x73625140]
    %950 = vst [vmem:[#allocation1] ss:$4 sm:$0xff] %v795
    %v951 = vld.sshfl [vmem:[#allocation1] sm:$0xff pattern:$0x73625140]
    %v952 = vld.sshfl [vmem:[#allocation1 + $0x8] sm:$0xff pattern:$0x73625140]
    %953 = vst [vmem:[%s850] ss:$4 sm:$0xff] %v797
    %v954 = vld.sshfl [vmem:[#allocation1 + $0x20] sm:$0xff pattern:$0x73625140]
    %v955 = vld.sshfl [vmem:[#allocation1 + $0x28] sm:$0xff pattern:$0x73625140]
    %956 = vst [vmem:[#allocation1] ss:$4 sm:$0xff] %v798
    %v957 = vld.sshfl [vmem:[#allocation1] sm:$0xff pattern:$0x73625140]
    %v958 = vld.sshfl [vmem:[#allocation1 + $0x8] sm:$0xff pattern:$0x73625140]
    %959 = vst [vmem:[%s850] ss:$4 sm:$0xff] %v800
    %v960 = vld.sshfl [vmem:[#allocation1 + $0x20] sm:$0xff pattern:$0x73625140]
    %v961 = vld.sshfl [vmem:[#allocation1 + $0x28] sm:$0xff pattern:$0x73625140]
    %962 = vst [vmem:[#allocation1] ss:$4 sm:$0xff] %v802
    %v963 = vld.sshfl [vmem:[#allocation1] sm:$0xff pattern:$0x73625140]
    %v964 = vld.sshfl [vmem:[#allocation1 + $0x8] sm:$0xff pattern:$0x73625140]
    %965 = vst [vmem:[%s850] ss:$4 sm:$0xff] %v804
    %v966 = vld.sshfl [vmem:[#allocation1 + $0x20] sm:$0xff pattern:$0x73625140]
    %v967 = vld.sshfl [vmem:[#allocation1 + $0x28] sm:$0xff pattern:$0x73625140]
    %968 = vst [vmem:[#allocation1] ss:$4 sm:$0xff] %v805
    %v969 = vld.sshfl [vmem:[#allocation1] sm:$0xff pattern:$0x73625140]
    %v970 = vld.sshfl [vmem:[#allocation1 + $0x8] sm:$0xff pattern:$0x73625140]
    %971 = vst [vmem:[%s850] ss:$4 sm:$0xff] %v807
    %v972 = vld.sshfl [vmem:[#allocation1 + $0x20] sm:$0xff pattern:$0x73625140]
    %v973 = vld.sshfl [vmem:[#allocation1 + $0x28] sm:$0xff pattern:$0x73625140]
    %974 = vst [vmem:[#allocation1] ss:$4 sm:$0xff] %v809
    %v975 = vld.sshfl [vmem:[#allocation1] sm:$0xff pattern:$0x73625140]
    %v976 = vld.sshfl [vmem:[#allocation1 + $0x8] sm:$0xff pattern:$0x73625140]
    %977 = vst [vmem:[%s850] ss:$4 sm:$0xff] %v811
    %v978 = vld.sshfl [vmem:[#allocation1 + $0x20] sm:$0xff pattern:$0x73625140]
    %v979 = vld.sshfl [vmem:[#allocation1 + $0x28] sm:$0xff pattern:$0x73625140]
    %980 = vst [vmem:[#allocation1] ss:$4 sm:$0xff] %v812
    %v981 = vld.sshfl [vmem:[#allocation1] sm:$0xff pattern:$0x73625140]
    %v982 = vld.sshfl [vmem:[#allocation1 + $0x8] sm:$0xff pattern:$0x73625140]
    %983 = vst [vmem:[%s850] ss:$4 sm:$0xff] %v814
    %v984 = vld.sshfl [vmem:[#allocation1 + $0x20] sm:$0xff pattern:$0x73625140]
    %v985 = vld.sshfl [vmem:[#allocation1 + $0x28] sm:$0xff pattern:$0x73625140]
    %986 = vst [vmem:[#allocation1] ss:$4 sm:$0xff] %v816
    %v987 = vld.sshfl [vmem:[#allocation1] sm:$0xff pattern:$0x73625140]
    %v988 = vld.sshfl [vmem:[#allocation1 + $0x8] sm:$0xff pattern:$0x73625140]
    %989 = vst [vmem:[%s850] ss:$4 sm:$0xff] %v818
    %v990 = vld.sshfl [vmem:[#allocation1 + $0x20] sm:$0xff pattern:$0x73625140]
    %v991 = vld.sshfl [vmem:[#allocation1 + $0x28] sm:$0xff pattern:$0x73625140]
    %992 = vst [vmem:[#allocation1] ss:$4 sm:$0xff] %v819
    %v993 = vld.sshfl [vmem:[#allocation1] sm:$0xff pattern:$0x73625140]
    %v994 = vld.sshfl [vmem:[#allocation1 + $0x8] sm:$0xff pattern:$0x73625140]
    %995 = vst [vmem:[%s850] ss:$4 sm:$0xff] %v821
    %v996 = vld.sshfl [vmem:[#allocation1 + $0x20] sm:$0xff pattern:$0x73625140]
    %v997 = vld.sshfl [vmem:[#allocation1 + $0x28] sm:$0xff pattern:$0x73625140]
    %998 = vst [vmem:[#allocation1] ss:$4 sm:$0xff] %v823
    %v999 = vld.sshfl [vmem:[#allocation1] sm:$0xff pattern:$0x73625140]
    %v1000 = vld.sshfl [vmem:[#allocation1 + $0x8] sm:$0xff pattern:$0x73625140]
    %1001 = vst [vmem:[%s850] ss:$4 sm:$0xff] %v825
    %v1002 = vld.sshfl [vmem:[#allocation1 + $0x20] sm:$0xff pattern:$0x73625140]
    %v1003 = vld.sshfl [vmem:[#allocation1 + $0x28] sm:$0xff pattern:$0x73625140]
    %1004 = vst [vmem:[#allocation1] ss:$4 sm:$0xff] %v826
    %v1005 = vld.sshfl [vmem:[#allocation1] sm:$0xff pattern:$0x73625140]
    %v1006 = vld.sshfl [vmem:[#allocation1 + $0x8] sm:$0xff pattern:$0x73625140]
    %1007 = vst [vmem:[%s850] ss:$4 sm:$0xff] %v828
    %v1008 = vld.sshfl [vmem:[#allocation1 + $0x20] sm:$0xff pattern:$0x73625140]
    %v1009 = vld.sshfl [vmem:[#allocation1 + $0x28] sm:$0xff pattern:$0x73625140]
    %1010 = vst [vmem:[#allocation1] ss:$4 sm:$0xff] %v830
    %v1011 = vld.sshfl [vmem:[#allocation1] sm:$0xff pattern:$0x73625140]
    %v1012 = vld.sshfl [vmem:[#allocation1 + $0x8] sm:$0xff pattern:$0x73625140]
    %1013 = vst [vmem:[%s850] ss:$4 sm:$0xff] %v832
    %v1014 = vld.sshfl [vmem:[#allocation1 + $0x20] sm:$0xff pattern:$0x73625140]
    %v1015 = vld.sshfl [vmem:[#allocation1 + $0x28] sm:$0xff pattern:$0x73625140]
    %1016 = vst [vmem:[#allocation1] ss:$4 sm:$0xff] %v833
    %v1017 = vld.sshfl [vmem:[#allocation1] sm:$0xff pattern:$0x73625140]
    %v1018 = vld.sshfl [vmem:[#allocation1 + $0x8] sm:$0xff pattern:$0x73625140]
    %1019 = vst [vmem:[%s850] ss:$4 sm:$0xff] %v835
    %v1020 = vld.sshfl [vmem:[#allocation1 + $0x20] sm:$0xff pattern:$0x73625140]
    %v1021 = vld.sshfl [vmem:[#allocation1 + $0x28] sm:$0xff pattern:$0x73625140]
    %1022 = vst [vmem:[#allocation1] ss:$4 sm:$0xff] %v837
    %v1023 = vld.sshfl [vmem:[#allocation1] sm:$0xff pattern:$0x73625140]
    %v1024 = vld.sshfl [vmem:[#allocation1 + $0x8] sm:$0xff pattern:$0x73625140]
    %1025 = vst [vmem:[%s850] ss:$4 sm:$0xff] %v839
    %v1026 = vld.sshfl [vmem:[#allocation1 + $0x20] sm:$0xff pattern:$0x73625140]
    %v1027 = vld.sshfl [vmem:[#allocation1 + $0x28] sm:$0xff pattern:$0x73625140]
    %1028 = vst [vmem:[#allocation1] ss:$4 sm:$0xff] %v840
    %v1029 = vld.sshfl [vmem:[#allocation1] sm:$0xff pattern:$0x73625140]
    %v1030 = vld.sshfl [vmem:[#allocation1 + $0x8] sm:$0xff pattern:$0x73625140]
    %1031 = vst [vmem:[%s850] ss:$4 sm:$0xff] %v842
    %v1032 = vld.sshfl [vmem:[#allocation1 + $0x20] sm:$0xff pattern:$0x73625140]
    %v1033 = vld.sshfl [vmem:[#allocation1 + $0x28] sm:$0xff pattern:$0x73625140]
    %1034 = vst [vmem:[#allocation1] ss:$4 sm:$0xff] %v844
    %v1035 = vld.sshfl [vmem:[#allocation1] sm:$0xff pattern:$0x73625140]
    %v1036 = vld.sshfl [vmem:[#allocation1 + $0x8] sm:$0xff pattern:$0x73625140]
    %1037 = vst [vmem:[%s850] ss:$4 sm:$0xff] %v846
    %v1038 = vld.sshfl [vmem:[#allocation1 + $0x20] sm:$0xff pattern:$0x73625140]
    %v1039 = vld.sshfl [vmem:[#allocation1 + $0x28] sm:$0xff pattern:$0x73625140]
    %v1168 = vsel %vm731, %v848, -inf
    %v1169 = vrot.slane %v1168, 4
    %v1170 = vmax.f32 %v1168, %v1169
    %v1171 = vrot.slane %v1170, 2
    %v1172 = vmax.f32 %v1170, %v1171
    %v1173 = vrot.slane %v1172, 1
    %v1174 = vmax.f32 %v1172, %v1173
    %v1175 = vsel %vm731, %v849, -inf
    %v1176 = vrot.slane %v1175, 4
    %v1177 = vmax.f32 %v1175, %v1176
    %v1178 = vrot.slane %v1177, 2
    %v1179 = vmax.f32 %v1177, %v1178
    %v1180 = vrot.slane %v1179, 1
    %v1181 = vmax.f32 %v1179, %v1180
    %v1182 = vsel %vm731, %v852, -inf
    %v1183 = vrot.slane %v1182, 4
    %v1184 = vmax.f32 %v1182, %v1183
    %v1185 = vrot.slane %v1184, 2
    %v1186 = vmax.f32 %v1184, %v1185
    %v1187 = vrot.slane %v1186, 1
    %v1188 = vmax.f32 %v1186, %v1187
    %v1189 = vsel %vm731, %v853, -inf
    %v1190 = vrot.slane %v1189, 4
    %v1191 = vmax.f32 %v1189, %v1190
    %v1192 = vrot.slane %v1191, 2
    %v1193 = vmax.f32 %v1191, %v1192
    %v1194 = vrot.slane %v1193, 1
    %v1195 = vmax.f32 %v1193, %v1194
    %v1196 = vsel %vm731, %v855, -inf
    %v1197 = vrot.slane %v1196, 4
    %v1198 = vmax.f32 %v1196, %v1197
    %v1199 = vrot.slane %v1198, 2
    %v1200 = vmax.f32 %v1198, %v1199
    %v1201 = vrot.slane %v1200, 1
    %v1202 = vmax.f32 %v1200, %v1201
    %v1203 = vsel %vm731, %v856, -inf
    %v1204 = vrot.slane %v1203, 4
    %v1205 = vmax.f32 %v1203, %v1204
    %v1206 = vrot.slane %v1205, 2
    %v1207 = vmax.f32 %v1205, %v1206
    %v1208 = vrot.slane %v1207, 1
    %v1209 = vmax.f32 %v1207, %v1208
    %v1210 = vsel %vm731, %v858, -inf
    %v1211 = vrot.slane %v1210, 4
    %v1212 = vmax.f32 %v1210, %v1211
    %v1213 = vrot.slane %v1212, 2
    %v1214 = vmax.f32 %v1212, %v1213
    %v1215 = vrot.slane %v1214, 1
    %v1216 = vmax.f32 %v1214, %v1215
    %v1217 = vsel %vm731, %v859, -inf
    %v1218 = vrot.slane %v1217, 4
    %v1219 = vmax.f32 %v1217, %v1218
    %v1220 = vrot.slane %v1219, 2
    %v1221 = vmax.f32 %v1219, %v1220
    %v1222 = vrot.slane %v1221, 1
    %v1223 = vmax.f32 %v1221, %v1222
    %v1224 = vsel %vm731, %v861, -inf
    %v1225 = vrot.slane %v1224, 4
    %v1226 = vmax.f32 %v1224, %v1225
    %v1227 = vrot.slane %v1226, 2
    %v1228 = vmax.f32 %v1226, %v1227
    %v1229 = vrot.slane %v1228, 1
    %v1230 = vmax.f32 %v1228, %v1229
    %v1231 = vsel %vm731, %v862, -inf
    %v1232 = vrot.slane %v1231, 4
    %v1233 = vmax.f32 %v1231, %v1232
    %v1234 = vrot.slane %v1233, 2
    %v1235 = vmax.f32 %v1233, %v1234
    %v1236 = vrot.slane %v1235, 1
    %v1237 = vmax.f32 %v1235, %v1236
    %v1238 = vsel %vm731, %v864, -inf
    %v1239 = vrot.slane %v1238, 4
    %v1240 = vmax.f32 %v1238, %v1239
    %v1241 = vrot.slane %v1240, 2
    %v1242 = vmax.f32 %v1240, %v1241
    %v1243 = vrot.slane %v1242, 1
    %v1244 = vmax.f32 %v1242, %v1243
    %v1245 = vsel %vm731, %v865, -inf
    %v1246 = vrot.slane %v1245, 4
    %v1247 = vmax.f32 %v1245, %v1246
    %v1248 = vrot.slane %v1247, 2
    %v1249 = vmax.f32 %v1247, %v1248
    %v1250 = vrot.slane %v1249, 1
    %v1251 = vmax.f32 %v1249, %v1250
    %v1252 = vsel %vm731, %v867, -inf
    %v1253 = vrot.slane %v1252, 4
    %v1254 = vmax.f32 %v1252, %v1253
    %v1255 = vrot.slane %v1254, 2
    %v1256 = vmax.f32 %v1254, %v1255
    %v1257 = vrot.slane %v1256, 1
    %v1258 = vmax.f32 %v1256, %v1257
    %v1259 = vsel %vm731, %v868, -inf
    %v1260 = vrot.slane %v1259, 4
    %v1261 = vmax.f32 %v1259, %v1260
    %v1262 = vrot.slane %v1261, 2
    %v1263 = vmax.f32 %v1261, %v1262
    %v1264 = vrot.slane %v1263, 1
    %v1265 = vmax.f32 %v1263, %v1264
    %v1266 = vsel %vm731, %v870, -inf
    %v1267 = vrot.slane %v1266, 4
    %v1268 = vmax.f32 %v1266, %v1267
    %v1269 = vrot.slane %v1268, 2
    %v1270 = vmax.f32 %v1268, %v1269
    %v1271 = vrot.slane %v1270, 1
    %v1272 = vmax.f32 %v1270, %v1271
    %v1273 = vsel %vm731, %v871, -inf
    %v1274 = vrot.slane %v1273, 4
    %v1275 = vmax.f32 %v1273, %v1274
    %v1276 = vrot.slane %v1275, 2
    %v1277 = vmax.f32 %v1275, %v1276
    %v1278 = vrot.slane %v1277, 1
    %v1279 = vmax.f32 %v1277, %v1278
    %v1280 = vsel %vm731, %v873, -inf
    %v1281 = vrot.slane %v1280, 4
    %v1282 = vmax.f32 %v1280, %v1281
    %v1283 = vrot.slane %v1282, 2
    %v1284 = vmax.f32 %v1282, %v1283
    %v1285 = vrot.slane %v1284, 1
    %v1286 = vmax.f32 %v1284, %v1285
    %v1287 = vsel %vm731, %v874, -inf
    %v1288 = vrot.slane %v1287, 4
    %v1289 = vmax.f32 %v1287, %v1288
    %v1290 = vrot.slane %v1289, 2
    %v1291 = vmax.f32 %v1289, %v1290
    %v1292 = vrot.slane %v1291, 1
    %v1293 = vmax.f32 %v1291, %v1292
    %v1294 = vsel %vm731, %v876, -inf
    %v1295 = vrot.slane %v1294, 4
    %v1296 = vmax.f32 %v1294, %v1295
    %v1297 = vrot.slane %v1296, 2
    %v1298 = vmax.f32 %v1296, %v1297
    %v1299 = vrot.slane %v1298, 1
    %v1300 = vmax.f32 %v1298, %v1299
    %v1301 = vsel %vm731, %v877, -inf
    %v1302 = vrot.slane %v1301, 4
    %v1303 = vmax.f32 %v1301, %v1302
    %v1304 = vrot.slane %v1303, 2
    %v1305 = vmax.f32 %v1303, %v1304
    %v1306 = vrot.slane %v1305, 1
    %v1307 = vmax.f32 %v1305, %v1306
    %v1308 = vsel %vm731, %v879, -inf
    %v1309 = vrot.slane %v1308, 4
    %v1310 = vmax.f32 %v1308, %v1309
    %v1311 = vrot.slane %v1310, 2
    %v1312 = vmax.f32 %v1310, %v1311
    %v1313 = vrot.slane %v1312, 1
    %v1314 = vmax.f32 %v1312, %v1313
    %v1315 = vsel %vm731, %v880, -inf
    %v1316 = vrot.slane %v1315, 4
    %v1317 = vmax.f32 %v1315, %v1316
    %v1318 = vrot.slane %v1317, 2
    %v1319 = vmax.f32 %v1317, %v1318
    %v1320 = vrot.slane %v1319, 1
    %v1321 = vmax.f32 %v1319, %v1320
    %v1322 = vsel %vm731, %v882, -inf
    %v1323 = vrot.slane %v1322, 4
    %v1324 = vmax.f32 %v1322, %v1323
    %v1325 = vrot.slane %v1324, 2
    %v1326 = vmax.f32 %v1324, %v1325
    %v1327 = vrot.slane %v1326, 1
    %v1328 = vmax.f32 %v1326, %v1327
    %v1329 = vsel %vm731, %v883, -inf
    %v1330 = vrot.slane %v1329, 4
    %v1331 = vmax.f32 %v1329, %v1330
    %v1332 = vrot.slane %v1331, 2
    %v1333 = vmax.f32 %v1331, %v1332
    %v1334 = vrot.slane %v1333, 1
    %v1335 = vmax.f32 %v1333, %v1334
    %v1336 = vsel %vm731, %v885, -inf
    %v1337 = vrot.slane %v1336, 4
    %v1338 = vmax.f32 %v1336, %v1337
    %v1339 = vrot.slane %v1338, 2
    %v1340 = vmax.f32 %v1338, %v1339
    %v1341 = vrot.slane %v1340, 1
    %v1342 = vmax.f32 %v1340, %v1341
    %v1343 = vsel %vm731, %v886, -inf
    %v1344 = vrot.slane %v1343, 4
    %v1345 = vmax.f32 %v1343, %v1344
    %v1346 = vrot.slane %v1345, 2
    %v1347 = vmax.f32 %v1345, %v1346
    %v1348 = vrot.slane %v1347, 1
    %v1349 = vmax.f32 %v1347, %v1348
    %v1350 = vsel %vm731, %v888, -inf
    %v1351 = vrot.slane %v1350, 4
    %v1352 = vmax.f32 %v1350, %v1351
    %v1353 = vrot.slane %v1352, 2
    %v1354 = vmax.f32 %v1352, %v1353
    %v1355 = vrot.slane %v1354, 1
    %v1356 = vmax.f32 %v1354, %v1355
    %v1357 = vsel %vm731, %v889, -inf
    %v1358 = vrot.slane %v1357, 4
    %v1359 = vmax.f32 %v1357, %v1358
    %v1360 = vrot.slane %v1359, 2
    %v1361 = vmax.f32 %v1359, %v1360
    %v1362 = vrot.slane %v1361, 1
    %v1363 = vmax.f32 %v1361, %v1362
    %v1364 = vsel %vm731, %v891, -inf
    %v1365 = vrot.slane %v1364, 4
    %v1366 = vmax.f32 %v1364, %v1365
    %v1367 = vrot.slane %v1366, 2
    %v1368 = vmax.f32 %v1366, %v1367
    %v1369 = vrot.slane %v1368, 1
    %v1370 = vmax.f32 %v1368, %v1369
    %v1371 = vsel %vm731, %v892, -inf
    %v1372 = vrot.slane %v1371, 4
    %v1373 = vmax.f32 %v1371, %v1372
    %v1374 = vrot.slane %v1373, 2
    %v1375 = vmax.f32 %v1373, %v1374
    %v1376 = vrot.slane %v1375, 1
    %v1377 = vmax.f32 %v1375, %v1376
    %v1378 = vsel %vm731, %v894, -inf
    %v1379 = vrot.slane %v1378, 4
    %v1380 = vmax.f32 %v1378, %v1379
    %v1381 = vrot.slane %v1380, 2
    %v1382 = vmax.f32 %v1380, %v1381
    %v1383 = vrot.slane %v1382, 1
    %v1384 = vmax.f32 %v1382, %v1383
    %v1385 = vsel %vm731, %v895, -inf
    %v1386 = vrot.slane %v1385, 4
    %v1387 = vmax.f32 %v1385, %v1386
    %v1388 = vrot.slane %v1387, 2
    %v1389 = vmax.f32 %v1387, %v1388
    %v1390 = vrot.slane %v1389, 1
    %v1391 = vmax.f32 %v1389, %v1390
    %v1392 = vsel %vm731, %v897, -inf
    %v1393 = vrot.slane %v1392, 4
    %v1394 = vmax.f32 %v1392, %v1393
    %v1395 = vrot.slane %v1394, 2
    %v1396 = vmax.f32 %v1394, %v1395
    %v1397 = vrot.slane %v1396, 1
    %v1398 = vmax.f32 %v1396, %v1397
    %v1399 = vsel %vm731, %v898, -inf
    %v1400 = vrot.slane %v1399, 4
    %v1401 = vmax.f32 %v1399, %v1400
    %v1402 = vrot.slane %v1401, 2
    %v1403 = vmax.f32 %v1401, %v1402
    %v1404 = vrot.slane %v1403, 1
    %v1405 = vmax.f32 %v1403, %v1404
    %v1406 = vsel %vm731, %v900, -inf
    %v1407 = vrot.slane %v1406, 4
    %v1408 = vmax.f32 %v1406, %v1407
    %v1409 = vrot.slane %v1408, 2
    %v1410 = vmax.f32 %v1408, %v1409
    %v1411 = vrot.slane %v1410, 1
    %v1412 = vmax.f32 %v1410, %v1411
    %v1413 = vsel %vm731, %v901, -inf
    %v1414 = vrot.slane %v1413, 4
    %v1415 = vmax.f32 %v1413, %v1414
    %v1416 = vrot.slane %v1415, 2
    %v1417 = vmax.f32 %v1415, %v1416
    %v1418 = vrot.slane %v1417, 1
    %v1419 = vmax.f32 %v1417, %v1418
    %v1420 = vsel %vm731, %v903, -inf
    %v1421 = vrot.slane %v1420, 4
    %v1422 = vmax.f32 %v1420, %v1421
    %v1423 = vrot.slane %v1422, 2
    %v1424 = vmax.f32 %v1422, %v1423
    %v1425 = vrot.slane %v1424, 1
    %v1426 = vmax.f32 %v1424, %v1425
    %v1427 = vsel %vm731, %v904, -inf
    %v1428 = vrot.slane %v1427, 4
    %v1429 = vmax.f32 %v1427, %v1428
    %v1430 = vrot.slane %v1429, 2
    %v1431 = vmax.f32 %v1429, %v1430
    %v1432 = vrot.slane %v1431, 1
    %v1433 = vmax.f32 %v1431, %v1432
    %v1434 = vsel %vm731, %v906, -inf
    %v1435 = vrot.slane %v1434, 4
    %v1436 = vmax.f32 %v1434, %v1435
    %v1437 = vrot.slane %v1436, 2
    %v1438 = vmax.f32 %v1436, %v1437
    %v1439 = vrot.slane %v1438, 1
    %v1440 = vmax.f32 %v1438, %v1439
    %v1441 = vsel %vm731, %v907, -inf
    %v1442 = vrot.slane %v1441, 4
    %v1443 = vmax.f32 %v1441, %v1442
    %v1444 = vrot.slane %v1443, 2
    %v1445 = vmax.f32 %v1443, %v1444
    %v1446 = vrot.slane %v1445, 1
    %v1447 = vmax.f32 %v1445, %v1446
    %v1448 = vsel %vm731, %v909, -inf
    %v1449 = vrot.slane %v1448, 4
    %v1450 = vmax.f32 %v1448, %v1449
    %v1451 = vrot.slane %v1450, 2
    %v1452 = vmax.f32 %v1450, %v1451
    %v1453 = vrot.slane %v1452, 1
    %v1454 = vmax.f32 %v1452, %v1453
    %v1455 = vsel %vm731, %v910, -inf
    %v1456 = vrot.slane %v1455, 4
    %v1457 = vmax.f32 %v1455, %v1456
    %v1458 = vrot.slane %v1457, 2
    %v1459 = vmax.f32 %v1457, %v1458
    %v1460 = vrot.slane %v1459, 1
    %v1461 = vmax.f32 %v1459, %v1460
    %v1462 = vsel %vm731, %v912, -inf
    %v1463 = vrot.slane %v1462, 4
    %v1464 = vmax.f32 %v1462, %v1463
    %v1465 = vrot.slane %v1464, 2
    %v1466 = vmax.f32 %v1464, %v1465
    %v1467 = vrot.slane %v1466, 1
    %v1468 = vmax.f32 %v1466, %v1467
    %v1469 = vsel %vm731, %v913, -inf
    %v1470 = vrot.slane %v1469, 4
    %v1471 = vmax.f32 %v1469, %v1470
    %v1472 = vrot.slane %v1471, 2
    %v1473 = vmax.f32 %v1471, %v1472
    %v1474 = vrot.slane %v1473, 1
    %v1475 = vmax.f32 %v1473, %v1474
    %v1476 = vsel %vm731, %v915, -inf
    %v1477 = vrot.slane %v1476, 4
    %v1478 = vmax.f32 %v1476, %v1477
    %v1479 = vrot.slane %v1478, 2
    %v1480 = vmax.f32 %v1478, %v1479
    %v1481 = vrot.slane %v1480, 1
    %v1482 = vmax.f32 %v1480, %v1481
    %v1483 = vsel %vm731, %v916, -inf
    %v1484 = vrot.slane %v1483, 4
    %v1485 = vmax.f32 %v1483, %v1484
    %v1486 = vrot.slane %v1485, 2
    %v1487 = vmax.f32 %v1485, %v1486
    %v1488 = vrot.slane %v1487, 1
    %v1489 = vmax.f32 %v1487, %v1488
    %v1490 = vsel %vm731, %v918, -inf
    %v1491 = vrot.slane %v1490, 4
    %v1492 = vmax.f32 %v1490, %v1491
    %v1493 = vrot.slane %v1492, 2
    %v1494 = vmax.f32 %v1492, %v1493
    %v1495 = vrot.slane %v1494, 1
    %v1496 = vmax.f32 %v1494, %v1495
    %v1497 = vsel %vm731, %v919, -inf
    %v1498 = vrot.slane %v1497, 4
    %v1499 = vmax.f32 %v1497, %v1498
    %v1500 = vrot.slane %v1499, 2
    %v1501 = vmax.f32 %v1499, %v1500
    %v1502 = vrot.slane %v1501, 1
    %v1503 = vmax.f32 %v1501, %v1502
    %v1504 = vsel %vm731, %v921, -inf
    %v1505 = vrot.slane %v1504, 4
    %v1506 = vmax.f32 %v1504, %v1505
    %v1507 = vrot.slane %v1506, 2
    %v1508 = vmax.f32 %v1506, %v1507
    %v1509 = vrot.slane %v1508, 1
    %v1510 = vmax.f32 %v1508, %v1509
    %v1511 = vsel %vm731, %v922, -inf
    %v1512 = vrot.slane %v1511, 4
    %v1513 = vmax.f32 %v1511, %v1512
    %v1514 = vrot.slane %v1513, 2
    %v1515 = vmax.f32 %v1513, %v1514
    %v1516 = vrot.slane %v1515, 1
    %v1517 = vmax.f32 %v1515, %v1516
    %v1518 = vsel %vm731, %v924, -inf
    %v1519 = vrot.slane %v1518, 4
    %v1520 = vmax.f32 %v1518, %v1519
    %v1521 = vrot.slane %v1520, 2
    %v1522 = vmax.f32 %v1520, %v1521
    %v1523 = vrot.slane %v1522, 1
    %v1524 = vmax.f32 %v1522, %v1523
    %v1525 = vsel %vm731, %v925, -inf
    %v1526 = vrot.slane %v1525, 4
    %v1527 = vmax.f32 %v1525, %v1526
    %v1528 = vrot.slane %v1527, 2
    %v1529 = vmax.f32 %v1527, %v1528
    %v1530 = vrot.slane %v1529, 1
    %v1531 = vmax.f32 %v1529, %v1530
    %v1532 = vsel %vm731, %v927, -inf
    %v1533 = vrot.slane %v1532, 4
    %v1534 = vmax.f32 %v1532, %v1533
    %v1535 = vrot.slane %v1534, 2
    %v1536 = vmax.f32 %v1534, %v1535
    %v1537 = vrot.slane %v1536, 1
    %v1538 = vmax.f32 %v1536, %v1537
    %v1539 = vsel %vm731, %v928, -inf
    %v1540 = vrot.slane %v1539, 4
    %v1541 = vmax.f32 %v1539, %v1540
    %v1542 = vrot.slane %v1541, 2
    %v1543 = vmax.f32 %v1541, %v1542
    %v1544 = vrot.slane %v1543, 1
    %v1545 = vmax.f32 %v1543, %v1544
    %v1546 = vsel %vm731, %v930, -inf
    %v1547 = vrot.slane %v1546, 4
    %v1548 = vmax.f32 %v1546, %v1547
    %v1549 = vrot.slane %v1548, 2
    %v1550 = vmax.f32 %v1548, %v1549
    %v1551 = vrot.slane %v1550, 1
    %v1552 = vmax.f32 %v1550, %v1551
    %v1553 = vsel %vm731, %v931, -inf
    %v1554 = vrot.slane %v1553, 4
    %v1555 = vmax.f32 %v1553, %v1554
    %v1556 = vrot.slane %v1555, 2
    %v1557 = vmax.f32 %v1555, %v1556
    %v1558 = vrot.slane %v1557, 1
    %v1559 = vmax.f32 %v1557, %v1558
    %v1560 = vsel %vm731, %v933, -inf
    %v1561 = vrot.slane %v1560, 4
    %v1562 = vmax.f32 %v1560, %v1561
    %v1563 = vrot.slane %v1562, 2
    %v1564 = vmax.f32 %v1562, %v1563
    %v1565 = vrot.slane %v1564, 1
    %v1566 = vmax.f32 %v1564, %v1565
    %v1567 = vsel %vm731, %v934, -inf
    %v1568 = vrot.slane %v1567, 4
    %v1569 = vmax.f32 %v1567, %v1568
    %v1570 = vrot.slane %v1569, 2
    %v1571 = vmax.f32 %v1569, %v1570
    %v1572 = vrot.slane %v1571, 1
    %v1573 = vmax.f32 %v1571, %v1572
    %v1574 = vsel %vm731, %v936, -inf
    %v1575 = vrot.slane %v1574, 4
    %v1576 = vmax.f32 %v1574, %v1575
    %v1577 = vrot.slane %v1576, 2
    %v1578 = vmax.f32 %v1576, %v1577
    %v1579 = vrot.slane %v1578, 1
    %v1580 = vmax.f32 %v1578, %v1579
    %v1581 = vsel %vm731, %v937, -inf
    %v1582 = vrot.slane %v1581, 4
    %v1583 = vmax.f32 %v1581, %v1582
    %v1584 = vrot.slane %v1583, 2
    %v1585 = vmax.f32 %v1583, %v1584
    %v1586 = vrot.slane %v1585, 1
    %v1587 = vmax.f32 %v1585, %v1586
    %v1588 = vsel %vm731, %v939, -inf
    %v1589 = vrot.slane %v1588, 4
    %v1590 = vmax.f32 %v1588, %v1589
    %v1591 = vrot.slane %v1590, 2
    %v1592 = vmax.f32 %v1590, %v1591
    %v1593 = vrot.slane %v1592, 1
    %v1594 = vmax.f32 %v1592, %v1593
    %v1595 = vsel %vm731, %v940, -inf
    %v1596 = vrot.slane %v1595, 4
    %v1597 = vmax.f32 %v1595, %v1596
    %v1598 = vrot.slane %v1597, 2
    %v1599 = vmax.f32 %v1597, %v1598
    %v1600 = vrot.slane %v1599, 1
    %v1601 = vmax.f32 %v1599, %v1600
    %v1602 = vsel %vm731, %v942, -inf
    %v1603 = vrot.slane %v1602, 4
    %v1604 = vmax.f32 %v1602, %v1603
    %v1605 = vrot.slane %v1604, 2
    %v1606 = vmax.f32 %v1604, %v1605
    %v1607 = vrot.slane %v1606, 1
    %v1608 = vmax.f32 %v1606, %v1607
    %v1609 = vsel %vm731, %v943, -inf
    %v1610 = vrot.slane %v1609, 4
    %v1611 = vmax.f32 %v1609, %v1610
    %v1612 = vrot.slane %v1611, 2
    %v1613 = vmax.f32 %v1611, %v1612
    %v1614 = vrot.slane %v1613, 1
    %v1615 = vmax.f32 %v1613, %v1614
    %v1616 = vsel %vm731, %v945, -inf
    %v1617 = vrot.slane %v1616, 4
    %v1618 = vmax.f32 %v1616, %v1617
    %v1619 = vrot.slane %v1618, 2
    %v1620 = vmax.f32 %v1618, %v1619
    %v1621 = vrot.slane %v1620, 1
    %v1622 = vmax.f32 %v1620, %v1621
    %v1623 = vsel %vm731, %v946, -inf
    %v1624 = vrot.slane %v1623, 4
    %v1625 = vmax.f32 %v1623, %v1624
    %v1626 = vrot.slane %v1625, 2
    %v1627 = vmax.f32 %v1625, %v1626
    %v1628 = vrot.slane %v1627, 1
    %v1629 = vmax.f32 %v1627, %v1628
    %v1630 = vsel %vm731, %v948, -inf
    %v1631 = vrot.slane %v1630, 4
    %v1632 = vmax.f32 %v1630, %v1631
    %v1633 = vrot.slane %v1632, 2
    %v1634 = vmax.f32 %v1632, %v1633
    %v1635 = vrot.slane %v1634, 1
    %v1636 = vmax.f32 %v1634, %v1635
    %v1637 = vsel %vm731, %v949, -inf
    %v1638 = vrot.slane %v1637, 4
    %v1639 = vmax.f32 %v1637, %v1638
    %v1640 = vrot.slane %v1639, 2
    %v1641 = vmax.f32 %v1639, %v1640
    %v1642 = vrot.slane %v1641, 1
    %v1643 = vmax.f32 %v1641, %v1642
    %v1644 = vsel %vm731, %v951, -inf
    %v1645 = vrot.slane %v1644, 4
    %v1646 = vmax.f32 %v1644, %v1645
    %v1647 = vrot.slane %v1646, 2
    %v1648 = vmax.f32 %v1646, %v1647
    %v1649 = vrot.slane %v1648, 1
    %v1650 = vmax.f32 %v1648, %v1649
    %v1651 = vsel %vm731, %v952, -inf
    %v1652 = vrot.slane %v1651, 4
    %v1653 = vmax.f32 %v1651, %v1652
    %v1654 = vrot.slane %v1653, 2
    %v1655 = vmax.f32 %v1653, %v1654
    %v1656 = vrot.slane %v1655, 1
    %v1657 = vmax.f32 %v1655, %v1656
    %v1658 = vsel %vm731, %v954, -inf
    %v1659 = vrot.slane %v1658, 4
    %v1660 = vmax.f32 %v1658, %v1659
    %v1661 = vrot.slane %v1660, 2
    %v1662 = vmax.f32 %v1660, %v1661
    %v1663 = vrot.slane %v1662, 1
    %v1664 = vmax.f32 %v1662, %v1663
    %v1665 = vsel %vm731, %v955, -inf
    %v1666 = vrot.slane %v1665, 4
    %v1667 = vmax.f32 %v1665, %v1666
    %v1668 = vrot.slane %v1667, 2
    %v1669 = vmax.f32 %v1667, %v1668
    %v1670 = vrot.slane %v1669, 1
    %v1671 = vmax.f32 %v1669, %v1670
    %v1672 = vsel %vm731, %v957, -inf
    %v1673 = vrot.slane %v1672, 4
    %v1674 = vmax.f32 %v1672, %v1673
    %v1675 = vrot.slane %v1674, 2
    %v1676 = vmax.f32 %v1674, %v1675
    %v1677 = vrot.slane %v1676, 1
    %v1678 = vmax.f32 %v1676, %v1677
    %v1679 = vsel %vm731, %v958, -inf
    %v1680 = vrot.slane %v1679, 4
    %v1681 = vmax.f32 %v1679, %v1680
    %v1682 = vrot.slane %v1681, 2
    %v1683 = vmax.f32 %v1681, %v1682
    %v1684 = vrot.slane %v1683, 1
    %v1685 = vmax.f32 %v1683, %v1684
    %v1686 = vsel %vm731, %v960, -inf
    %v1687 = vrot.slane %v1686, 4
    %v1688 = vmax.f32 %v1686, %v1687
    %v1689 = vrot.slane %v1688, 2
    %v1690 = vmax.f32 %v1688, %v1689
    %v1691 = vrot.slane %v1690, 1
    %v1692 = vmax.f32 %v1690, %v1691
    %v1693 = vsel %vm731, %v961, -inf
    %v1694 = vrot.slane %v1693, 4
    %v1695 = vmax.f32 %v1693, %v1694
    %v1696 = vrot.slane %v1695, 2
    %v1697 = vmax.f32 %v1695, %v1696
    %v1698 = vrot.slane %v1697, 1
    %v1699 = vmax.f32 %v1697, %v1698
    %v1700 = vsel %vm731, %v963, -inf
    %v1701 = vrot.slane %v1700, 4
    %v1702 = vmax.f32 %v1700, %v1701
    %v1703 = vrot.slane %v1702, 2
    %v1704 = vmax.f32 %v1702, %v1703
    %v1705 = vrot.slane %v1704, 1
    %v1706 = vmax.f32 %v1704, %v1705
    %v1707 = vsel %vm731, %v964, -inf
    %v1708 = vrot.slane %v1707, 4
    %v1709 = vmax.f32 %v1707, %v1708
    %v1710 = vrot.slane %v1709, 2
    %v1711 = vmax.f32 %v1709, %v1710
    %v1712 = vrot.slane %v1711, 1
    %v1713 = vmax.f32 %v1711, %v1712
    %v1714 = vsel %vm731, %v966, -inf
    %v1715 = vrot.slane %v1714, 4
    %v1716 = vmax.f32 %v1714, %v1715
    %v1717 = vrot.slane %v1716, 2
    %v1718 = vmax.f32 %v1716, %v1717
    %v1719 = vrot.slane %v1718, 1
    %v1720 = vmax.f32 %v1718, %v1719
    %v1721 = vsel %vm731, %v967, -inf
    %v1722 = vrot.slane %v1721, 4
    %v1723 = vmax.f32 %v1721, %v1722
    %v1724 = vrot.slane %v1723, 2
    %v1725 = vmax.f32 %v1723, %v1724
    %v1726 = vrot.slane %v1725, 1
    %v1727 = vmax.f32 %v1725, %v1726
    %v1728 = vsel %vm731, %v969, -inf
    %v1729 = vrot.slane %v1728, 4
    %v1730 = vmax.f32 %v1728, %v1729
    %v1731 = vrot.slane %v1730, 2
    %v1732 = vmax.f32 %v1730, %v1731
    %v1733 = vrot.slane %v1732, 1
    %v1734 = vmax.f32 %v1732, %v1733
    %v1735 = vsel %vm731, %v970, -inf
    %v1736 = vrot.slane %v1735, 4
    %v1737 = vmax.f32 %v1735, %v1736
    %v1738 = vrot.slane %v1737, 2
    %v1739 = vmax.f32 %v1737, %v1738
    %v1740 = vrot.slane %v1739, 1
    %v1741 = vmax.f32 %v1739, %v1740
    %v1742 = vsel %vm731, %v972, -inf
    %v1743 = vrot.slane %v1742, 4
    %v1744 = vmax.f32 %v1742, %v1743
    %v1745 = vrot.slane %v1744, 2
    %v1746 = vmax.f32 %v1744, %v1745
    %v1747 = vrot.slane %v1746, 1
    %v1748 = vmax.f32 %v1746, %v1747
    %v1749 = vsel %vm731, %v973, -inf
    %v1750 = vrot.slane %v1749, 4
    %v1751 = vmax.f32 %v1749, %v1750
    %v1752 = vrot.slane %v1751, 2
    %v1753 = vmax.f32 %v1751, %v1752
    %v1754 = vrot.slane %v1753, 1
    %v1755 = vmax.f32 %v1753, %v1754
    %v1756 = vsel %vm731, %v975, -inf
    %v1757 = vrot.slane %v1756, 4
    %v1758 = vmax.f32 %v1756, %v1757
    %v1759 = vrot.slane %v1758, 2
    %v1760 = vmax.f32 %v1758, %v1759
    %v1761 = vrot.slane %v1760, 1
    %v1762 = vmax.f32 %v1760, %v1761
    %v1763 = vsel %vm731, %v976, -inf
    %v1764 = vrot.slane %v1763, 4
    %v1765 = vmax.f32 %v1763, %v1764
    %v1766 = vrot.slane %v1765, 2
    %v1767 = vmax.f32 %v1765, %v1766
    %v1768 = vrot.slane %v1767, 1
    %v1769 = vmax.f32 %v1767, %v1768
    %v1770 = vsel %vm731, %v978, -inf
    %v1771 = vrot.slane %v1770, 4
    %v1772 = vmax.f32 %v1770, %v1771
    %v1773 = vrot.slane %v1772, 2
    %v1774 = vmax.f32 %v1772, %v1773
    %v1775 = vrot.slane %v1774, 1
    %v1776 = vmax.f32 %v1774, %v1775
    %v1777 = vsel %vm731, %v979, -inf
    %v1778 = vrot.slane %v1777, 4
    %v1779 = vmax.f32 %v1777, %v1778
    %v1780 = vrot.slane %v1779, 2
    %v1781 = vmax.f32 %v1779, %v1780
    %v1782 = vrot.slane %v1781, 1
    %v1783 = vmax.f32 %v1781, %v1782
    %v1784 = vsel %vm731, %v981, -inf
    %v1785 = vrot.slane %v1784, 4
    %v1786 = vmax.f32 %v1784, %v1785
    %v1787 = vrot.slane %v1786, 2
    %v1788 = vmax.f32 %v1786, %v1787
    %v1789 = vrot.slane %v1788, 1
    %v1790 = vmax.f32 %v1788, %v1789
    %v1791 = vsel %vm731, %v982, -inf
    %v1792 = vrot.slane %v1791, 4
    %v1793 = vmax.f32 %v1791, %v1792
    %v1794 = vrot.slane %v1793, 2
    %v1795 = vmax.f32 %v1793, %v1794
    %v1796 = vrot.slane %v1795, 1
    %v1797 = vmax.f32 %v1795, %v1796
    %v1798 = vsel %vm731, %v984, -inf
    %v1799 = vrot.slane %v1798, 4
    %v1800 = vmax.f32 %v1798, %v1799
    %v1801 = vrot.slane %v1800, 2
    %v1802 = vmax.f32 %v1800, %v1801
    %v1803 = vrot.slane %v1802, 1
    %v1804 = vmax.f32 %v1802, %v1803
    %v1805 = vsel %vm731, %v985, -inf
    %v1806 = vrot.slane %v1805, 4
    %v1807 = vmax.f32 %v1805, %v1806
    %v1808 = vrot.slane %v1807, 2
    %v1809 = vmax.f32 %v1807, %v1808
    %v1810 = vrot.slane %v1809, 1
    %v1811 = vmax.f32 %v1809, %v1810
    %v1812 = vsel %vm731, %v987, -inf
    %v1813 = vrot.slane %v1812, 4
    %v1814 = vmax.f32 %v1812, %v1813
    %v1815 = vrot.slane %v1814, 2
    %v1816 = vmax.f32 %v1814, %v1815
    %v1817 = vrot.slane %v1816, 1
    %v1818 = vmax.f32 %v1816, %v1817
    %v1819 = vsel %vm731, %v988, -inf
    %v1820 = vrot.slane %v1819, 4
    %v1821 = vmax.f32 %v1819, %v1820
    %v1822 = vrot.slane %v1821, 2
    %v1823 = vmax.f32 %v1821, %v1822
    %v1824 = vrot.slane %v1823, 1
    %v1825 = vmax.f32 %v1823, %v1824
    %v1826 = vsel %vm731, %v990, -inf
    %v1827 = vrot.slane %v1826, 4
    %v1828 = vmax.f32 %v1826, %v1827
    %v1829 = vrot.slane %v1828, 2
    %v1830 = vmax.f32 %v1828, %v1829
    %v1831 = vrot.slane %v1830, 1
    %v1832 = vmax.f32 %v1830, %v1831
    %v1833 = vsel %vm731, %v991, -inf
    %v1834 = vrot.slane %v1833, 4
    %v1835 = vmax.f32 %v1833, %v1834
    %v1836 = vrot.slane %v1835, 2
    %v1837 = vmax.f32 %v1835, %v1836
    %v1838 = vrot.slane %v1837, 1
    %v1839 = vmax.f32 %v1837, %v1838
    %v1840 = vsel %vm731, %v993, -inf
    %v1841 = vrot.slane %v1840, 4
    %v1842 = vmax.f32 %v1840, %v1841
    %v1843 = vrot.slane %v1842, 2
    %v1844 = vmax.f32 %v1842, %v1843
    %v1845 = vrot.slane %v1844, 1
    %v1846 = vmax.f32 %v1844, %v1845
    %v1847 = vsel %vm731, %v994, -inf
    %v1848 = vrot.slane %v1847, 4
    %v1849 = vmax.f32 %v1847, %v1848
    %v1850 = vrot.slane %v1849, 2
    %v1851 = vmax.f32 %v1849, %v1850
    %v1852 = vrot.slane %v1851, 1
    %v1853 = vmax.f32 %v1851, %v1852
    %v1854 = vsel %vm731, %v996, -inf
    %v1855 = vrot.slane %v1854, 4
    %v1856 = vmax.f32 %v1854, %v1855
    %v1857 = vrot.slane %v1856, 2
    %v1858 = vmax.f32 %v1856, %v1857
    %v1859 = vrot.slane %v1858, 1
    %v1860 = vmax.f32 %v1858, %v1859
    %v1861 = vsel %vm731, %v997, -inf
    %v1862 = vrot.slane %v1861, 4
    %v1863 = vmax.f32 %v1861, %v1862
    %v1864 = vrot.slane %v1863, 2
    %v1865 = vmax.f32 %v1863, %v1864
    %v1866 = vrot.slane %v1865, 1
    %v1867 = vmax.f32 %v1865, %v1866
    %v1868 = vsel %vm731, %v999, -inf
    %v1869 = vrot.slane %v1868, 4
    %v1870 = vmax.f32 %v1868, %v1869
    %v1871 = vrot.slane %v1870, 2
    %v1872 = vmax.f32 %v1870, %v1871
    %v1873 = vrot.slane %v1872, 1
    %v1874 = vmax.f32 %v1872, %v1873
    %v1875 = vsel %vm731, %v1000, -inf
    %v1876 = vrot.slane %v1875, 4
    %v1877 = vmax.f32 %v1875, %v1876
    %v1878 = vrot.slane %v1877, 2
    %v1879 = vmax.f32 %v1877, %v1878
    %v1880 = vrot.slane %v1879, 1
    %v1881 = vmax.f32 %v1879, %v1880
    %v1882 = vsel %vm731, %v1002, -inf
    %v1883 = vrot.slane %v1882, 4
    %v1884 = vmax.f32 %v1882, %v1883
    %v1885 = vrot.slane %v1884, 2
    %v1886 = vmax.f32 %v1884, %v1885
    %v1887 = vrot.slane %v1886, 1
    %v1888 = vmax.f32 %v1886, %v1887
    %v1889 = vsel %vm731, %v1003, -inf
    %v1890 = vrot.slane %v1889, 4
    %v1891 = vmax.f32 %v1889, %v1890
    %v1892 = vrot.slane %v1891, 2
    %v1893 = vmax.f32 %v1891, %v1892
    %v1894 = vrot.slane %v1893, 1
    %v1895 = vmax.f32 %v1893, %v1894
    %v1896 = vsel %vm731, %v1005, -inf
    %v1897 = vrot.slane %v1896, 4
    %v1898 = vmax.f32 %v1896, %v1897
    %v1899 = vrot.slane %v1898, 2
    %v1900 = vmax.f32 %v1898, %v1899
    %v1901 = vrot.slane %v1900, 1
    %v1902 = vmax.f32 %v1900, %v1901
    %v1903 = vsel %vm731, %v1006, -inf
    %v1904 = vrot.slane %v1903, 4
    %v1905 = vmax.f32 %v1903, %v1904
    %v1906 = vrot.slane %v1905, 2
    %v1907 = vmax.f32 %v1905, %v1906
    %v1908 = vrot.slane %v1907, 1
    %v1909 = vmax.f32 %v1907, %v1908
    %v1910 = vsel %vm731, %v1008, -inf
    %v1911 = vrot.slane %v1910, 4
    %v1912 = vmax.f32 %v1910, %v1911
    %v1913 = vrot.slane %v1912, 2
    %v1914 = vmax.f32 %v1912, %v1913
    %v1915 = vrot.slane %v1914, 1
    %v1916 = vmax.f32 %v1914, %v1915
    %v1917 = vsel %vm731, %v1009, -inf
    %v1918 = vrot.slane %v1917, 4
    %v1919 = vmax.f32 %v1917, %v1918
    %v1920 = vrot.slane %v1919, 2
    %v1921 = vmax.f32 %v1919, %v1920
    %v1922 = vrot.slane %v1921, 1
    %v1923 = vmax.f32 %v1921, %v1922
    %v1924 = vsel %vm731, %v1011, -inf
    %v1925 = vrot.slane %v1924, 4
    %v1926 = vmax.f32 %v1924, %v1925
    %v1927 = vrot.slane %v1926, 2
    %v1928 = vmax.f32 %v1926, %v1927
    %v1929 = vrot.slane %v1928, 1
    %v1930 = vmax.f32 %v1928, %v1929
    %v1931 = vsel %vm731, %v1012, -inf
    %v1932 = vrot.slane %v1931, 4
    %v1933 = vmax.f32 %v1931, %v1932
    %v1934 = vrot.slane %v1933, 2
    %v1935 = vmax.f32 %v1933, %v1934
    %v1936 = vrot.slane %v1935, 1
    %v1937 = vmax.f32 %v1935, %v1936
    %v1938 = vsel %vm731, %v1014, -inf
    %v1939 = vrot.slane %v1938, 4
    %v1940 = vmax.f32 %v1938, %v1939
    %v1941 = vrot.slane %v1940, 2
    %v1942 = vmax.f32 %v1940, %v1941
    %v1943 = vrot.slane %v1942, 1
    %v1944 = vmax.f32 %v1942, %v1943
    %v1945 = vsel %vm731, %v1015, -inf
    %v1946 = vrot.slane %v1945, 4
    %v1947 = vmax.f32 %v1945, %v1946
    %v1948 = vrot.slane %v1947, 2
    %v1949 = vmax.f32 %v1947, %v1948
    %v1950 = vrot.slane %v1949, 1
    %v1951 = vmax.f32 %v1949, %v1950
    %v1952 = vsel %vm731, %v1017, -inf
    %v1953 = vrot.slane %v1952, 4
    %v1954 = vmax.f32 %v1952, %v1953
    %v1955 = vrot.slane %v1954, 2
    %v1956 = vmax.f32 %v1954, %v1955
    %v1957 = vrot.slane %v1956, 1
    %v1958 = vmax.f32 %v1956, %v1957
    %v1959 = vsel %vm731, %v1018, -inf
    %v1960 = vrot.slane %v1959, 4
    %v1961 = vmax.f32 %v1959, %v1960
    %v1962 = vrot.slane %v1961, 2
    %v1963 = vmax.f32 %v1961, %v1962
    %v1964 = vrot.slane %v1963, 1
    %v1965 = vmax.f32 %v1963, %v1964
    %v1966 = vsel %vm731, %v1020, -inf
    %v1967 = vrot.slane %v1966, 4
    %v1968 = vmax.f32 %v1966, %v1967
    %v1969 = vrot.slane %v1968, 2
    %v1970 = vmax.f32 %v1968, %v1969
    %v1971 = vrot.slane %v1970, 1
    %v1972 = vmax.f32 %v1970, %v1971
    %v1973 = vsel %vm731, %v1021, -inf
    %v1974 = vrot.slane %v1973, 4
    %v1975 = vmax.f32 %v1973, %v1974
    %v1976 = vrot.slane %v1975, 2
    %v1977 = vmax.f32 %v1975, %v1976
    %v1978 = vrot.slane %v1977, 1
    %v1979 = vmax.f32 %v1977, %v1978
    %v1980 = vsel %vm731, %v1023, -inf
    %v1981 = vrot.slane %v1980, 4
    %v1982 = vmax.f32 %v1980, %v1981
    %v1983 = vrot.slane %v1982, 2
    %v1984 = vmax.f32 %v1982, %v1983
    %v1985 = vrot.slane %v1984, 1
    %v1986 = vmax.f32 %v1984, %v1985
    %v1987 = vsel %vm731, %v1024, -inf
    %v1988 = vrot.slane %v1987, 4
    %v1989 = vmax.f32 %v1987, %v1988
    %v1990 = vrot.slane %v1989, 2
    %v1991 = vmax.f32 %v1989, %v1990
    %v1992 = vrot.slane %v1991, 1
    %v1993 = vmax.f32 %v1991, %v1992
    %v1994 = vsel %vm731, %v1026, -inf
    %v1995 = vrot.slane %v1994, 4
    %v1996 = vmax.f32 %v1994, %v1995
    %v1997 = vrot.slane %v1996, 2
    %v1998 = vmax.f32 %v1996, %v1997
    %v1999 = vrot.slane %v1998, 1
    %v2000 = vmax.f32 %v1998, %v1999
    %v2001 = vsel %vm731, %v1027, -inf
    %v2002 = vrot.slane %v2001, 4
    %v2003 = vmax.f32 %v2001, %v2002
    %v2004 = vrot.slane %v2003, 2
    %v2005 = vmax.f32 %v2003, %v2004
    %v2006 = vrot.slane %v2005, 1
    %v2007 = vmax.f32 %v2005, %v2006
    %v2008 = vsel %vm731, %v1029, -inf
    %v2009 = vrot.slane %v2008, 4
    %v2010 = vmax.f32 %v2008, %v2009
    %v2011 = vrot.slane %v2010, 2
    %v2012 = vmax.f32 %v2010, %v2011
    %v2013 = vrot.slane %v2012, 1
    %v2014 = vmax.f32 %v2012, %v2013
    %v2015 = vsel %vm731, %v1030, -inf
    %v2016 = vrot.slane %v2015, 4
    %v2017 = vmax.f32 %v2015, %v2016
    %v2018 = vrot.slane %v2017, 2
    %v2019 = vmax.f32 %v2017, %v2018
    %v2020 = vrot.slane %v2019, 1
    %v2021 = vmax.f32 %v2019, %v2020
    %v2022 = vsel %vm731, %v1032, -inf
    %v2023 = vrot.slane %v2022, 4
    %v2024 = vmax.f32 %v2022, %v2023
    %v2025 = vrot.slane %v2024, 2
    %v2026 = vmax.f32 %v2024, %v2025
    %v2027 = vrot.slane %v2026, 1
    %v2028 = vmax.f32 %v2026, %v2027
    %v2029 = vsel %vm731, %v1033, -inf
    %v2030 = vrot.slane %v2029, 4
    %v2031 = vmax.f32 %v2029, %v2030
    %v2032 = vrot.slane %v2031, 2
    %v2033 = vmax.f32 %v2031, %v2032
    %v2034 = vrot.slane %v2033, 1
    %v2035 = vmax.f32 %v2033, %v2034
    %v2036 = vsel %vm731, %v1035, -inf
    %v2037 = vrot.slane %v2036, 4
    %v2038 = vmax.f32 %v2036, %v2037
    %v2039 = vrot.slane %v2038, 2
    %v2040 = vmax.f32 %v2038, %v2039
    %v2041 = vrot.slane %v2040, 1
    %v2042 = vmax.f32 %v2040, %v2041
    %v2043 = vsel %vm731, %v1036, -inf
    %v2044 = vrot.slane %v2043, 4
    %v2045 = vmax.f32 %v2043, %v2044
    %v2046 = vrot.slane %v2045, 2
    %v2047 = vmax.f32 %v2045, %v2046
    %v2048 = vrot.slane %v2047, 1
    %v2049 = vmax.f32 %v2047, %v2048
    %v2050 = vsel %vm731, %v1038, -inf
    %v2051 = vrot.slane %v2050, 4
    %v2052 = vmax.f32 %v2050, %v2051
    %v2053 = vrot.slane %v2052, 2
    %v2054 = vmax.f32 %v2052, %v2053
    %v2055 = vrot.slane %v2054, 1
    %v2056 = vmax.f32 %v2054, %v2055
    %v2057 = vsel %vm731, %v1039, -inf
    %v2058 = vrot.slane %v2057, 4
    %v2059 = vmax.f32 %v2057, %v2058
    %v2060 = vrot.slane %v2059, 2
    %v2061 = vmax.f32 %v2059, %v2060
    %v2062 = vrot.slane %v2061, 1
    %v2063 = vmax.f32 %v2061, %v2062
    %v2064 = vmax.f32 %v1174, 0.0
    %v2065 = vmax.f32 %v1181, 0.0
    %v2066 = vmax.f32 %v1188, 0.0
    %v2067 = vmax.f32 %v1195, 0.0
    %v2068 = vmax.f32 %v1202, 0.0
    %v2069 = vmax.f32 %v1209, 0.0
    %v2070 = vmax.f32 %v1216, 0.0
    %v2071 = vmax.f32 %v1223, 0.0
    %v2072 = vmax.f32 %v1230, 0.0
    %v2073 = vmax.f32 %v1237, 0.0
    %v2074 = vmax.f32 %v1244, 0.0
    %v2075 = vmax.f32 %v1251, 0.0
    %v2076 = vmax.f32 %v1258, 0.0
    %v2077 = vmax.f32 %v1265, 0.0
    %v2078 = vmax.f32 %v1272, 0.0
    %v2079 = vmax.f32 %v1279, 0.0
    %v2080 = vmax.f32 %v1286, 0.0
    %v2081 = vmax.f32 %v1293, 0.0
    %v2082 = vmax.f32 %v1300, 0.0
    %v2083 = vmax.f32 %v1307, 0.0
    %v2084 = vmax.f32 %v1314, 0.0
    %v2085 = vmax.f32 %v1321, 0.0
    %v2086 = vmax.f32 %v1328, 0.0
    %v2087 = vmax.f32 %v1335, 0.0
    %v2088 = vmax.f32 %v1342, 0.0
    %v2089 = vmax.f32 %v1349, 0.0
    %v2090 = vmax.f32 %v1356, 0.0
    %v2091 = vmax.f32 %v1363, 0.0
    %v2092 = vmax.f32 %v1370, 0.0
    %v2093 = vmax.f32 %v1377, 0.0
    %v2094 = vmax.f32 %v1384, 0.0
    %v2095 = vmax.f32 %v1391, 0.0
    %v2096 = vmax.f32 %v1398, 0.0
    %v2097 = vmax.f32 %v1405, 0.0
    %v2098 = vmax.f32 %v1412, 0.0
    %v2099 = vmax.f32 %v1419, 0.0
    %v2100 = vmax.f32 %v1426, 0.0
    %v2101 = vmax.f32 %v1433, 0.0
    %v2102 = vmax.f32 %v1440, 0.0
    %v2103 = vmax.f32 %v1447, 0.0
    %v2104 = vmax.f32 %v1454, 0.0
    %v2105 = vmax.f32 %v1461, 0.0
    %v2106 = vmax.f32 %v1468, 0.0
    %v2107 = vmax.f32 %v1475, 0.0
    %v2108 = vmax.f32 %v1482, 0.0
    %v2109 = vmax.f32 %v1489, 0.0
    %v2110 = vmax.f32 %v1496, 0.0
    %v2111 = vmax.f32 %v1503, 0.0
    %v2112 = vmax.f32 %v1510, 0.0
    %v2113 = vmax.f32 %v1517, 0.0
    %v2114 = vmax.f32 %v1524, 0.0
    %v2115 = vmax.f32 %v1531, 0.0
    %v2116 = vmax.f32 %v1538, 0.0
    %v2117 = vmax.f32 %v1545, 0.0
    %v2118 = vmax.f32 %v1552, 0.0
    %v2119 = vmax.f32 %v1559, 0.0
    %v2120 = vmax.f32 %v1566, 0.0
    %v2121 = vmax.f32 %v1573, 0.0
    %v2122 = vmax.f32 %v1580, 0.0
    %v2123 = vmax.f32 %v1587, 0.0
    %v2124 = vmax.f32 %v1594, 0.0
    %v2125 = vmax.f32 %v1601, 0.0
    %v2126 = vmax.f32 %v1608, 0.0
    %v2127 = vmax.f32 %v1615, 0.0
    %v2128 = vmax.f32 %v1622, 0.0
    %v2129 = vmax.f32 %v1629, 0.0
    %v2130 = vmax.f32 %v1636, 0.0
    %v2131 = vmax.f32 %v1643, 0.0
    %v2132 = vmax.f32 %v1650, 0.0
    %v2133 = vmax.f32 %v1657, 0.0
    %v2134 = vmax.f32 %v1664, 0.0
    %v2135 = vmax.f32 %v1671, 0.0
    %v2136 = vmax.f32 %v1678, 0.0
    %v2137 = vmax.f32 %v1685, 0.0
    %v2138 = vmax.f32 %v1692, 0.0
    %v2139 = vmax.f32 %v1699, 0.0
    %v2140 = vmax.f32 %v1706, 0.0
    %v2141 = vmax.f32 %v1713, 0.0
    %v2142 = vmax.f32 %v1720, 0.0
    %v2143 = vmax.f32 %v1727, 0.0
    %v2144 = vmax.f32 %v1734, 0.0
    %v2145 = vmax.f32 %v1741, 0.0
    %v2146 = vmax.f32 %v1748, 0.0
    %v2147 = vmax.f32 %v1755, 0.0
    %v2148 = vmax.f32 %v1762, 0.0
    %v2149 = vmax.f32 %v1769, 0.0
    %v2150 = vmax.f32 %v1776, 0.0
    %v2151 = vmax.f32 %v1783, 0.0
    %v2152 = vmax.f32 %v1790, 0.0
    %v2153 = vmax.f32 %v1797, 0.0
    %v2154 = vmax.f32 %v1804, 0.0
    %v2155 = vmax.f32 %v1811, 0.0
    %v2156 = vmax.f32 %v1818, 0.0
    %v2157 = vmax.f32 %v1825, 0.0
    %v2158 = vmax.f32 %v1832, 0.0
    %v2159 = vmax.f32 %v1839, 0.0
    %v2160 = vmax.f32 %v1846, 0.0
    %v2161 = vmax.f32 %v1853, 0.0
    %v2162 = vmax.f32 %v1860, 0.0
    %v2163 = vmax.f32 %v1867, 0.0
    %v2164 = vmax.f32 %v1874, 0.0
    %v2165 = vmax.f32 %v1881, 0.0
    %v2166 = vmax.f32 %v1888, 0.0
    %v2167 = vmax.f32 %v1895, 0.0
    %v2168 = vmax.f32 %v1902, 0.0
    %v2169 = vmax.f32 %v1909, 0.0
    %v2170 = vmax.f32 %v1916, 0.0
    %v2171 = vmax.f32 %v1923, 0.0
    %v2172 = vmax.f32 %v1930, 0.0
    %v2173 = vmax.f32 %v1937, 0.0
    %v2174 = vmax.f32 %v1944, 0.0
    %v2175 = vmax.f32 %v1951, 0.0
    %v2176 = vmax.f32 %v1958, 0.0
    %v2177 = vmax.f32 %v1965, 0.0
    %v2178 = vmax.f32 %v1972, 0.0
    %v2179 = vmax.f32 %v1979, 0.0
    %v2180 = vmax.f32 %v1986, 0.0
    %v2181 = vmax.f32 %v1993, 0.0
    %v2182 = vmax.f32 %v2000, 0.0
    %v2183 = vmax.f32 %v2007, 0.0
    %v2184 = vmax.f32 %v2014, 0.0
    %v2185 = vmax.f32 %v2021, 0.0
    %v2186 = vmax.f32 %v2028, 0.0
    %v2187 = vmax.f32 %v2035, 0.0
    %v2188 = vmax.f32 %v2042, 0.0
    %v2189 = vmax.f32 %v2049, 0.0
    %v2190 = vmax.f32 %v2056, 0.0
    %v2191 = vmax.f32 %v2063, 0.0
    %vm2304 = vcmask 1042434
    %v2305 = vsel %vm2304, %v2066, %v2064
    %vm2306 = vcmask 1043459
    %v2307 = vsel %vm2306, %v2068, %v2305
    %vm2308 = vcmask 1044484
    %v2309 = vsel %vm2308, %v2070, %v2307
    %vm2310 = vcmask 1045509
    %v2311 = vsel %vm2310, %v2072, %v2309
    %vm2312 = vcmask 1046534
    %v2313 = vsel %vm2312, %v2074, %v2311
    %vm2314 = vcmask 1047559
    %v2315 = vsel %vm2314, %v2076, %v2313
    %v2316 = vsel %vm2304, %v2067, %v2065
    %v2317 = vsel %vm2306, %v2069, %v2316
    %v2318 = vsel %vm2308, %v2071, %v2317
    %v2319 = vsel %vm2310, %v2073, %v2318
    %v2320 = vsel %vm2312, %v2075, %v2319
    %v2321 = vsel %vm2314, %v2077, %v2320
    %v2322 = vsel %vm2304, %v2082, %v2080
    %v2323 = vsel %vm2306, %v2084, %v2322
    %v2324 = vsel %vm2308, %v2086, %v2323
    %v2325 = vsel %vm2310, %v2088, %v2324
    %v2326 = vsel %vm2312, %v2090, %v2325
    %v2327 = vsel %vm2314, %v2092, %v2326
    %v2328 = vsel %vm2304, %v2083, %v2081
    %v2329 = vsel %vm2306, %v2085, %v2328
    %v2330 = vsel %vm2308, %v2087, %v2329
    %v2331 = vsel %vm2310, %v2089, %v2330
    %v2332 = vsel %vm2312, %v2091, %v2331
    %v2333 = vsel %vm2314, %v2093, %v2332
    %v2334 = vsel %vm2304, %v2098, %v2096
    %v2335 = vsel %vm2306, %v2100, %v2334
    %v2336 = vsel %vm2308, %v2102, %v2335
    %v2337 = vsel %vm2310, %v2104, %v2336
    %v2338 = vsel %vm2312, %v2106, %v2337
    %v2339 = vsel %vm2314, %v2108, %v2338
    %v2340 = vsel %vm2304, %v2099, %v2097
    %v2341 = vsel %vm2306, %v2101, %v2340
    %v2342 = vsel %vm2308, %v2103, %v2341
    %v2343 = vsel %vm2310, %v2105, %v2342
    %v2344 = vsel %vm2312, %v2107, %v2343
    %v2345 = vsel %vm2314, %v2109, %v2344
    %v2346 = vsel %vm2304, %v2114, %v2112
    %v2347 = vsel %vm2306, %v2116, %v2346
    %v2348 = vsel %vm2308, %v2118, %v2347
    %v2349 = vsel %vm2310, %v2120, %v2348
    %v2350 = vsel %vm2312, %v2122, %v2349
    %v2351 = vsel %vm2314, %v2124, %v2350
    %v2352 = vsel %vm2304, %v2115, %v2113
    %v2353 = vsel %vm2306, %v2117, %v2352
    %v2354 = vsel %vm2308, %v2119, %v2353
    %v2355 = vsel %vm2310, %v2121, %v2354
    %v2356 = vsel %vm2312, %v2123, %v2355
    %v2357 = vsel %vm2314, %v2125, %v2356
    %v2358 = vsel %vm2304, %v2130, %v2128
    %v2359 = vsel %vm2306, %v2132, %v2358
    %v2360 = vsel %vm2308, %v2134, %v2359
    %v2361 = vsel %vm2310, %v2136, %v2360
    %v2362 = vsel %vm2312, %v2138, %v2361
    %v2363 = vsel %vm2314, %v2140, %v2362
    %v2364 = vsel %vm2304, %v2131, %v2129
    %v2365 = vsel %vm2306, %v2133, %v2364
    %v2366 = vsel %vm2308, %v2135, %v2365
    %v2367 = vsel %vm2310, %v2137, %v2366
    %v2368 = vsel %vm2312, %v2139, %v2367
    %v2369 = vsel %vm2314, %v2141, %v2368
    %v2370 = vsel %vm2304, %v2146, %v2144
    %v2371 = vsel %vm2306, %v2148, %v2370
    %v2372 = vsel %vm2308, %v2150, %v2371
    %v2373 = vsel %vm2310, %v2152, %v2372
    %v2374 = vsel %vm2312, %v2154, %v2373
    %v2375 = vsel %vm2314, %v2156, %v2374
    %v2376 = vsel %vm2304, %v2147, %v2145
    %v2377 = vsel %vm2306, %v2149, %v2376
    %v2378 = vsel %vm2308, %v2151, %v2377
    %v2379 = vsel %vm2310, %v2153, %v2378
    %v2380 = vsel %vm2312, %v2155, %v2379
    %v2381 = vsel %vm2314, %v2157, %v2380
    %v2382 = vsel %vm2304, %v2162, %v2160
    %v2383 = vsel %vm2306, %v2164, %v2382
    %v2384 = vsel %vm2308, %v2166, %v2383
    %v2385 = vsel %vm2310, %v2168, %v2384
    %v2386 = vsel %vm2312, %v2170, %v2385
    %v2387 = vsel %vm2314, %v2172, %v2386
    %v2388 = vsel %vm2304, %v2163, %v2161
    %v2389 = vsel %vm2306, %v2165, %v2388
    %v2390 = vsel %vm2308, %v2167, %v2389
    %v2391 = vsel %vm2310, %v2169, %v2390
    %v2392 = vsel %vm2312, %v2171, %v2391
    %v2393 = vsel %vm2314, %v2173, %v2392
    %v2394 = vsel %vm2304, %v2178, %v2176
    %v2395 = vsel %vm2306, %v2180, %v2394
    %v2396 = vsel %vm2308, %v2182, %v2395
    %v2397 = vsel %vm2310, %v2184, %v2396
    %v2398 = vsel %vm2312, %v2186, %v2397
    %v2399 = vsel %vm2314, %v2188, %v2398
    %v2400 = vsel %vm2304, %v2179, %v2177
    %v2401 = vsel %vm2306, %v2181, %v2400
    %v2402 = vsel %vm2308, %v2183, %v2401
    %v2403 = vsel %vm2310, %v2185, %v2402
    %v2404 = vsel %vm2312, %v2187, %v2403
    %v2405 = vsel %vm2314, %v2189, %v2404
    %v2422 = vsel %vm80, 0.0, %v2315
    %v2423 = vsel %vm80, 0.0, %v2321
    %v2424 = vsel %vm80, 0.0, %v2327
    %v2425 = vsel %vm80, 0.0, %v2333
    %v2426 = vsel %vm80, 0.0, %v2339
    %v2427 = vsel %vm80, 0.0, %v2345
    %v2428 = vsel %vm80, 0.0, %v2351
    %v2429 = vsel %vm80, 0.0, %v2357
    %v2430 = vsel %vm80, 0.0, %v2363
    %v2431 = vsel %vm80, 0.0, %v2369
    %v2432 = vsel %vm80, 0.0, %v2375
    %v2433 = vsel %vm80, 0.0, %v2381
    %v2434 = vsel %vm80, 0.0, %v2387
    %v2435 = vsel %vm80, 0.0, %v2393
    %v2436 = vsel %vm80, 0.0, %v2399
    %v2437 = vsel %vm80, 0.0, %v2405
    %vm2454 = vcmask 1041409
    %v2455 = vsel %vm2454, %v2068, %v2066
    %v2456 = vsel %vm2304, %v2070, %v2455
    %v2457 = vsel %vm2306, %v2072, %v2456
    %v2458 = vsel %vm2308, %v2074, %v2457
    %v2459 = vsel %vm2310, %v2076, %v2458
    %v2460 = vsel %vm2312, %v2078, %v2459
    %v2461 = vsel %vm2454, %v2069, %v2067
    %v2462 = vsel %vm2304, %v2071, %v2461
    %v2463 = vsel %vm2306, %v2073, %v2462
    %v2464 = vsel %vm2308, %v2075, %v2463
    %v2465 = vsel %vm2310, %v2077, %v2464
    %v2466 = vsel %vm2312, %v2079, %v2465
    %v2467 = vsel %vm2454, %v2084, %v2082
    %v2468 = vsel %vm2304, %v2086, %v2467
    %v2469 = vsel %vm2306, %v2088, %v2468
    %v2470 = vsel %vm2308, %v2090, %v2469
    %v2471 = vsel %vm2310, %v2092, %v2470
    %v2472 = vsel %vm2312, %v2094, %v2471
    %v2473 = vsel %vm2454, %v2085, %v2083
    %v2474 = vsel %vm2304, %v2087, %v2473
    %v2475 = vsel %vm2306, %v2089, %v2474
    %v2476 = vsel %vm2308, %v2091, %v2475
    %v2477 = vsel %vm2310, %v2093, %v2476
    %v2478 = vsel %vm2312, %v2095, %v2477
    %v2479 = vsel %vm2454, %v2100, %v2098
    %v2480 = vsel %vm2304, %v2102, %v2479
    %v2481 = vsel %vm2306, %v2104, %v2480
    %v2482 = vsel %vm2308, %v2106, %v2481
    %v2483 = vsel %vm2310, %v2108, %v2482
    %v2484 = vsel %vm2312, %v2110, %v2483
    %v2485 = vsel %vm2454, %v2101, %v2099
    %v2486 = vsel %vm2304, %v2103, %v2485
    %v2487 = vsel %vm2306, %v2105, %v2486
    %v2488 = vsel %vm2308, %v2107, %v2487
    %v2489 = vsel %vm2310, %v2109, %v2488
    %v2490 = vsel %vm2312, %v2111, %v2489
    %v2491 = vsel %vm2454, %v2116, %v2114
    %v2492 = vsel %vm2304, %v2118, %v2491
    %v2493 = vsel %vm2306, %v2120, %v2492
    %v2494 = vsel %vm2308, %v2122, %v2493
    %v2495 = vsel %vm2310, %v2124, %v2494
    %v2496 = vsel %vm2312, %v2126, %v2495
    %v2497 = vsel %vm2454, %v2117, %v2115
    %v2498 = vsel %vm2304, %v2119, %v2497
    %v2499 = vsel %vm2306, %v2121, %v2498
    %v2500 = vsel %vm2308, %v2123, %v2499
    %v2501 = vsel %vm2310, %v2125, %v2500
    %v2502 = vsel %vm2312, %v2127, %v2501
    %v2503 = vsel %vm2454, %v2132, %v2130
    %v2504 = vsel %vm2304, %v2134, %v2503
    %v2505 = vsel %vm2306, %v2136, %v2504
    %v2506 = vsel %vm2308, %v2138, %v2505
    %v2507 = vsel %vm2310, %v2140, %v2506
    %v2508 = vsel %vm2312, %v2142, %v2507
    %v2509 = vsel %vm2454, %v2133, %v2131
    %v2510 = vsel %vm2304, %v2135, %v2509
    %v2511 = vsel %vm2306, %v2137, %v2510
    %v2512 = vsel %vm2308, %v2139, %v2511
    %v2513 = vsel %vm2310, %v2141, %v2512
    %v2514 = vsel %vm2312, %v2143, %v2513
    %v2515 = vsel %vm2454, %v2148, %v2146
    %v2516 = vsel %vm2304, %v2150, %v2515
    %v2517 = vsel %vm2306, %v2152, %v2516
    %v2518 = vsel %vm2308, %v2154, %v2517
    %v2519 = vsel %vm2310, %v2156, %v2518
    %v2520 = vsel %vm2312, %v2158, %v2519
    %v2521 = vsel %vm2454, %v2149, %v2147
    %v2522 = vsel %vm2304, %v2151, %v2521
    %v2523 = vsel %vm2306, %v2153, %v2522
    %v2524 = vsel %vm2308, %v2155, %v2523
    %v2525 = vsel %vm2310, %v2157, %v2524
    %v2526 = vsel %vm2312, %v2159, %v2525
    %v2527 = vsel %vm2454, %v2164, %v2162
    %v2528 = vsel %vm2304, %v2166, %v2527
    %v2529 = vsel %vm2306, %v2168, %v2528
    %v2530 = vsel %vm2308, %v2170, %v2529
    %v2531 = vsel %vm2310, %v2172, %v2530
    %v2532 = vsel %vm2312, %v2174, %v2531
    %v2533 = vsel %vm2454, %v2165, %v2163
    %v2534 = vsel %vm2304, %v2167, %v2533
    %v2535 = vsel %vm2306, %v2169, %v2534
    %v2536 = vsel %vm2308, %v2171, %v2535
    %v2537 = vsel %vm2310, %v2173, %v2536
    %v2538 = vsel %vm2312, %v2175, %v2537
    %v2539 = vsel %vm2454, %v2180, %v2178
    %v2540 = vsel %vm2304, %v2182, %v2539
    %v2541 = vsel %vm2306, %v2184, %v2540
    %v2542 = vsel %vm2308, %v2186, %v2541
    %v2543 = vsel %vm2310, %v2188, %v2542
    %v2544 = vsel %vm2312, %v2190, %v2543
    %v2545 = vsel %vm2454, %v2181, %v2179
    %v2546 = vsel %vm2304, %v2183, %v2545
    %v2547 = vsel %vm2306, %v2185, %v2546
    %v2548 = vsel %vm2308, %v2187, %v2547
    %v2549 = vsel %vm2310, %v2189, %v2548
    %v2550 = vsel %vm2312, %v2191, %v2549
    %v2567 = vsel %vm129, %v2460, 0.0
    %v2568 = vsel %vm129, %v2466, 0.0
    %v2569 = vsel %vm129, %v2472, 0.0
    %v2570 = vsel %vm129, %v2478, 0.0
    %v2571 = vsel %vm129, %v2484, 0.0
    %v2572 = vsel %vm129, %v2490, 0.0
    %v2573 = vsel %vm129, %v2496, 0.0
    %v2574 = vsel %vm129, %v2502, 0.0
    %v2575 = vsel %vm129, %v2508, 0.0
    %v2576 = vsel %vm129, %v2514, 0.0
    %v2577 = vsel %vm129, %v2520, 0.0
    %v2578 = vsel %vm129, %v2526, 0.0
    %v2579 = vsel %vm129, %v2532, 0.0
    %v2580 = vsel %vm129, %v2538, 0.0
    %v2581 = vsel %vm129, %v2544, 0.0
    %v2582 = vsel %vm129, %v2550, 0.0
    %v2583 = vsel %vm2454, %v2066, %v2064
    %v2584 = vsel %vm2304, %v2068, %v2583
    %v2585 = vsel %vm2306, %v2070, %v2584
    %v2586 = vsel %vm2308, %v2072, %v2585
    %v2587 = vsel %vm2310, %v2074, %v2586
    %v2588 = vsel %vm2312, %v2076, %v2587
    %v2589 = vsel %vm2314, %v2078, %v2588
    %v2590 = vsel %vm2454, %v2067, %v2065
    %v2591 = vsel %vm2304, %v2069, %v2590
    %v2592 = vsel %vm2306, %v2071, %v2591
    %v2593 = vsel %vm2308, %v2073, %v2592
    %v2594 = vsel %vm2310, %v2075, %v2593
    %v2595 = vsel %vm2312, %v2077, %v2594
    %v2596 = vsel %vm2314, %v2079, %v2595
    %v2597 = vsel %vm2454, %v2082, %v2080
    %v2598 = vsel %vm2304, %v2084, %v2597
    %v2599 = vsel %vm2306, %v2086, %v2598
    %v2600 = vsel %vm2308, %v2088, %v2599
    %v2601 = vsel %vm2310, %v2090, %v2600
    %v2602 = vsel %vm2312, %v2092, %v2601
    %v2603 = vsel %vm2314, %v2094, %v2602
    %v2604 = vsel %vm2454, %v2083, %v2081
    %v2605 = vsel %vm2304, %v2085, %v2604
    %v2606 = vsel %vm2306, %v2087, %v2605
    %v2607 = vsel %vm2308, %v2089, %v2606
    %v2608 = vsel %vm2310, %v2091, %v2607
    %v2609 = vsel %vm2312, %v2093, %v2608
    %v2610 = vsel %vm2314, %v2095, %v2609
    %v2611 = vsel %vm2454, %v2098, %v2096
    %v2612 = vsel %vm2304, %v2100, %v2611
    %v2613 = vsel %vm2306, %v2102, %v2612
    %v2614 = vsel %vm2308, %v2104, %v2613
    %v2615 = vsel %vm2310, %v2106, %v2614
    %v2616 = vsel %vm2312, %v2108, %v2615
    %v2617 = vsel %vm2314, %v2110, %v2616
    %v2618 = vsel %vm2454, %v2099, %v2097
    %v2619 = vsel %vm2304, %v2101, %v2618
    %v2620 = vsel %vm2306, %v2103, %v2619
    %v2621 = vsel %vm2308, %v2105, %v2620
    %v2622 = vsel %vm2310, %v2107, %v2621
    %v2623 = vsel %vm2312, %v2109, %v2622
    %v2624 = vsel %vm2314, %v2111, %v2623
    %v2625 = vsel %vm2454, %v2114, %v2112
    %v2626 = vsel %vm2304, %v2116, %v2625
    %v2627 = vsel %vm2306, %v2118, %v2626
    %v2628 = vsel %vm2308, %v2120, %v2627
    %v2629 = vsel %vm2310, %v2122, %v2628
    %v2630 = vsel %vm2312, %v2124, %v2629
    %v2631 = vsel %vm2314, %v2126, %v2630
    %v2632 = vsel %vm2454, %v2115, %v2113
    %v2633 = vsel %vm2304, %v2117, %v2632
    %v2634 = vsel %vm2306, %v2119, %v2633
    %v2635 = vsel %vm2308, %v2121, %v2634
    %v2636 = vsel %vm2310, %v2123, %v2635
    %v2637 = vsel %vm2312, %v2125, %v2636
    %v2638 = vsel %vm2314, %v2127, %v2637
    %v2639 = vsel %vm2454, %v2130, %v2128
    %v2640 = vsel %vm2304, %v2132, %v2639
    %v2641 = vsel %vm2306, %v2134, %v2640
    %v2642 = vsel %vm2308, %v2136, %v2641
    %v2643 = vsel %vm2310, %v2138, %v2642
    %v2644 = vsel %vm2312, %v2140, %v2643
    %v2645 = vsel %vm2314, %v2142, %v2644
    %v2646 = vsel %vm2454, %v2131, %v2129
    %v2647 = vsel %vm2304, %v2133, %v2646
    %v2648 = vsel %vm2306, %v2135, %v2647
    %v2649 = vsel %vm2308, %v2137, %v2648
    %v2650 = vsel %vm2310, %v2139, %v2649
    %v2651 = vsel %vm2312, %v2141, %v2650
    %v2652 = vsel %vm2314, %v2143, %v2651
    %v2653 = vsel %vm2454, %v2146, %v2144
    %v2654 = vsel %vm2304, %v2148, %v2653
    %v2655 = vsel %vm2306, %v2150, %v2654
    %v2656 = vsel %vm2308, %v2152, %v2655
    %v2657 = vsel %vm2310, %v2154, %v2656
    %v2658 = vsel %vm2312, %v2156, %v2657
    %v2659 = vsel %vm2314, %v2158, %v2658
    %v2660 = vsel %vm2454, %v2147, %v2145
    %v2661 = vsel %vm2304, %v2149, %v2660
    %v2662 = vsel %vm2306, %v2151, %v2661
    %v2663 = vsel %vm2308, %v2153, %v2662
    %v2664 = vsel %vm2310, %v2155, %v2663
    %v2665 = vsel %vm2312, %v2157, %v2664
    %v2666 = vsel %vm2314, %v2159, %v2665
    %v2667 = vsel %vm2454, %v2162, %v2160
    %v2668 = vsel %vm2304, %v2164, %v2667
    %v2669 = vsel %vm2306, %v2166, %v2668
    %v2670 = vsel %vm2308, %v2168, %v2669
    %v2671 = vsel %vm2310, %v2170, %v2670
    %v2672 = vsel %vm2312, %v2172, %v2671
    %v2673 = vsel %vm2314, %v2174, %v2672
    %v2674 = vsel %vm2454, %v2163, %v2161
    %v2675 = vsel %vm2304, %v2165, %v2674
    %v2676 = vsel %vm2306, %v2167, %v2675
    %v2677 = vsel %vm2308, %v2169, %v2676
    %v2678 = vsel %vm2310, %v2171, %v2677
    %v2679 = vsel %vm2312, %v2173, %v2678
    %v2680 = vsel %vm2314, %v2175, %v2679
    %v2681 = vsel %vm2454, %v2178, %v2176
    %v2682 = vsel %vm2304, %v2180, %v2681
    %v2683 = vsel %vm2306, %v2182, %v2682
    %v2684 = vsel %vm2308, %v2184, %v2683
    %v2685 = vsel %vm2310, %v2186, %v2684
    %v2686 = vsel %vm2312, %v2188, %v2685
    %v2687 = vsel %vm2314, %v2190, %v2686
    %v2688 = vsel %vm2454, %v2179, %v2177
    %v2689 = vsel %vm2304, %v2181, %v2688
    %v2690 = vsel %vm2306, %v2183, %v2689
    %v2691 = vsel %vm2308, %v2185, %v2690
    %v2692 = vsel %vm2310, %v2187, %v2691
    %v2693 = vsel %vm2312, %v2189, %v2692
    %v2694 = vsel %vm2314, %v2191, %v2693
    %v2711 = vpack.c.bf16 %v2424, %v2422
    %v2712 = vpack.c.bf16 %v2425, %v2423
    %v2713 = vpack.c.bf16 %v2603, %v2589
    %v2714 = vpack.c.bf16 %v2610, %v2596
    %v2715 = vpack.c.bf16 %v2569, %v2567
    %v2716 = vpack.c.bf16 %v2570, %v2568
    %v2717 = vpack.c.bf16 %v2428, %v2426
    %v2718 = vpack.c.bf16 %v2429, %v2427
    %v2719 = vpack.c.bf16 %v2631, %v2617
    %v2720 = vpack.c.bf16 %v2638, %v2624
    %v2721 = vpack.c.bf16 %v2573, %v2571
    %v2722 = vpack.c.bf16 %v2574, %v2572
    %v2723 = vpack.c.bf16 %v2432, %v2430
    %v2724 = vpack.c.bf16 %v2433, %v2431
    %v2725 = vpack.c.bf16 %v2659, %v2645
    %v2726 = vpack.c.bf16 %v2666, %v2652
    %v2727 = vpack.c.bf16 %v2577, %v2575
    %v2728 = vpack.c.bf16 %v2578, %v2576
    %v2729 = vpack.c.bf16 %v2436, %v2434
    %v2730 = vpack.c.bf16 %v2437, %v2435
    %v2731 = vpack.c.bf16 %v2687, %v2673
    %v2732 = vpack.c.bf16 %v2694, %v2680
    %v2733 = vpack.c.bf16 %v2581, %v2579
    %v2734 = vpack.c.bf16 %v2582, %v2580
    %v2735 = vld [vmem:[#allocation2] sm:$0xff]
    %v2736 = vld [vmem:[#allocation2 + $0x8] sm:$0xff]
    %v2737 = vld [vmem:[#allocation2 + $0x10] sm:$0xff]
    %v2738 = vld [vmem:[#allocation2 + $0x18] sm:$0xff]
    %v2739 = vld [vmem:[#allocation2 + $0x20] sm:$0xff]
    %v2740 = vld [vmem:[#allocation2 + $0x28] sm:$0xff]
    %v2741 = vld [vmem:[#allocation2 + $0x30] sm:$0xff]
    %v2742 = vld [vmem:[#allocation2 + $0x38] sm:$0xff]
    %v2743 = vld [vmem:[#allocation2 + $0x40] sm:$0xff]
    %v2744 = vld [vmem:[#allocation2 + $0x48] sm:$0xff]
    %v2745 = vld [vmem:[#allocation2 + $0x50] sm:$0xff]
    %v2746 = vld [vmem:[#allocation2 + $0x58] sm:$0xff]
    %v2747 = vld [vmem:[#allocation2 + $0x60] sm:$0xff]
    %v2748 = vld [vmem:[#allocation2 + $0x68] sm:$0xff]
    %v2749 = vld [vmem:[#allocation2 + $0x70] sm:$0xff]
    %v2750 = vld [vmem:[#allocation2 + $0x78] sm:$0xff]
    %v2751 = vld [vmem:[#allocation2 + $0x80] sm:$0xff]
    %v2752 = vld [vmem:[#allocation2 + $0x88] sm:$0xff]
    %v2753 = vld [vmem:[#allocation2 + $0x90] sm:$0xff]
    %v2754 = vld [vmem:[#allocation2 + $0x98] sm:$0xff]
    %v2755 = vld [vmem:[#allocation2 + $0xa0] sm:$0xff]
    %v2756 = vld [vmem:[#allocation2 + $0xa8] sm:$0xff]
    %v2757 = vld [vmem:[#allocation2 + $0xb0] sm:$0xff]
    %v2758 = vld [vmem:[#allocation2 + $0xb8] sm:$0xff]
    %v2759 = vld [vmem:[#allocation2 + $0xc0] sm:$0xff]
    %v2760 = vld [vmem:[#allocation2 + $0xc8] sm:$0xff]
    %v2761 = vld [vmem:[#allocation2 + $0xd0] sm:$0xff]
    %v2762 = vld [vmem:[#allocation2 + $0xd8] sm:$0xff]
    %v2763 = vld [vmem:[#allocation2 + $0xe0] sm:$0xff]
    %v2764 = vld [vmem:[#allocation2 + $0xe8] sm:$0xff]
    %v2765 = vld [vmem:[#allocation2 + $0xf0] sm:$0xff]
    %v2766 = vld [vmem:[#allocation2 + $0xf8] sm:$0xff]
    %v2767 = vld [vmem:[#allocation2 + $0x100] sm:$0xff]
    %v2768 = vld [vmem:[#allocation2 + $0x108] sm:$0xff]
    %v2769 = vld [vmem:[#allocation2 + $0x110] sm:$0xff]
    %v2770 = vld [vmem:[#allocation2 + $0x118] sm:$0xff]
    %v2771 = vld [vmem:[#allocation2 + $0x120] sm:$0xff]
    %v2772 = vld [vmem:[#allocation2 + $0x128] sm:$0xff]
    %v2773 = vld [vmem:[#allocation2 + $0x130] sm:$0xff]
    %v2774 = vld [vmem:[#allocation2 + $0x138] sm:$0xff]
    %v2775 = vld [vmem:[#allocation2 + $0x140] sm:$0xff]
    %v2776 = vld [vmem:[#allocation2 + $0x148] sm:$0xff]
    %v2777 = vld [vmem:[#allocation2 + $0x150] sm:$0xff]
    %v2778 = vld [vmem:[#allocation2 + $0x158] sm:$0xff]
    %v2779 = vld [vmem:[#allocation2 + $0x160] sm:$0xff]
    %v2780 = vld [vmem:[#allocation2 + $0x168] sm:$0xff]
    %v2781 = vld [vmem:[#allocation2 + $0x170] sm:$0xff]
    %v2782 = vld [vmem:[#allocation2 + $0x178] sm:$0xff]
    %v2783 = vld [vmem:[#allocation2 + $0x180] sm:$0xff]
    %v2784 = vld [vmem:[#allocation2 + $0x188] sm:$0xff]
    %v2785 = vld [vmem:[#allocation2 + $0x190] sm:$0xff]
    %v2786 = vld [vmem:[#allocation2 + $0x198] sm:$0xff]
    %v2787 = vld [vmem:[#allocation2 + $0x1a0] sm:$0xff]
    %v2788 = vld [vmem:[#allocation2 + $0x1a8] sm:$0xff]
    %v2789 = vld [vmem:[#allocation2 + $0x1b0] sm:$0xff]
    %v2790 = vld [vmem:[#allocation2 + $0x1b8] sm:$0xff]
    %v2791 = vld [vmem:[#allocation2 + $0x1c0] sm:$0xff]
    %v2792 = vld [vmem:[#allocation2 + $0x1c8] sm:$0xff]
    %v2793 = vld [vmem:[#allocation2 + $0x1d0] sm:$0xff]
    %v2794 = vld [vmem:[#allocation2 + $0x1d8] sm:$0xff]
    %v2795 = vld [vmem:[#allocation2 + $0x1e0] sm:$0xff]
    %v2796 = vld [vmem:[#allocation2 + $0x1e8] sm:$0xff]
    %v2797 = vld [vmem:[#allocation2 + $0x1f0] sm:$0xff]
    %v2798 = vld [vmem:[#allocation2 + $0x1f8] sm:$0xff]
    %v2799 = vld [vmem:[#allocation2 + $0x200] sm:$0xff]
    %v2800 = vld [vmem:[#allocation2 + $0x208] sm:$0xff]
    %v2801 = vld [vmem:[#allocation2 + $0x210] sm:$0xff]
    %v2802 = vld [vmem:[#allocation2 + $0x218] sm:$0xff]
    %v2803 = vld [vmem:[#allocation2 + $0x220] sm:$0xff]
    %v2804 = vld [vmem:[#allocation2 + $0x228] sm:$0xff]
    %v2805 = vld [vmem:[#allocation2 + $0x230] sm:$0xff]
    %v2806 = vld [vmem:[#allocation2 + $0x238] sm:$0xff]
    %v2807 = vld [vmem:[#allocation2 + $0x240] sm:$0xff]
    %v2808 = vld [vmem:[#allocation2 + $0x248] sm:$0xff]
    %v2809 = vld [vmem:[#allocation2 + $0x250] sm:$0xff]
    %v2810 = vld [vmem:[#allocation2 + $0x258] sm:$0xff]
    %v2811 = vld [vmem:[#allocation2 + $0x260] sm:$0xff]
    %v2812 = vld [vmem:[#allocation2 + $0x268] sm:$0xff]
    %v2813 = vld [vmem:[#allocation2 + $0x270] sm:$0xff]
    %v2814 = vld [vmem:[#allocation2 + $0x278] sm:$0xff]
    %v2815 = vld [vmem:[#allocation2 + $0x280] sm:$0xff]
    %v2816 = vld [vmem:[#allocation2 + $0x288] sm:$0xff]
    %v2817 = vld [vmem:[#allocation2 + $0x290] sm:$0xff]
    %v2818 = vld [vmem:[#allocation2 + $0x298] sm:$0xff]
    %v2819 = vld [vmem:[#allocation2 + $0x2a0] sm:$0xff]
    %v2820 = vld [vmem:[#allocation2 + $0x2a8] sm:$0xff]
    %v2821 = vld [vmem:[#allocation2 + $0x2b0] sm:$0xff]
    %v2822 = vld [vmem:[#allocation2 + $0x2b8] sm:$0xff]
    %v2823 = vld [vmem:[#allocation2 + $0x2c0] sm:$0xff]
    %v2824 = vld [vmem:[#allocation2 + $0x2c8] sm:$0xff]
    %v2825 = vld [vmem:[#allocation2 + $0x2d0] sm:$0xff]
    %v2826 = vld [vmem:[#allocation2 + $0x2d8] sm:$0xff]
    %v2827 = vld [vmem:[#allocation2 + $0x2e0] sm:$0xff]
    %v2828 = vld [vmem:[#allocation2 + $0x2e8] sm:$0xff]
    %v2829 = vld [vmem:[#allocation2 + $0x2f0] sm:$0xff]
    %v2830 = vld [vmem:[#allocation2 + $0x2f8] sm:$0xff]
    %v2831 = vld [vmem:[#allocation2 + $0x300] sm:$0xff]
    %v2832 = vld [vmem:[#allocation2 + $0x308] sm:$0xff]
    %v2833 = vld [vmem:[#allocation2 + $0x310] sm:$0xff]
    %v2834 = vld [vmem:[#allocation2 + $0x318] sm:$0xff]
    %v2835 = vld [vmem:[#allocation2 + $0x320] sm:$0xff]
    %v2836 = vld [vmem:[#allocation2 + $0x328] sm:$0xff]
    %v2837 = vld [vmem:[#allocation2 + $0x330] sm:$0xff]
    %v2838 = vld [vmem:[#allocation2 + $0x338] sm:$0xff]
    %v2839 = vld [vmem:[#allocation2 + $0x340] sm:$0xff]
    %v2840 = vld [vmem:[#allocation2 + $0x348] sm:$0xff]
    %v2841 = vld [vmem:[#allocation2 + $0x350] sm:$0xff]
    %v2842 = vld [vmem:[#allocation2 + $0x358] sm:$0xff]
    %v2843 = vld [vmem:[#allocation2 + $0x360] sm:$0xff]
    %v2844 = vld [vmem:[#allocation2 + $0x368] sm:$0xff]
    %v2845 = vld [vmem:[#allocation2 + $0x370] sm:$0xff]
    %v2846 = vld [vmem:[#allocation2 + $0x378] sm:$0xff]
    %v2847 = vld [vmem:[#allocation2 + $0x380] sm:$0xff]
    %v2848 = vld [vmem:[#allocation2 + $0x388] sm:$0xff]
    %v2849 = vld [vmem:[#allocation2 + $0x390] sm:$0xff]
    %v2850 = vld [vmem:[#allocation2 + $0x398] sm:$0xff]
    %v2851 = vld [vmem:[#allocation2 + $0x3a0] sm:$0xff]
    %v2852 = vld [vmem:[#allocation2 + $0x3a8] sm:$0xff]
    %v2853 = vld [vmem:[#allocation2 + $0x3b0] sm:$0xff]
    %v2854 = vld [vmem:[#allocation2 + $0x3b8] sm:$0xff]
    %v2855 = vld [vmem:[#allocation2 + $0x3c0] sm:$0xff]
    %v2856 = vld [vmem:[#allocation2 + $0x3c8] sm:$0xff]
    %v2857 = vld [vmem:[#allocation2 + $0x3d0] sm:$0xff]
    %v2858 = vld [vmem:[#allocation2 + $0x3d8] sm:$0xff]
    %v2859 = vld [vmem:[#allocation2 + $0x3e0] sm:$0xff]
    %v2860 = vld [vmem:[#allocation2 + $0x3e8] sm:$0xff]
    %v2861 = vld [vmem:[#allocation2 + $0x3f0] sm:$0xff]
    %v2862 = vld [vmem:[#allocation2 + $0x3f8] sm:$0xff]
    %v2863 = vld [vmem:[#allocation2 + $0x400] sm:$0xff]
    %v2864 = vld [vmem:[#allocation2 + $0x408] sm:$0xff]
    %v2865 = vld [vmem:[#allocation2 + $0x410] sm:$0xff]
    %v2866 = vld [vmem:[#allocation2 + $0x418] sm:$0xff]
    %v2867 = vld [vmem:[#allocation2 + $0x420] sm:$0xff]
    %v2868 = vld [vmem:[#allocation2 + $0x428] sm:$0xff]
    %v2869 = vld [vmem:[#allocation2 + $0x430] sm:$0xff]
    %v2870 = vld [vmem:[#allocation2 + $0x438] sm:$0xff]
    %v2871 = vld [vmem:[#allocation2 + $0x440] sm:$0xff]
    %v2872 = vld [vmem:[#allocation2 + $0x448] sm:$0xff]
    %v2873 = vld [vmem:[#allocation2 + $0x450] sm:$0xff]
    %v2874 = vld [vmem:[#allocation2 + $0x458] sm:$0xff]
    %v2875 = vld [vmem:[#allocation2 + $0x460] sm:$0xff]
    %v2876 = vld [vmem:[#allocation2 + $0x468] sm:$0xff]
    %v2877 = vld [vmem:[#allocation2 + $0x470] sm:$0xff]
    %v2878 = vld [vmem:[#allocation2 + $0x478] sm:$0xff]
    %v2879 = vld [vmem:[#allocation2 + $0x480] sm:$0xff]
    %v2880 = vld [vmem:[#allocation2 + $0x488] sm:$0xff]
    %v2881 = vld [vmem:[#allocation2 + $0x490] sm:$0xff]
    %v2882 = vld [vmem:[#allocation2 + $0x498] sm:$0xff]
    %v2883 = vld [vmem:[#allocation2 + $0x4a0] sm:$0xff]
    %v2884 = vld [vmem:[#allocation2 + $0x4a8] sm:$0xff]
    %v2885 = vld [vmem:[#allocation2 + $0x4b0] sm:$0xff]
    %v2886 = vld [vmem:[#allocation2 + $0x4b8] sm:$0xff]
    %v2887 = vld [vmem:[#allocation2 + $0x4c0] sm:$0xff]
    %v2888 = vld [vmem:[#allocation2 + $0x4c8] sm:$0xff]
    %v2889 = vld [vmem:[#allocation2 + $0x4d0] sm:$0xff]
    %v2890 = vld [vmem:[#allocation2 + $0x4d8] sm:$0xff]
    %v2891 = vld [vmem:[#allocation2 + $0x4e0] sm:$0xff]
    %v2892 = vld [vmem:[#allocation2 + $0x4e8] sm:$0xff]
    %v2893 = vld [vmem:[#allocation2 + $0x4f0] sm:$0xff]
    %v2894 = vld [vmem:[#allocation2 + $0x4f8] sm:$0xff]
    %v2895 = vld [vmem:[#allocation2 + $0x500] sm:$0xff]
    %v2896 = vld [vmem:[#allocation2 + $0x508] sm:$0xff]
    %v2897 = vld [vmem:[#allocation2 + $0x510] sm:$0xff]
    %v2898 = vld [vmem:[#allocation2 + $0x518] sm:$0xff]
    %v2899 = vld [vmem:[#allocation2 + $0x520] sm:$0xff]
    %v2900 = vld [vmem:[#allocation2 + $0x528] sm:$0xff]
    %v2901 = vld [vmem:[#allocation2 + $0x530] sm:$0xff]
    %v2902 = vld [vmem:[#allocation2 + $0x538] sm:$0xff]
    %v2903 = vld [vmem:[#allocation2 + $0x540] sm:$0xff]
    %v2904 = vld [vmem:[#allocation2 + $0x548] sm:$0xff]
    %v2905 = vld [vmem:[#allocation2 + $0x550] sm:$0xff]
    %v2906 = vld [vmem:[#allocation2 + $0x558] sm:$0xff]
    %v2907 = vld [vmem:[#allocation2 + $0x560] sm:$0xff]
    %v2908 = vld [vmem:[#allocation2 + $0x568] sm:$0xff]
    %v2909 = vld [vmem:[#allocation2 + $0x570] sm:$0xff]
    %v2910 = vld [vmem:[#allocation2 + $0x578] sm:$0xff]
    %v2911 = vld [vmem:[#allocation2 + $0x580] sm:$0xff]
    %v2912 = vld [vmem:[#allocation2 + $0x588] sm:$0xff]
    %v2913 = vld [vmem:[#allocation2 + $0x590] sm:$0xff]
    %v2914 = vld [vmem:[#allocation2 + $0x598] sm:$0xff]
    %v2915 = vld [vmem:[#allocation2 + $0x5a0] sm:$0xff]
    %v2916 = vld [vmem:[#allocation2 + $0x5a8] sm:$0xff]
    %v2917 = vld [vmem:[#allocation2 + $0x5b0] sm:$0xff]
    %v2918 = vld [vmem:[#allocation2 + $0x5b8] sm:$0xff]
    %v2919 = vld [vmem:[#allocation2 + $0x5c0] sm:$0xff]
    %v2920 = vld [vmem:[#allocation2 + $0x5c8] sm:$0xff]
    %v2921 = vld [vmem:[#allocation2 + $0x5d0] sm:$0xff]
    %v2922 = vld [vmem:[#allocation2 + $0x5d8] sm:$0xff]
    %v2923 = vld [vmem:[#allocation2 + $0x5e0] sm:$0xff]
    %v2924 = vld [vmem:[#allocation2 + $0x5e8] sm:$0xff]
    %v2925 = vld [vmem:[#allocation2 + $0x5f0] sm:$0xff]
    %v2926 = vld [vmem:[#allocation2 + $0x5f8] sm:$0xff]
    %v2927 = vld [vmem:[%s4] sm:$0xf]
    %v2929 = vperm.slane %v2927, 0
    %v2930 = vperm.slane %v2927, 1
    %v2931 = vperm.slane %v2927, 2
    %v2932 = vperm.slane %v2927, 3
    %v3129 = vunpack.c.l.b16 %v2735
    %v3130 = vunpack.c.h.b16 %v2735
    %v3131 = vunpack.c.l.b16 %v2736
    %v3132 = vunpack.c.h.b16 %v2736
    %v3133 = vunpack.c.l.b16 %v2737
    %v3134 = vunpack.c.h.b16 %v2737
    %v3135 = vunpack.c.l.b16 %v2738
    %v3136 = vunpack.c.h.b16 %v2738
    %v3137 = vunpack.c.l.b16 %v2739
    %v3138 = vunpack.c.h.b16 %v2739
    %v3139 = vunpack.c.l.b16 %v2740
    %v3140 = vunpack.c.h.b16 %v2740
    %v3141 = vunpack.c.l.b16 %v2741
    %v3142 = vunpack.c.h.b16 %v2741
    %v3143 = vunpack.c.l.b16 %v2742
    %v3144 = vunpack.c.h.b16 %v2742
    %v3145 = vunpack.c.l.b16 %v2743
    %v3146 = vunpack.c.h.b16 %v2743
    %v3147 = vunpack.c.l.b16 %v2744
    %v3148 = vunpack.c.h.b16 %v2744
    %v3149 = vunpack.c.l.b16 %v2745
    %v3150 = vunpack.c.h.b16 %v2745
    %v3151 = vunpack.c.l.b16 %v2746
    %v3152 = vunpack.c.h.b16 %v2746
    %v3153 = vunpack.c.l.b16 %v2747
    %v3154 = vunpack.c.h.b16 %v2747
    %v3155 = vunpack.c.l.b16 %v2748
    %v3156 = vunpack.c.h.b16 %v2748
    %v3157 = vunpack.c.l.b16 %v2749
    %v3158 = vunpack.c.h.b16 %v2749
    %v3159 = vunpack.c.l.b16 %v2750
    %v3160 = vunpack.c.h.b16 %v2750
    %v3161 = vunpack.c.l.b16 %v2751
    %v3162 = vunpack.c.h.b16 %v2751
    %v3163 = vunpack.c.l.b16 %v2752
    %v3164 = vunpack.c.h.b16 %v2752
    %v3165 = vunpack.c.l.b16 %v2753
    %v3166 = vunpack.c.h.b16 %v2753
    %v3167 = vunpack.c.l.b16 %v2754
    %v3168 = vunpack.c.h.b16 %v2754
    %v3169 = vunpack.c.l.b16 %v2755
    %v3170 = vunpack.c.h.b16 %v2755
    %v3171 = vunpack.c.l.b16 %v2756
    %v3172 = vunpack.c.h.b16 %v2756
    %v3173 = vunpack.c.l.b16 %v2757
    %v3174 = vunpack.c.h.b16 %v2757
    %v3175 = vunpack.c.l.b16 %v2758
    %v3176 = vunpack.c.h.b16 %v2758
    %v3177 = vunpack.c.l.b16 %v2759
    %v3178 = vunpack.c.h.b16 %v2759
    %v3179 = vunpack.c.l.b16 %v2760
    %v3180 = vunpack.c.h.b16 %v2760
    %v3181 = vunpack.c.l.b16 %v2761
    %v3182 = vunpack.c.h.b16 %v2761
    %v3183 = vunpack.c.l.b16 %v2762
    %v3184 = vunpack.c.h.b16 %v2762
    %v3185 = vunpack.c.l.b16 %v2763
    %v3186 = vunpack.c.h.b16 %v2763
    %v3187 = vunpack.c.l.b16 %v2764
    %v3188 = vunpack.c.h.b16 %v2764
    %v3189 = vunpack.c.l.b16 %v2765
    %v3190 = vunpack.c.h.b16 %v2765
    %v3191 = vunpack.c.l.b16 %v2766
    %v3192 = vunpack.c.h.b16 %v2766
    %v3193 = vunpack.c.l.b16 %v2767
    %v3194 = vunpack.c.h.b16 %v2767
    %v3195 = vunpack.c.l.b16 %v2768
    %v3196 = vunpack.c.h.b16 %v2768
    %v3197 = vunpack.c.l.b16 %v2769
    %v3198 = vunpack.c.h.b16 %v2769
    %v3199 = vunpack.c.l.b16 %v2770
    %v3200 = vunpack.c.h.b16 %v2770
    %v3201 = vunpack.c.l.b16 %v2771
    %v3202 = vunpack.c.h.b16 %v2771
    %v3203 = vunpack.c.l.b16 %v2772
    %v3204 = vunpack.c.h.b16 %v2772
    %v3205 = vunpack.c.l.b16 %v2773
    %v3206 = vunpack.c.h.b16 %v2773
    %v3207 = vunpack.c.l.b16 %v2774
    %v3208 = vunpack.c.h.b16 %v2774
    %v3209 = vunpack.c.l.b16 %v2775
    %v3210 = vunpack.c.h.b16 %v2775
    %v3211 = vunpack.c.l.b16 %v2776
    %v3212 = vunpack.c.h.b16 %v2776
    %v3213 = vunpack.c.l.b16 %v2777
    %v3214 = vunpack.c.h.b16 %v2777
    %v3215 = vunpack.c.l.b16 %v2778
    %v3216 = vunpack.c.h.b16 %v2778
    %v3217 = vunpack.c.l.b16 %v2779
    %v3218 = vunpack.c.h.b16 %v2779
    %v3219 = vunpack.c.l.b16 %v2780
    %v3220 = vunpack.c.h.b16 %v2780
    %v3221 = vunpack.c.l.b16 %v2781
    %v3222 = vunpack.c.h.b16 %v2781
    %v3223 = vunpack.c.l.b16 %v2782
    %v3224 = vunpack.c.h.b16 %v2782
    %v3225 = vunpack.c.l.b16 %v2783
    %v3226 = vunpack.c.h.b16 %v2783
    %v3227 = vunpack.c.l.b16 %v2784
    %v3228 = vunpack.c.h.b16 %v2784
    %v3229 = vunpack.c.l.b16 %v2785
    %v3230 = vunpack.c.h.b16 %v2785
    %v3231 = vunpack.c.l.b16 %v2786
    %v3232 = vunpack.c.h.b16 %v2786
    %v3233 = vunpack.c.l.b16 %v2787
    %v3234 = vunpack.c.h.b16 %v2787
    %v3235 = vunpack.c.l.b16 %v2788
    %v3236 = vunpack.c.h.b16 %v2788
    %v3237 = vunpack.c.l.b16 %v2789
    %v3238 = vunpack.c.h.b16 %v2789
    %v3239 = vunpack.c.l.b16 %v2790
    %v3240 = vunpack.c.h.b16 %v2790
    %v3241 = vunpack.c.l.b16 %v2791
    %v3242 = vunpack.c.h.b16 %v2791
    %v3243 = vunpack.c.l.b16 %v2792
    %v3244 = vunpack.c.h.b16 %v2792
    %v3245 = vunpack.c.l.b16 %v2793
    %v3246 = vunpack.c.h.b16 %v2793
    %v3247 = vunpack.c.l.b16 %v2794
    %v3248 = vunpack.c.h.b16 %v2794
    %v3249 = vunpack.c.l.b16 %v2795
    %v3250 = vunpack.c.h.b16 %v2795
    %v3251 = vunpack.c.l.b16 %v2796
    %v3252 = vunpack.c.h.b16 %v2796
    %v3253 = vunpack.c.l.b16 %v2797
    %v3254 = vunpack.c.h.b16 %v2797
    %v3255 = vunpack.c.l.b16 %v2798
    %v3256 = vunpack.c.h.b16 %v2798
    %v3257 = vunpack.c.l.b16 %v2799
    %v3258 = vunpack.c.h.b16 %v2799
    %v3259 = vunpack.c.l.b16 %v2800
    %v3260 = vunpack.c.h.b16 %v2800
    %v3261 = vunpack.c.l.b16 %v2801
    %v3262 = vunpack.c.h.b16 %v2801
    %v3263 = vunpack.c.l.b16 %v2802
    %v3264 = vunpack.c.h.b16 %v2802
    %v3265 = vunpack.c.l.b16 %v2803
    %v3266 = vunpack.c.h.b16 %v2803
    %v3267 = vunpack.c.l.b16 %v2804
    %v3268 = vunpack.c.h.b16 %v2804
    %v3269 = vunpack.c.l.b16 %v2805
    %v3270 = vunpack.c.h.b16 %v2805
    %v3271 = vunpack.c.l.b16 %v2806
    %v3272 = vunpack.c.h.b16 %v2806
    %v3273 = vunpack.c.l.b16 %v2807
    %v3274 = vunpack.c.h.b16 %v2807
    %v3275 = vunpack.c.l.b16 %v2808
    %v3276 = vunpack.c.h.b16 %v2808
    %v3277 = vunpack.c.l.b16 %v2809
    %v3278 = vunpack.c.h.b16 %v2809
    %v3279 = vunpack.c.l.b16 %v2810
    %v3280 = vunpack.c.h.b16 %v2810
    %v3281 = vunpack.c.l.b16 %v2811
    %v3282 = vunpack.c.h.b16 %v2811
    %v3283 = vunpack.c.l.b16 %v2812
    %v3284 = vunpack.c.h.b16 %v2812
    %v3285 = vunpack.c.l.b16 %v2813
    %v3286 = vunpack.c.h.b16 %v2813
    %v3287 = vunpack.c.l.b16 %v2814
    %v3288 = vunpack.c.h.b16 %v2814
    %v3289 = vunpack.c.l.b16 %v2815
    %v3290 = vunpack.c.h.b16 %v2815
    %v3291 = vunpack.c.l.b16 %v2816
    %v3292 = vunpack.c.h.b16 %v2816
    %v3293 = vunpack.c.l.b16 %v2817
    %v3294 = vunpack.c.h.b16 %v2817
    %v3295 = vunpack.c.l.b16 %v2818
    %v3296 = vunpack.c.h.b16 %v2818
    %v3297 = vunpack.c.l.b16 %v2819
    %v3298 = vunpack.c.h.b16 %v2819
    %v3299 = vunpack.c.l.b16 %v2820
    %v3300 = vunpack.c.h.b16 %v2820
    %v3301 = vunpack.c.l.b16 %v2821
    %v3302 = vunpack.c.h.b16 %v2821
    %v3303 = vunpack.c.l.b16 %v2822
    %v3304 = vunpack.c.h.b16 %v2822
    %v3305 = vunpack.c.l.b16 %v2823
    %v3306 = vunpack.c.h.b16 %v2823
    %v3307 = vunpack.c.l.b16 %v2824
    %v3308 = vunpack.c.h.b16 %v2824
    %v3309 = vunpack.c.l.b16 %v2825
    %v3310 = vunpack.c.h.b16 %v2825
    %v3311 = vunpack.c.l.b16 %v2826
    %v3312 = vunpack.c.h.b16 %v2826
    %v3313 = vunpack.c.l.b16 %v2827
    %v3314 = vunpack.c.h.b16 %v2827
    %v3315 = vunpack.c.l.b16 %v2828
    %v3316 = vunpack.c.h.b16 %v2828
    %v3317 = vunpack.c.l.b16 %v2829
    %v3318 = vunpack.c.h.b16 %v2829
    %v3319 = vunpack.c.l.b16 %v2830
    %v3320 = vunpack.c.h.b16 %v2830
    %v3321 = vunpack.c.l.b16 %v2831
    %v3322 = vunpack.c.h.b16 %v2831
    %v3323 = vunpack.c.l.b16 %v2832
    %v3324 = vunpack.c.h.b16 %v2832
    %v3325 = vunpack.c.l.b16 %v2833
    %v3326 = vunpack.c.h.b16 %v2833
    %v3327 = vunpack.c.l.b16 %v2834
    %v3328 = vunpack.c.h.b16 %v2834
    %v3329 = vunpack.c.l.b16 %v2835
    %v3330 = vunpack.c.h.b16 %v2835
    %v3331 = vunpack.c.l.b16 %v2836
    %v3332 = vunpack.c.h.b16 %v2836
    %v3333 = vunpack.c.l.b16 %v2837
    %v3334 = vunpack.c.h.b16 %v2837
    %v3335 = vunpack.c.l.b16 %v2838
    %v3336 = vunpack.c.h.b16 %v2838
    %v3337 = vunpack.c.l.b16 %v2839
    %v3338 = vunpack.c.h.b16 %v2839
    %v3339 = vunpack.c.l.b16 %v2840
    %v3340 = vunpack.c.h.b16 %v2840
    %v3341 = vunpack.c.l.b16 %v2841
    %v3342 = vunpack.c.h.b16 %v2841
    %v3343 = vunpack.c.l.b16 %v2842
    %v3344 = vunpack.c.h.b16 %v2842
    %v3345 = vunpack.c.l.b16 %v2843
    %v3346 = vunpack.c.h.b16 %v2843
    %v3347 = vunpack.c.l.b16 %v2844
    %v3348 = vunpack.c.h.b16 %v2844
    %v3349 = vunpack.c.l.b16 %v2845
    %v3350 = vunpack.c.h.b16 %v2845
    %v3351 = vunpack.c.l.b16 %v2846
    %v3352 = vunpack.c.h.b16 %v2846
    %v3353 = vunpack.c.l.b16 %v2847
    %v3354 = vunpack.c.h.b16 %v2847
    %v3355 = vunpack.c.l.b16 %v2848
    %v3356 = vunpack.c.h.b16 %v2848
    %v3357 = vunpack.c.l.b16 %v2849
    %v3358 = vunpack.c.h.b16 %v2849
    %v3359 = vunpack.c.l.b16 %v2850
    %v3360 = vunpack.c.h.b16 %v2850
    %v3361 = vunpack.c.l.b16 %v2851
    %v3362 = vunpack.c.h.b16 %v2851
    %v3363 = vunpack.c.l.b16 %v2852
    %v3364 = vunpack.c.h.b16 %v2852
    %v3365 = vunpack.c.l.b16 %v2853
    %v3366 = vunpack.c.h.b16 %v2853
    %v3367 = vunpack.c.l.b16 %v2854
    %v3368 = vunpack.c.h.b16 %v2854
    %v3369 = vunpack.c.l.b16 %v2855
    %v3370 = vunpack.c.h.b16 %v2855
    %v3371 = vunpack.c.l.b16 %v2856
    %v3372 = vunpack.c.h.b16 %v2856
    %v3373 = vunpack.c.l.b16 %v2857
    %v3374 = vunpack.c.h.b16 %v2857
    %v3375 = vunpack.c.l.b16 %v2858
    %v3376 = vunpack.c.h.b16 %v2858
    %v3377 = vunpack.c.l.b16 %v2859
    %v3378 = vunpack.c.h.b16 %v2859
    %v3379 = vunpack.c.l.b16 %v2860
    %v3380 = vunpack.c.h.b16 %v2860
    %v3381 = vunpack.c.l.b16 %v2861
    %v3382 = vunpack.c.h.b16 %v2861
    %v3383 = vunpack.c.l.b16 %v2862
    %v3384 = vunpack.c.h.b16 %v2862
    %v3385 = vunpack.c.l.b16 %v2863
    %v3386 = vunpack.c.h.b16 %v2863
    %v3387 = vunpack.c.l.b16 %v2864
    %v3388 = vunpack.c.h.b16 %v2864
    %v3389 = vunpack.c.l.b16 %v2865
    %v3390 = vunpack.c.h.b16 %v2865
    %v3391 = vunpack.c.l.b16 %v2866
    %v3392 = vunpack.c.h.b16 %v2866
    %v3393 = vunpack.c.l.b16 %v2867
    %v3394 = vunpack.c.h.b16 %v2867
    %v3395 = vunpack.c.l.b16 %v2868
    %v3396 = vunpack.c.h.b16 %v2868
    %v3397 = vunpack.c.l.b16 %v2869
    %v3398 = vunpack.c.h.b16 %v2869
    %v3399 = vunpack.c.l.b16 %v2870
    %v3400 = vunpack.c.h.b16 %v2870
    %v3401 = vunpack.c.l.b16 %v2871
    %v3402 = vunpack.c.h.b16 %v2871
    %v3403 = vunpack.c.l.b16 %v2872
    %v3404 = vunpack.c.h.b16 %v2872
    %v3405 = vunpack.c.l.b16 %v2873
    %v3406 = vunpack.c.h.b16 %v2873
    %v3407 = vunpack.c.l.b16 %v2874
    %v3408 = vunpack.c.h.b16 %v2874
    %v3409 = vunpack.c.l.b16 %v2875
    %v3410 = vunpack.c.h.b16 %v2875
    %v3411 = vunpack.c.l.b16 %v2876
    %v3412 = vunpack.c.h.b16 %v2876
    %v3413 = vunpack.c.l.b16 %v2877
    %v3414 = vunpack.c.h.b16 %v2877
    %v3415 = vunpack.c.l.b16 %v2878
    %v3416 = vunpack.c.h.b16 %v2878
    %v3417 = vunpack.c.l.b16 %v2879
    %v3418 = vunpack.c.h.b16 %v2879
    %v3419 = vunpack.c.l.b16 %v2880
    %v3420 = vunpack.c.h.b16 %v2880
    %v3421 = vunpack.c.l.b16 %v2881
    %v3422 = vunpack.c.h.b16 %v2881
    %v3423 = vunpack.c.l.b16 %v2882
    %v3424 = vunpack.c.h.b16 %v2882
    %v3425 = vunpack.c.l.b16 %v2883
    %v3426 = vunpack.c.h.b16 %v2883
    %v3427 = vunpack.c.l.b16 %v2884
    %v3428 = vunpack.c.h.b16 %v2884
    %v3429 = vunpack.c.l.b16 %v2885
    %v3430 = vunpack.c.h.b16 %v2885
    %v3431 = vunpack.c.l.b16 %v2886
    %v3432 = vunpack.c.h.b16 %v2886
    %v3433 = vunpack.c.l.b16 %v2887
    %v3434 = vunpack.c.h.b16 %v2887
    %v3435 = vunpack.c.l.b16 %v2888
    %v3436 = vunpack.c.h.b16 %v2888
    %v3437 = vunpack.c.l.b16 %v2889
    %v3438 = vunpack.c.h.b16 %v2889
    %v3439 = vunpack.c.l.b16 %v2890
    %v3440 = vunpack.c.h.b16 %v2890
    %v3441 = vunpack.c.l.b16 %v2891
    %v3442 = vunpack.c.h.b16 %v2891
    %v3443 = vunpack.c.l.b16 %v2892
    %v3444 = vunpack.c.h.b16 %v2892
    %v3445 = vunpack.c.l.b16 %v2893
    %v3446 = vunpack.c.h.b16 %v2893
    %v3447 = vunpack.c.l.b16 %v2894
    %v3448 = vunpack.c.h.b16 %v2894
    %v3449 = vunpack.c.l.b16 %v2895
    %v3450 = vunpack.c.h.b16 %v2895
    %v3451 = vunpack.c.l.b16 %v2896
    %v3452 = vunpack.c.h.b16 %v2896
    %v3453 = vunpack.c.l.b16 %v2897
    %v3454 = vunpack.c.h.b16 %v2897
    %v3455 = vunpack.c.l.b16 %v2898
    %v3456 = vunpack.c.h.b16 %v2898
    %v3457 = vunpack.c.l.b16 %v2899
    %v3458 = vunpack.c.h.b16 %v2899
    %v3459 = vunpack.c.l.b16 %v2900
    %v3460 = vunpack.c.h.b16 %v2900
    %v3461 = vunpack.c.l.b16 %v2901
    %v3462 = vunpack.c.h.b16 %v2901
    %v3463 = vunpack.c.l.b16 %v2902
    %v3464 = vunpack.c.h.b16 %v2902
    %v3465 = vunpack.c.l.b16 %v2903
    %v3466 = vunpack.c.h.b16 %v2903
    %v3467 = vunpack.c.l.b16 %v2904
    %v3468 = vunpack.c.h.b16 %v2904
    %v3469 = vunpack.c.l.b16 %v2905
    %v3470 = vunpack.c.h.b16 %v2905
    %v3471 = vunpack.c.l.b16 %v2906
    %v3472 = vunpack.c.h.b16 %v2906
    %v3473 = vunpack.c.l.b16 %v2907
    %v3474 = vunpack.c.h.b16 %v2907
    %v3475 = vunpack.c.l.b16 %v2908
    %v3476 = vunpack.c.h.b16 %v2908
    %v3477 = vunpack.c.l.b16 %v2909
    %v3478 = vunpack.c.h.b16 %v2909
    %v3479 = vunpack.c.l.b16 %v2910
    %v3480 = vunpack.c.h.b16 %v2910
    %v3481 = vunpack.c.l.b16 %v2911
    %v3482 = vunpack.c.h.b16 %v2911
    %v3483 = vunpack.c.l.b16 %v2912
    %v3484 = vunpack.c.h.b16 %v2912
    %v3485 = vunpack.c.l.b16 %v2913
    %v3486 = vunpack.c.h.b16 %v2913
    %v3487 = vunpack.c.l.b16 %v2914
    %v3488 = vunpack.c.h.b16 %v2914
    %v3489 = vunpack.c.l.b16 %v2915
    %v3490 = vunpack.c.h.b16 %v2915
    %v3491 = vunpack.c.l.b16 %v2916
    %v3492 = vunpack.c.h.b16 %v2916
    %v3493 = vunpack.c.l.b16 %v2917
    %v3494 = vunpack.c.h.b16 %v2917
    %v3495 = vunpack.c.l.b16 %v2918
    %v3496 = vunpack.c.h.b16 %v2918
    %v3497 = vunpack.c.l.b16 %v2919
    %v3498 = vunpack.c.h.b16 %v2919
    %v3499 = vunpack.c.l.b16 %v2920
    %v3500 = vunpack.c.h.b16 %v2920
    %v3501 = vunpack.c.l.b16 %v2921
    %v3502 = vunpack.c.h.b16 %v2921
    %v3503 = vunpack.c.l.b16 %v2922
    %v3504 = vunpack.c.h.b16 %v2922
    %v3505 = vunpack.c.l.b16 %v2923
    %v3506 = vunpack.c.h.b16 %v2923
    %v3507 = vunpack.c.l.b16 %v2924
    %v3508 = vunpack.c.h.b16 %v2924
    %v3509 = vunpack.c.l.b16 %v2925
    %v3510 = vunpack.c.h.b16 %v2925
    %v3511 = vunpack.c.l.b16 %v2926
    %v3512 = vunpack.c.h.b16 %v2926
    %v3513 = vpack.c.b16 %v3133, %v3129
    %v3514 = vpack.c.b16 %v3134, %v3130
    %v3515 = vpack.c.b16 %v3135, %v3131
    %v3516 = vpack.c.b16 %v3136, %v3132
    %v3517 = vpack.c.b16 %v3141, %v3137
    %v3518 = vpack.c.b16 %v3142, %v3138
    %v3519 = vpack.c.b16 %v3143, %v3139
    %v3520 = vpack.c.b16 %v3144, %v3140
    %v3521 = vpack.c.b16 %v3149, %v3145
    %v3522 = vpack.c.b16 %v3150, %v3146
    %v3523 = vpack.c.b16 %v3151, %v3147
    %v3524 = vpack.c.b16 %v3152, %v3148
    %v3525 = vpack.c.b16 %v3157, %v3153
    %v3526 = vpack.c.b16 %v3158, %v3154
    %v3527 = vpack.c.b16 %v3159, %v3155
    %v3528 = vpack.c.b16 %v3160, %v3156
    %v3529 = vpack.c.b16 %v3165, %v3161
    %v3530 = vpack.c.b16 %v3166, %v3162
    %v3531 = vpack.c.b16 %v3167, %v3163
    %v3532 = vpack.c.b16 %v3168, %v3164
    %v3533 = vpack.c.b16 %v3173, %v3169
    %v3534 = vpack.c.b16 %v3174, %v3170
    %v3535 = vpack.c.b16 %v3175, %v3171
    %v3536 = vpack.c.b16 %v3176, %v3172
    %v3537 = vpack.c.b16 %v3181, %v3177
    %v3538 = vpack.c.b16 %v3182, %v3178
    %v3539 = vpack.c.b16 %v3183, %v3179
    %v3540 = vpack.c.b16 %v3184, %v3180
    %v3541 = vpack.c.b16 %v3189, %v3185
    %v3542 = vpack.c.b16 %v3190, %v3186
    %v3543 = vpack.c.b16 %v3191, %v3187
    %v3544 = vpack.c.b16 %v3192, %v3188
    %v3545 = vpack.c.b16 %v3197, %v3193
    %v3546 = vpack.c.b16 %v3198, %v3194
    %v3547 = vpack.c.b16 %v3199, %v3195
    %v3548 = vpack.c.b16 %v3200, %v3196
    %v3549 = vpack.c.b16 %v3205, %v3201
    %v3550 = vpack.c.b16 %v3206, %v3202
    %v3551 = vpack.c.b16 %v3207, %v3203
    %v3552 = vpack.c.b16 %v3208, %v3204
    %v3553 = vpack.c.b16 %v3213, %v3209
    %v3554 = vpack.c.b16 %v3214, %v3210
    %v3555 = vpack.c.b16 %v3215, %v3211
    %v3556 = vpack.c.b16 %v3216, %v3212
    %v3557 = vpack.c.b16 %v3221, %v3217
    %v3558 = vpack.c.b16 %v3222, %v3218
    %v3559 = vpack.c.b16 %v3223, %v3219
    %v3560 = vpack.c.b16 %v3224, %v3220
    %v3561 = vpack.c.b16 %v3229, %v3225
    %v3562 = vpack.c.b16 %v3230, %v3226
    %v3563 = vpack.c.b16 %v3231, %v3227
    %v3564 = vpack.c.b16 %v3232, %v3228
    %v3565 = vpack.c.b16 %v3237, %v3233
    %v3566 = vpack.c.b16 %v3238, %v3234
    %v3567 = vpack.c.b16 %v3239, %v3235
    %v3568 = vpack.c.b16 %v3240, %v3236
    %v3569 = vpack.c.b16 %v3245, %v3241
    %v3570 = vpack.c.b16 %v3246, %v3242
    %v3571 = vpack.c.b16 %v3247, %v3243
    %v3572 = vpack.c.b16 %v3248, %v3244
    %v3573 = vpack.c.b16 %v3253, %v3249
    %v3574 = vpack.c.b16 %v3254, %v3250
    %v3575 = vpack.c.b16 %v3255, %v3251
    %v3576 = vpack.c.b16 %v3256, %v3252
    %v3577 = vpack.c.b16 %v3261, %v3257
    %v3578 = vpack.c.b16 %v3262, %v3258
    %v3579 = vpack.c.b16 %v3263, %v3259
    %v3580 = vpack.c.b16 %v3264, %v3260
    %v3581 = vpack.c.b16 %v3269, %v3265
    %v3582 = vpack.c.b16 %v3270, %v3266
    %v3583 = vpack.c.b16 %v3271, %v3267
    %v3584 = vpack.c.b16 %v3272, %v3268
    %v3585 = vpack.c.b16 %v3277, %v3273
    %v3586 = vpack.c.b16 %v3278, %v3274
    %v3587 = vpack.c.b16 %v3279, %v3275
    %v3588 = vpack.c.b16 %v3280, %v3276
    %v3589 = vpack.c.b16 %v3285, %v3281
    %v3590 = vpack.c.b16 %v3286, %v3282
    %v3591 = vpack.c.b16 %v3287, %v3283
    %v3592 = vpack.c.b16 %v3288, %v3284
    %v3593 = vpack.c.b16 %v3293, %v3289
    %v3594 = vpack.c.b16 %v3294, %v3290
    %v3595 = vpack.c.b16 %v3295, %v3291
    %v3596 = vpack.c.b16 %v3296, %v3292
    %v3597 = vpack.c.b16 %v3301, %v3297
    %v3598 = vpack.c.b16 %v3302, %v3298
    %v3599 = vpack.c.b16 %v3303, %v3299
    %v3600 = vpack.c.b16 %v3304, %v3300
    %v3601 = vpack.c.b16 %v3309, %v3305
    %v3602 = vpack.c.b16 %v3310, %v3306
    %v3603 = vpack.c.b16 %v3311, %v3307
    %v3604 = vpack.c.b16 %v3312, %v3308
    %v3605 = vpack.c.b16 %v3317, %v3313
    %v3606 = vpack.c.b16 %v3318, %v3314
    %v3607 = vpack.c.b16 %v3319, %v3315
    %v3608 = vpack.c.b16 %v3320, %v3316
    %v3609 = vpack.c.b16 %v3325, %v3321
    %v3610 = vpack.c.b16 %v3326, %v3322
    %v3611 = vpack.c.b16 %v3327, %v3323
    %v3612 = vpack.c.b16 %v3328, %v3324
    %v3613 = vpack.c.b16 %v3333, %v3329
    %v3614 = vpack.c.b16 %v3334, %v3330
    %v3615 = vpack.c.b16 %v3335, %v3331
    %v3616 = vpack.c.b16 %v3336, %v3332
    %v3617 = vpack.c.b16 %v3341, %v3337
    %v3618 = vpack.c.b16 %v3342, %v3338
    %v3619 = vpack.c.b16 %v3343, %v3339
    %v3620 = vpack.c.b16 %v3344, %v3340
    %v3621 = vpack.c.b16 %v3349, %v3345
    %v3622 = vpack.c.b16 %v3350, %v3346
    %v3623 = vpack.c.b16 %v3351, %v3347
    %v3624 = vpack.c.b16 %v3352, %v3348
    %v3625 = vpack.c.b16 %v3357, %v3353
    %v3626 = vpack.c.b16 %v3358, %v3354
    %v3627 = vpack.c.b16 %v3359, %v3355
    %v3628 = vpack.c.b16 %v3360, %v3356
    %v3629 = vpack.c.b16 %v3365, %v3361
    %v3630 = vpack.c.b16 %v3366, %v3362
    %v3631 = vpack.c.b16 %v3367, %v3363
    %v3632 = vpack.c.b16 %v3368, %v3364
    %v3633 = vpack.c.b16 %v3373, %v3369
    %v3634 = vpack.c.b16 %v3374, %v3370
    %v3635 = vpack.c.b16 %v3375, %v3371
    %v3636 = vpack.c.b16 %v3376, %v3372
    %v3637 = vpack.c.b16 %v3381, %v3377
    %v3638 = vpack.c.b16 %v3382, %v3378
    %v3639 = vpack.c.b16 %v3383, %v3379
    %v3640 = vpack.c.b16 %v3384, %v3380
    %v3641 = vpack.c.b16 %v3389, %v3385
    %v3642 = vpack.c.b16 %v3390, %v3386
    %v3643 = vpack.c.b16 %v3391, %v3387
    %v3644 = vpack.c.b16 %v3392, %v3388
    %v3645 = vpack.c.b16 %v3397, %v3393
    %v3646 = vpack.c.b16 %v3398, %v3394
    %v3647 = vpack.c.b16 %v3399, %v3395
    %v3648 = vpack.c.b16 %v3400, %v3396
    %v3649 = vpack.c.b16 %v3405, %v3401
    %v3650 = vpack.c.b16 %v3406, %v3402
    %v3651 = vpack.c.b16 %v3407, %v3403
    %v3652 = vpack.c.b16 %v3408, %v3404
    %v3653 = vpack.c.b16 %v3413, %v3409
    %v3654 = vpack.c.b16 %v3414, %v3410
    %v3655 = vpack.c.b16 %v3415, %v3411
    %v3656 = vpack.c.b16 %v3416, %v3412
    %v3657 = vpack.c.b16 %v3421, %v3417
    %v3658 = vpack.c.b16 %v3422, %v3418
    %v3659 = vpack.c.b16 %v3423, %v3419
    %v3660 = vpack.c.b16 %v3424, %v3420
    %v3661 = vpack.c.b16 %v3429, %v3425
    %v3662 = vpack.c.b16 %v3430, %v3426
    %v3663 = vpack.c.b16 %v3431, %v3427
    %v3664 = vpack.c.b16 %v3432, %v3428
    %v3665 = vpack.c.b16 %v3437, %v3433
    %v3666 = vpack.c.b16 %v3438, %v3434
    %v3667 = vpack.c.b16 %v3439, %v3435
    %v3668 = vpack.c.b16 %v3440, %v3436
    %v3669 = vpack.c.b16 %v3445, %v3441
    %v3670 = vpack.c.b16 %v3446, %v3442
    %v3671 = vpack.c.b16 %v3447, %v3443
    %v3672 = vpack.c.b16 %v3448, %v3444
    %v3673 = vpack.c.b16 %v3453, %v3449
    %v3674 = vpack.c.b16 %v3454, %v3450
    %v3675 = vpack.c.b16 %v3455, %v3451
    %v3676 = vpack.c.b16 %v3456, %v3452
    %v3677 = vpack.c.b16 %v3461, %v3457
    %v3678 = vpack.c.b16 %v3462, %v3458
    %v3679 = vpack.c.b16 %v3463, %v3459
    %v3680 = vpack.c.b16 %v3464, %v3460
    %v3681 = vpack.c.b16 %v3469, %v3465
    %v3682 = vpack.c.b16 %v3470, %v3466
    %v3683 = vpack.c.b16 %v3471, %v3467
    %v3684 = vpack.c.b16 %v3472, %v3468
    %v3685 = vpack.c.b16 %v3477, %v3473
    %v3686 = vpack.c.b16 %v3478, %v3474
    %v3687 = vpack.c.b16 %v3479, %v3475
    %v3688 = vpack.c.b16 %v3480, %v3476
    %v3689 = vpack.c.b16 %v3485, %v3481
    %v3690 = vpack.c.b16 %v3486, %v3482
    %v3691 = vpack.c.b16 %v3487, %v3483
    %v3692 = vpack.c.b16 %v3488, %v3484
    %v3693 = vpack.c.b16 %v3493, %v3489
    %v3694 = vpack.c.b16 %v3494, %v3490
    %v3695 = vpack.c.b16 %v3495, %v3491
    %v3696 = vpack.c.b16 %v3496, %v3492
    %v3697 = vpack.c.b16 %v3501, %v3497
    %v3698 = vpack.c.b16 %v3502, %v3498
    %v3699 = vpack.c.b16 %v3503, %v3499
    %v3700 = vpack.c.b16 %v3504, %v3500
    %v3701 = vpack.c.b16 %v3509, %v3505
    %v3702 = vpack.c.b16 %v3510, %v3506
    %v3703 = vpack.c.b16 %v3511, %v3507
    %v3704 = vpack.c.b16 %v3512, %v3508
    %3897 = vmatpush.bf16.msra.mxu0 %v3541
    %3898 = vmatpush.bf16.msra.mxu0 %v3537
    %3899 = vmatpush.bf16.msra.mxu0 %v3533
    %3900 = vmatpush.bf16.msra.mxu0 %v3529
    %3901 = vmatpush.bf16.msra.mxu0 %v3525
    %3902 = vmatpush.bf16.msra.mxu0 %v3521
    %3903 = vmatpush.bf16.msra.mxu0 %v3517
    %3904 = vmatpush.bf16.msra.mxu0 %v3513
    %3905 = vmatmul.bf16.gmra.mxu0 %v2711
    %v3906 = vpop.f32.mrf.mxu0
    %v3907 = vadd.f32 %v2929, %v3906
    %v3908 = vpop.f32.mrf.mxu0
    %v3909 = vadd.f32 %v2929, %v3908
    %3910 = vmatmul.bf16.gmra.mxu0 %v2717
    %v3911 = vpop.f32.mrf.mxu0
    %v3912 = vadd.f32 %v2929, %v3911
    %v3913 = vpop.f32.mrf.mxu0
    %v3914 = vadd.f32 %v2929, %v3913
    %3915 = vmatmul.bf16.gmra.mxu0 %v2723
    %v3916 = vpop.f32.mrf.mxu0
    %v3917 = vadd.f32 %v2929, %v3916
    %v3918 = vpop.f32.mrf.mxu0
    %v3919 = vadd.f32 %v2929, %v3918
    %3920 = vmatmul.bf16.gmra.mxu0 %v2729
    %v3921 = vpop.f32.mrf.mxu0
    %v3922 = vadd.f32 %v2929, %v3921
    %v3923 = vpop.f32.mrf.mxu0
    %v3924 = vadd.f32 %v2929, %v3923
    %3925 = vdwg.mxu0
    %3926 = vmatpush.bf16.msra.mxu0 %v3573
    %3927 = vmatpush.bf16.msra.mxu0 %v3569
    %3928 = vmatpush.bf16.msra.mxu0 %v3565
    %3929 = vmatpush.bf16.msra.mxu0 %v3561
    %3930 = vmatpush.bf16.msra.mxu0 %v3557
    %3931 = vmatpush.bf16.msra.mxu0 %v3553
    %3932 = vmatpush.bf16.msra.mxu0 %v3549
    %3933 = vmatpush.bf16.msra.mxu0 %v3545
    %3934 = vmatmul.bf16.gmra.mxu0 %v2712
    %v3935 = vpop.f32.mrf.mxu0
    %v3936 = vadd.f32 %v3907, %v3935
    %v3937 = vpop.f32.mrf.mxu0
    %v3938 = vadd.f32 %v3909, %v3937
    %3939 = vmatmul.bf16.gmra.mxu0 %v2718
    %v3940 = vpop.f32.mrf.mxu0
    %v3941 = vadd.f32 %v3912, %v3940
    %v3942 = vpop.f32.mrf.mxu0
    %v3943 = vadd.f32 %v3914, %v3942
    %3944 = vmatmul.bf16.gmra.mxu0 %v2724
    %v3945 = vpop.f32.mrf.mxu0
    %v3946 = vadd.f32 %v3917, %v3945
    %v3947 = vpop.f32.mrf.mxu0
    %v3948 = vadd.f32 %v3919, %v3947
    %3949 = vmatmul.bf16.gmra.mxu0 %v2730
    %v3950 = vpop.f32.mrf.mxu0
    %v3951 = vadd.f32 %v3922, %v3950
    %v3952 = vpop.f32.mrf.mxu0
    %v3953 = vadd.f32 %v3924, %v3952
    %3954 = vdwg.mxu0
    %3955 = vmatpush.bf16.msra.mxu0 %v3605
    %3956 = vmatpush.bf16.msra.mxu0 %v3601
    %3957 = vmatpush.bf16.msra.mxu0 %v3597
    %3958 = vmatpush.bf16.msra.mxu0 %v3593
    %3959 = vmatpush.bf16.msra.mxu0 %v3589
    %3960 = vmatpush.bf16.msra.mxu0 %v3585
    %3961 = vmatpush.bf16.msra.mxu0 %v3581
    %3962 = vmatpush.bf16.msra.mxu0 %v3577
    %3963 = vmatmul.bf16.gmra.mxu0 %v2713
    %v3964 = vpop.f32.mrf.mxu0
    %v3965 = vadd.f32 %v3936, %v3964
    %v3966 = vpop.f32.mrf.mxu0
    %v3967 = vadd.f32 %v3938, %v3966
    %3968 = vmatmul.bf16.gmra.mxu0 %v2719
    %v3969 = vpop.f32.mrf.mxu0
    %v3970 = vadd.f32 %v3941, %v3969
    %v3971 = vpop.f32.mrf.mxu0
    %v3972 = vadd.f32 %v3943, %v3971
    %3973 = vmatmul.bf16.gmra.mxu0 %v2725
    %v3974 = vpop.f32.mrf.mxu0
    %v3975 = vadd.f32 %v3946, %v3974
    %v3976 = vpop.f32.mrf.mxu0
    %v3977 = vadd.f32 %v3948, %v3976
    %3978 = vmatmul.bf16.gmra.mxu0 %v2731
    %v3979 = vpop.f32.mrf.mxu0
    %v3980 = vadd.f32 %v3951, %v3979
    %v3981 = vpop.f32.mrf.mxu0
    %v3982 = vadd.f32 %v3953, %v3981
    %3983 = vdwg.mxu0
    %3984 = vmatpush.bf16.msra.mxu0 %v3637
    %3985 = vmatpush.bf16.msra.mxu0 %v3633
    %3986 = vmatpush.bf16.msra.mxu0 %v3629
    %3987 = vmatpush.bf16.msra.mxu0 %v3625
    %3988 = vmatpush.bf16.msra.mxu0 %v3621
    %3989 = vmatpush.bf16.msra.mxu0 %v3617
    %3990 = vmatpush.bf16.msra.mxu0 %v3613
    %3991 = vmatpush.bf16.msra.mxu0 %v3609
    %3992 = vmatmul.bf16.gmra.mxu0 %v2714
    %v3993 = vpop.f32.mrf.mxu0
    %v3994 = vadd.f32 %v3965, %v3993
    %v3995 = vpop.f32.mrf.mxu0
    %v3996 = vadd.f32 %v3967, %v3995
    %3997 = vmatmul.bf16.gmra.mxu0 %v2720
    %v3998 = vpop.f32.mrf.mxu0
    %v3999 = vadd.f32 %v3970, %v3998
    %v4000 = vpop.f32.mrf.mxu0
    %v4001 = vadd.f32 %v3972, %v4000
    %4002 = vmatmul.bf16.gmra.mxu0 %v2726
    %v4003 = vpop.f32.mrf.mxu0
    %v4004 = vadd.f32 %v3975, %v4003
    %v4005 = vpop.f32.mrf.mxu0
    %v4006 = vadd.f32 %v3977, %v4005
    %4007 = vmatmul.bf16.gmra.mxu0 %v2732
    %v4008 = vpop.f32.mrf.mxu0
    %v4009 = vadd.f32 %v3980, %v4008
    %v4010 = vpop.f32.mrf.mxu0
    %v4011 = vadd.f32 %v3982, %v4010
    %4012 = vdwg.mxu0
    %4013 = vmatpush.bf16.msra.mxu0 %v3669
    %4014 = vmatpush.bf16.msra.mxu0 %v3665
    %4015 = vmatpush.bf16.msra.mxu0 %v3661
    %4016 = vmatpush.bf16.msra.mxu0 %v3657
    %4017 = vmatpush.bf16.msra.mxu0 %v3653
    %4018 = vmatpush.bf16.msra.mxu0 %v3649
    %4019 = vmatpush.bf16.msra.mxu0 %v3645
    %4020 = vmatpush.bf16.msra.mxu0 %v3641
    %4021 = vmatmul.bf16.gmra.mxu0 %v2715
    %v4022 = vpop.f32.mrf.mxu0
    %v4023 = vadd.f32 %v3994, %v4022
    %v4024 = vpop.f32.mrf.mxu0
    %v4025 = vadd.f32 %v3996, %v4024
    %4026 = vmatmul.bf16.gmra.mxu0 %v2721
    %v4027 = vpop.f32.mrf.mxu0
    %v4028 = vadd.f32 %v3999, %v4027
    %v4029 = vpop.f32.mrf.mxu0
    %v4030 = vadd.f32 %v4001, %v4029
    %4031 = vmatmul.bf16.gmra.mxu0 %v2727
    %v4032 = vpop.f32.mrf.mxu0
    %v4033 = vadd.f32 %v4004, %v4032
    %v4034 = vpop.f32.mrf.mxu0
    %v4035 = vadd.f32 %v4006, %v4034
    %4036 = vmatmul.bf16.gmra.mxu0 %v2733
    %v4037 = vpop.f32.mrf.mxu0
    %v4038 = vadd.f32 %v4009, %v4037
    %v4039 = vpop.f32.mrf.mxu0
    %v4040 = vadd.f32 %v4011, %v4039
    %4041 = vdwg.mxu0
    %4042 = vmatpush.bf16.msra.mxu0 %v3701
    %4043 = vmatpush.bf16.msra.mxu0 %v3697
    %4044 = vmatpush.bf16.msra.mxu0 %v3693
    %4045 = vmatpush.bf16.msra.mxu0 %v3689
    %4046 = vmatpush.bf16.msra.mxu0 %v3685
    %4047 = vmatpush.bf16.msra.mxu0 %v3681
    %4048 = vmatpush.bf16.msra.mxu0 %v3677
    %4049 = vmatpush.bf16.msra.mxu0 %v3673
    %4050 = vmatmul.bf16.gmra.mxu0 %v2716
    %v4051 = vpop.f32.mrf.mxu0
    %v4052 = vadd.f32 %v4023, %v4051
    %v4053 = vpop.f32.mrf.mxu0
    %v4054 = vadd.f32 %v4025, %v4053
    %4055 = vmatmul.bf16.gmra.mxu0 %v2722
    %v4056 = vpop.f32.mrf.mxu0
    %v4057 = vadd.f32 %v4028, %v4056
    %v4058 = vpop.f32.mrf.mxu0
    %v4059 = vadd.f32 %v4030, %v4058
    %4060 = vmatmul.bf16.gmra.mxu0 %v2728
    %v4061 = vpop.f32.mrf.mxu0
    %v4062 = vadd.f32 %v4033, %v4061
    %v4063 = vpop.f32.mrf.mxu0
    %v4064 = vadd.f32 %v4035, %v4063
    %4065 = vmatmul.bf16.gmra.mxu0 %v2734
    %v4066 = vpop.f32.mrf.mxu0
    %v4067 = vadd.f32 %v4038, %v4066
    %v4068 = vpop.f32.mrf.mxu0
    %v4069 = vadd.f32 %v4040, %v4068
    %4070 = vdwg.mxu0
    %4071 = vmatpush.bf16.msra.mxu0 %v3542
    %4072 = vmatpush.bf16.msra.mxu0 %v3538
    %4073 = vmatpush.bf16.msra.mxu0 %v3534
    %4074 = vmatpush.bf16.msra.mxu0 %v3530
    %4075 = vmatpush.bf16.msra.mxu0 %v3526
    %4076 = vmatpush.bf16.msra.mxu0 %v3522
    %4077 = vmatpush.bf16.msra.mxu0 %v3518
    %4078 = vmatpush.bf16.msra.mxu0 %v3514
    %4079 = vmatmul.bf16.gmra.mxu0 %v2711
    %v4080 = vpop.f32.mrf.mxu0
    %v4081 = vadd.f32 %v2930, %v4080
    %v4082 = vpop.f32.mrf.mxu0
    %v4083 = vadd.f32 %v2930, %v4082
    %4084 = vmatmul.bf16.gmra.mxu0 %v2717
    %v4085 = vpop.f32.mrf.mxu0
    %v4086 = vadd.f32 %v2930, %v4085
    %v4087 = vpop.f32.mrf.mxu0
    %v4088 = vadd.f32 %v2930, %v4087
    %4089 = vmatmul.bf16.gmra.mxu0 %v2723
    %v4090 = vpop.f32.mrf.mxu0
    %v4091 = vadd.f32 %v2930, %v4090
    %v4092 = vpop.f32.mrf.mxu0
    %v4093 = vadd.f32 %v2930, %v4092
    %4094 = vmatmul.bf16.gmra.mxu0 %v2729
    %v4095 = vpop.f32.mrf.mxu0
    %v4096 = vadd.f32 %v2930, %v4095
    %v4097 = vpop.f32.mrf.mxu0
    %v4098 = vadd.f32 %v2930, %v4097
    %4099 = vdwg.mxu0
    %4100 = vmatpush.bf16.msra.mxu0 %v3574
    %4101 = vmatpush.bf16.msra.mxu0 %v3570
    %4102 = vmatpush.bf16.msra.mxu0 %v3566
    %4103 = vmatpush.bf16.msra.mxu0 %v3562
    %4104 = vmatpush.bf16.msra.mxu0 %v3558
    %4105 = vmatpush.bf16.msra.mxu0 %v3554
    %4106 = vmatpush.bf16.msra.mxu0 %v3550
    %4107 = vmatpush.bf16.msra.mxu0 %v3546
    %4108 = vmatmul.bf16.gmra.mxu0 %v2712
    %v4109 = vpop.f32.mrf.mxu0
    %v4110 = vadd.f32 %v4081, %v4109
    %v4111 = vpop.f32.mrf.mxu0
    %v4112 = vadd.f32 %v4083, %v4111
    %4113 = vmatmul.bf16.gmra.mxu0 %v2718
    %v4114 = vpop.f32.mrf.mxu0
    %v4115 = vadd.f32 %v4086, %v4114
    %v4116 = vpop.f32.mrf.mxu0
    %v4117 = vadd.f32 %v4088, %v4116
    %4118 = vmatmul.bf16.gmra.mxu0 %v2724
    %v4119 = vpop.f32.mrf.mxu0
    %v4120 = vadd.f32 %v4091, %v4119
    %v4121 = vpop.f32.mrf.mxu0
    %v4122 = vadd.f32 %v4093, %v4121
    %4123 = vmatmul.bf16.gmra.mxu0 %v2730
    %v4124 = vpop.f32.mrf.mxu0
    %v4125 = vadd.f32 %v4096, %v4124
    %v4126 = vpop.f32.mrf.mxu0
    %v4127 = vadd.f32 %v4098, %v4126
    %4128 = vdwg.mxu0
    %4129 = vmatpush.bf16.msra.mxu0 %v3606
    %4130 = vmatpush.bf16.msra.mxu0 %v3602
    %4131 = vmatpush.bf16.msra.mxu0 %v3598
    %4132 = vmatpush.bf16.msra.mxu0 %v3594
    %4133 = vmatpush.bf16.msra.mxu0 %v3590
    %4134 = vmatpush.bf16.msra.mxu0 %v3586
    %4135 = vmatpush.bf16.msra.mxu0 %v3582
    %4136 = vmatpush.bf16.msra.mxu0 %v3578
    %4137 = vmatmul.bf16.gmra.mxu0 %v2713
    %v4138 = vpop.f32.mrf.mxu0
    %v4139 = vadd.f32 %v4110, %v4138
    %v4140 = vpop.f32.mrf.mxu0
    %v4141 = vadd.f32 %v4112, %v4140
    %4142 = vmatmul.bf16.gmra.mxu0 %v2719
    %v4143 = vpop.f32.mrf.mxu0
    %v4144 = vadd.f32 %v4115, %v4143
    %v4145 = vpop.f32.mrf.mxu0
    %v4146 = vadd.f32 %v4117, %v4145
    %4147 = vmatmul.bf16.gmra.mxu0 %v2725
    %v4148 = vpop.f32.mrf.mxu0
    %v4149 = vadd.f32 %v4120, %v4148
    %v4150 = vpop.f32.mrf.mxu0
    %v4151 = vadd.f32 %v4122, %v4150
    %4152 = vmatmul.bf16.gmra.mxu0 %v2731
    %v4153 = vpop.f32.mrf.mxu0
    %v4154 = vadd.f32 %v4125, %v4153
    %v4155 = vpop.f32.mrf.mxu0
    %v4156 = vadd.f32 %v4127, %v4155
    %4157 = vdwg.mxu0
    %4158 = vmatpush.bf16.msra.mxu0 %v3638
    %4159 = vmatpush.bf16.msra.mxu0 %v3634
    %4160 = vmatpush.bf16.msra.mxu0 %v3630
    %4161 = vmatpush.bf16.msra.mxu0 %v3626
    %4162 = vmatpush.bf16.msra.mxu0 %v3622
    %4163 = vmatpush.bf16.msra.mxu0 %v3618
    %4164 = vmatpush.bf16.msra.mxu0 %v3614
    %4165 = vmatpush.bf16.msra.mxu0 %v3610
    %4166 = vmatmul.bf16.gmra.mxu0 %v2714
    %v4167 = vpop.f32.mrf.mxu0
    %v4168 = vadd.f32 %v4139, %v4167
    %v4169 = vpop.f32.mrf.mxu0
    %v4170 = vadd.f32 %v4141, %v4169
    %4171 = vmatmul.bf16.gmra.mxu0 %v2720
    %v4172 = vpop.f32.mrf.mxu0
    %v4173 = vadd.f32 %v4144, %v4172
    %v4174 = vpop.f32.mrf.mxu0
    %v4175 = vadd.f32 %v4146, %v4174
    %4176 = vmatmul.bf16.gmra.mxu0 %v2726
    %v4177 = vpop.f32.mrf.mxu0
    %v4178 = vadd.f32 %v4149, %v4177
    %v4179 = vpop.f32.mrf.mxu0
    %v4180 = vadd.f32 %v4151, %v4179
    %4181 = vmatmul.bf16.gmra.mxu0 %v2732
    %v4182 = vpop.f32.mrf.mxu0
    %v4183 = vadd.f32 %v4154, %v4182
    %v4184 = vpop.f32.mrf.mxu0
    %v4185 = vadd.f32 %v4156, %v4184
    %4186 = vdwg.mxu0
    %4187 = vmatpush.bf16.msra.mxu0 %v3670
    %4188 = vmatpush.bf16.msra.mxu0 %v3666
    %4189 = vmatpush.bf16.msra.mxu0 %v3662
    %4190 = vmatpush.bf16.msra.mxu0 %v3658
    %4191 = vmatpush.bf16.msra.mxu0 %v3654
    %4192 = vmatpush.bf16.msra.mxu0 %v3650
    %4193 = vmatpush.bf16.msra.mxu0 %v3646
    %4194 = vmatpush.bf16.msra.mxu0 %v3642
    %4195 = vmatmul.bf16.gmra.mxu0 %v2715
    %v4196 = vpop.f32.mrf.mxu0
    %v4197 = vadd.f32 %v4168, %v4196
    %v4198 = vpop.f32.mrf.mxu0
    %v4199 = vadd.f32 %v4170, %v4198
    %4200 = vmatmul.bf16.gmra.mxu0 %v2721
    %v4201 = vpop.f32.mrf.mxu0
    %v4202 = vadd.f32 %v4173, %v4201
    %v4203 = vpop.f32.mrf.mxu0
    %v4204 = vadd.f32 %v4175, %v4203
    %4205 = vmatmul.bf16.gmra.mxu0 %v2727
    %v4206 = vpop.f32.mrf.mxu0
    %v4207 = vadd.f32 %v4178, %v4206
    %v4208 = vpop.f32.mrf.mxu0
    %v4209 = vadd.f32 %v4180, %v4208
    %4210 = vmatmul.bf16.gmra.mxu0 %v2733
    %v4211 = vpop.f32.mrf.mxu0
    %v4212 = vadd.f32 %v4183, %v4211
    %v4213 = vpop.f32.mrf.mxu0
    %v4214 = vadd.f32 %v4185, %v4213
    %4215 = vdwg.mxu0
    %4216 = vmatpush.bf16.msra.mxu0 %v3702
    %4217 = vmatpush.bf16.msra.mxu0 %v3698
    %4218 = vmatpush.bf16.msra.mxu0 %v3694
    %4219 = vmatpush.bf16.msra.mxu0 %v3690
    %4220 = vmatpush.bf16.msra.mxu0 %v3686
    %4221 = vmatpush.bf16.msra.mxu0 %v3682
    %4222 = vmatpush.bf16.msra.mxu0 %v3678
    %4223 = vmatpush.bf16.msra.mxu0 %v3674
    %4224 = vmatmul.bf16.gmra.mxu0 %v2716
    %v4225 = vpop.f32.mrf.mxu0
    %v4226 = vadd.f32 %v4197, %v4225
    %v4227 = vpop.f32.mrf.mxu0
    %v4228 = vadd.f32 %v4199, %v4227
    %4229 = vmatmul.bf16.gmra.mxu0 %v2722
    %v4230 = vpop.f32.mrf.mxu0
    %v4231 = vadd.f32 %v4202, %v4230
    %v4232 = vpop.f32.mrf.mxu0
    %v4233 = vadd.f32 %v4204, %v4232
    %4234 = vmatmul.bf16.gmra.mxu0 %v2728
    %v4235 = vpop.f32.mrf.mxu0
    %v4236 = vadd.f32 %v4207, %v4235
    %v4237 = vpop.f32.mrf.mxu0
    %v4238 = vadd.f32 %v4209, %v4237
    %4239 = vmatmul.bf16.gmra.mxu0 %v2734
    %v4240 = vpop.f32.mrf.mxu0
    %v4241 = vadd.f32 %v4212, %v4240
    %v4242 = vpop.f32.mrf.mxu0
    %v4243 = vadd.f32 %v4214, %v4242
    %4244 = vdwg.mxu0
    %4245 = vmatpush.bf16.msra.mxu0 %v3543
    %4246 = vmatpush.bf16.msra.mxu0 %v3539
    %4247 = vmatpush.bf16.msra.mxu0 %v3535
    %4248 = vmatpush.bf16.msra.mxu0 %v3531
    %4249 = vmatpush.bf16.msra.mxu0 %v3527
    %4250 = vmatpush.bf16.msra.mxu0 %v3523
    %4251 = vmatpush.bf16.msra.mxu0 %v3519
    %4252 = vmatpush.bf16.msra.mxu0 %v3515
    %4253 = vmatmul.bf16.gmra.mxu0 %v2711
    %v4254 = vpop.f32.mrf.mxu0
    %v4255 = vadd.f32 %v2931, %v4254
    %v4256 = vpop.f32.mrf.mxu0
    %v4257 = vadd.f32 %v2931, %v4256
    %4258 = vmatmul.bf16.gmra.mxu0 %v2717
    %v4259 = vpop.f32.mrf.mxu0
    %v4260 = vadd.f32 %v2931, %v4259
    %v4261 = vpop.f32.mrf.mxu0
    %v4262 = vadd.f32 %v2931, %v4261
    %4263 = vmatmul.bf16.gmra.mxu0 %v2723
    %v4264 = vpop.f32.mrf.mxu0
    %v4265 = vadd.f32 %v2931, %v4264
    %v4266 = vpop.f32.mrf.mxu0
    %v4267 = vadd.f32 %v2931, %v4266
    %4268 = vmatmul.bf16.gmra.mxu0 %v2729
    %v4269 = vpop.f32.mrf.mxu0
    %v4270 = vadd.f32 %v2931, %v4269
    %v4271 = vpop.f32.mrf.mxu0
    %v4272 = vadd.f32 %v2931, %v4271
    %4273 = vdwg.mxu0
    %4274 = vmatpush.bf16.msra.mxu0 %v3575
    %4275 = vmatpush.bf16.msra.mxu0 %v3571
    %4276 = vmatpush.bf16.msra.mxu0 %v3567
    %4277 = vmatpush.bf16.msra.mxu0 %v3563
    %4278 = vmatpush.bf16.msra.mxu0 %v3559
    %4279 = vmatpush.bf16.msra.mxu0 %v3555
    %4280 = vmatpush.bf16.msra.mxu0 %v3551
    %4281 = vmatpush.bf16.msra.mxu0 %v3547
    %4282 = vmatmul.bf16.gmra.mxu0 %v2712
    %v4283 = vpop.f32.mrf.mxu0
    %v4284 = vadd.f32 %v4255, %v4283
    %v4285 = vpop.f32.mrf.mxu0
    %v4286 = vadd.f32 %v4257, %v4285
    %4287 = vmatmul.bf16.gmra.mxu0 %v2718
    %v4288 = vpop.f32.mrf.mxu0
    %v4289 = vadd.f32 %v4260, %v4288
    %v4290 = vpop.f32.mrf.mxu0
    %v4291 = vadd.f32 %v4262, %v4290
    %4292 = vmatmul.bf16.gmra.mxu0 %v2724
    %v4293 = vpop.f32.mrf.mxu0
    %v4294 = vadd.f32 %v4265, %v4293
    %v4295 = vpop.f32.mrf.mxu0
    %v4296 = vadd.f32 %v4267, %v4295
    %4297 = vmatmul.bf16.gmra.mxu0 %v2730
    %v4298 = vpop.f32.mrf.mxu0
    %v4299 = vadd.f32 %v4270, %v4298
    %v4300 = vpop.f32.mrf.mxu0
    %v4301 = vadd.f32 %v4272, %v4300
    %4302 = vdwg.mxu0
    %4303 = vmatpush.bf16.msra.mxu0 %v3607
    %4304 = vmatpush.bf16.msra.mxu0 %v3603
    %4305 = vmatpush.bf16.msra.mxu0 %v3599
    %4306 = vmatpush.bf16.msra.mxu0 %v3595
    %4307 = vmatpush.bf16.msra.mxu0 %v3591
    %4308 = vmatpush.bf16.msra.mxu0 %v3587
    %4309 = vmatpush.bf16.msra.mxu0 %v3583
    %4310 = vmatpush.bf16.msra.mxu0 %v3579
    %4311 = vmatmul.bf16.gmra.mxu0 %v2713
    %v4312 = vpop.f32.mrf.mxu0
    %v4313 = vadd.f32 %v4284, %v4312
    %v4314 = vpop.f32.mrf.mxu0
    %v4315 = vadd.f32 %v4286, %v4314
    %4316 = vmatmul.bf16.gmra.mxu0 %v2719
    %v4317 = vpop.f32.mrf.mxu0
    %v4318 = vadd.f32 %v4289, %v4317
    %v4319 = vpop.f32.mrf.mxu0
    %v4320 = vadd.f32 %v4291, %v4319
    %4321 = vmatmul.bf16.gmra.mxu0 %v2725
    %v4322 = vpop.f32.mrf.mxu0
    %v4323 = vadd.f32 %v4294, %v4322
    %v4324 = vpop.f32.mrf.mxu0
    %v4325 = vadd.f32 %v4296, %v4324
    %4326 = vmatmul.bf16.gmra.mxu0 %v2731
    %v4327 = vpop.f32.mrf.mxu0
    %v4328 = vadd.f32 %v4299, %v4327
    %v4329 = vpop.f32.mrf.mxu0
    %v4330 = vadd.f32 %v4301, %v4329
    %4331 = vdwg.mxu0
    %4332 = vmatpush.bf16.msra.mxu0 %v3639
    %4333 = vmatpush.bf16.msra.mxu0 %v3635
    %4334 = vmatpush.bf16.msra.mxu0 %v3631
    %4335 = vmatpush.bf16.msra.mxu0 %v3627
    %4336 = vmatpush.bf16.msra.mxu0 %v3623
    %4337 = vmatpush.bf16.msra.mxu0 %v3619
    %4338 = vmatpush.bf16.msra.mxu0 %v3615
    %4339 = vmatpush.bf16.msra.mxu0 %v3611
    %4340 = vmatmul.bf16.gmra.mxu0 %v2714
    %v4341 = vpop.f32.mrf.mxu0
    %v4342 = vadd.f32 %v4313, %v4341
    %v4343 = vpop.f32.mrf.mxu0
    %v4344 = vadd.f32 %v4315, %v4343
    %4345 = vmatmul.bf16.gmra.mxu0 %v2720
    %v4346 = vpop.f32.mrf.mxu0
    %v4347 = vadd.f32 %v4318, %v4346
    %v4348 = vpop.f32.mrf.mxu0
    %v4349 = vadd.f32 %v4320, %v4348
    %4350 = vmatmul.bf16.gmra.mxu0 %v2726
    %v4351 = vpop.f32.mrf.mxu0
    %v4352 = vadd.f32 %v4323, %v4351
    %v4353 = vpop.f32.mrf.mxu0
    %v4354 = vadd.f32 %v4325, %v4353
    %4355 = vmatmul.bf16.gmra.mxu0 %v2732
    %v4356 = vpop.f32.mrf.mxu0
    %v4357 = vadd.f32 %v4328, %v4356
    %v4358 = vpop.f32.mrf.mxu0
    %v4359 = vadd.f32 %v4330, %v4358
    %4360 = vdwg.mxu0
    %4361 = vmatpush.bf16.msra.mxu0 %v3671
    %4362 = vmatpush.bf16.msra.mxu0 %v3667
    %4363 = vmatpush.bf16.msra.mxu0 %v3663
    %4364 = vmatpush.bf16.msra.mxu0 %v3659
    %4365 = vmatpush.bf16.msra.mxu0 %v3655
    %4366 = vmatpush.bf16.msra.mxu0 %v3651
    %4367 = vmatpush.bf16.msra.mxu0 %v3647
    %4368 = vmatpush.bf16.msra.mxu0 %v3643
    %4369 = vmatmul.bf16.gmra.mxu0 %v2715
    %v4370 = vpop.f32.mrf.mxu0
    %v4371 = vadd.f32 %v4342, %v4370
    %v4372 = vpop.f32.mrf.mxu0
    %v4373 = vadd.f32 %v4344, %v4372
    %4374 = vmatmul.bf16.gmra.mxu0 %v2721
    %v4375 = vpop.f32.mrf.mxu0
    %v4376 = vadd.f32 %v4347, %v4375
    %v4377 = vpop.f32.mrf.mxu0
    %v4378 = vadd.f32 %v4349, %v4377
    %4379 = vmatmul.bf16.gmra.mxu0 %v2727
    %v4380 = vpop.f32.mrf.mxu0
    %v4381 = vadd.f32 %v4352, %v4380
    %v4382 = vpop.f32.mrf.mxu0
    %v4383 = vadd.f32 %v4354, %v4382
    %4384 = vmatmul.bf16.gmra.mxu0 %v2733
    %v4385 = vpop.f32.mrf.mxu0
    %v4386 = vadd.f32 %v4357, %v4385
    %v4387 = vpop.f32.mrf.mxu0
    %v4388 = vadd.f32 %v4359, %v4387
    %4389 = vdwg.mxu0
    %4390 = vmatpush.bf16.msra.mxu0 %v3703
    %4391 = vmatpush.bf16.msra.mxu0 %v3699
    %4392 = vmatpush.bf16.msra.mxu0 %v3695
    %4393 = vmatpush.bf16.msra.mxu0 %v3691
    %4394 = vmatpush.bf16.msra.mxu0 %v3687
    %4395 = vmatpush.bf16.msra.mxu0 %v3683
    %4396 = vmatpush.bf16.msra.mxu0 %v3679
    %4397 = vmatpush.bf16.msra.mxu0 %v3675
    %4398 = vmatmul.bf16.gmra.mxu0 %v2716
    %v4399 = vpop.f32.mrf.mxu0
    %v4400 = vadd.f32 %v4371, %v4399
    %v4401 = vpop.f32.mrf.mxu0
    %v4402 = vadd.f32 %v4373, %v4401
    %4403 = vmatmul.bf16.gmra.mxu0 %v2722
    %v4404 = vpop.f32.mrf.mxu0
    %v4405 = vadd.f32 %v4376, %v4404
    %v4406 = vpop.f32.mrf.mxu0
    %v4407 = vadd.f32 %v4378, %v4406
    %4408 = vmatmul.bf16.gmra.mxu0 %v2728
    %v4409 = vpop.f32.mrf.mxu0
    %v4410 = vadd.f32 %v4381, %v4409
    %v4411 = vpop.f32.mrf.mxu0
    %v4412 = vadd.f32 %v4383, %v4411
    %4413 = vmatmul.bf16.gmra.mxu0 %v2734
    %v4414 = vpop.f32.mrf.mxu0
    %v4415 = vadd.f32 %v4386, %v4414
    %v4416 = vpop.f32.mrf.mxu0
    %v4417 = vadd.f32 %v4388, %v4416
    %4418 = vdwg.mxu0
    %4419 = vmatpush.bf16.msra.mxu0 %v3544
    %4420 = vmatpush.bf16.msra.mxu0 %v3540
    %4421 = vmatpush.bf16.msra.mxu0 %v3536
    %4422 = vmatpush.bf16.msra.mxu0 %v3532
    %4423 = vmatpush.bf16.msra.mxu0 %v3528
    %4424 = vmatpush.bf16.msra.mxu0 %v3524
    %4425 = vmatpush.bf16.msra.mxu0 %v3520
    %4426 = vmatpush.bf16.msra.mxu0 %v3516
    %4427 = vmatmul.bf16.gmra.mxu0 %v2711
    %v4428 = vpop.f32.mrf.mxu0
    %v4429 = vadd.f32 %v2932, %v4428
    %v4430 = vpop.f32.mrf.mxu0
    %v4431 = vadd.f32 %v2932, %v4430
    %4432 = vmatmul.bf16.gmra.mxu0 %v2717
    %v4433 = vpop.f32.mrf.mxu0
    %v4434 = vadd.f32 %v2932, %v4433
    %v4435 = vpop.f32.mrf.mxu0
    %v4436 = vadd.f32 %v2932, %v4435
    %4437 = vmatmul.bf16.gmra.mxu0 %v2723
    %v4438 = vpop.f32.mrf.mxu0
    %v4439 = vadd.f32 %v2932, %v4438
    %v4440 = vpop.f32.mrf.mxu0
    %v4441 = vadd.f32 %v2932, %v4440
    %4442 = vmatmul.bf16.gmra.mxu0 %v2729
    %v4443 = vpop.f32.mrf.mxu0
    %v4444 = vadd.f32 %v2932, %v4443
    %v4445 = vpop.f32.mrf.mxu0
    %v4446 = vadd.f32 %v2932, %v4445
    %4447 = vdwg.mxu0
    %4448 = vmatpush.bf16.msra.mxu0 %v3576
    %4449 = vmatpush.bf16.msra.mxu0 %v3572
    %4450 = vmatpush.bf16.msra.mxu0 %v3568
    %4451 = vmatpush.bf16.msra.mxu0 %v3564
    %4452 = vmatpush.bf16.msra.mxu0 %v3560
    %4453 = vmatpush.bf16.msra.mxu0 %v3556
    %4454 = vmatpush.bf16.msra.mxu0 %v3552
    %4455 = vmatpush.bf16.msra.mxu0 %v3548
    %4456 = vmatmul.bf16.gmra.mxu0 %v2712
    %v4457 = vpop.f32.mrf.mxu0
    %v4458 = vadd.f32 %v4429, %v4457
    %v4459 = vpop.f32.mrf.mxu0
    %v4460 = vadd.f32 %v4431, %v4459
    %4461 = vmatmul.bf16.gmra.mxu0 %v2718
    %v4462 = vpop.f32.mrf.mxu0
    %v4463 = vadd.f32 %v4434, %v4462
    %v4464 = vpop.f32.mrf.mxu0
    %v4465 = vadd.f32 %v4436, %v4464
    %4466 = vmatmul.bf16.gmra.mxu0 %v2724
    %v4467 = vpop.f32.mrf.mxu0
    %v4468 = vadd.f32 %v4439, %v4467
    %v4469 = vpop.f32.mrf.mxu0
    %v4470 = vadd.f32 %v4441, %v4469
    %4471 = vmatmul.bf16.gmra.mxu0 %v2730
    %v4472 = vpop.f32.mrf.mxu0
    %v4473 = vadd.f32 %v4444, %v4472
    %v4474 = vpop.f32.mrf.mxu0
    %v4475 = vadd.f32 %v4446, %v4474
    %4476 = vdwg.mxu0
    %4477 = vmatpush.bf16.msra.mxu0 %v3608
    %4478 = vmatpush.bf16.msra.mxu0 %v3604
    %4479 = vmatpush.bf16.msra.mxu0 %v3600
    %4480 = vmatpush.bf16.msra.mxu0 %v3596
    %4481 = vmatpush.bf16.msra.mxu0 %v3592
    %4482 = vmatpush.bf16.msra.mxu0 %v3588
    %4483 = vmatpush.bf16.msra.mxu0 %v3584
    %4484 = vmatpush.bf16.msra.mxu0 %v3580
    %4485 = vmatmul.bf16.gmra.mxu0 %v2713
    %v4486 = vpop.f32.mrf.mxu0
    %v4487 = vadd.f32 %v4458, %v4486
    %v4488 = vpop.f32.mrf.mxu0
    %v4489 = vadd.f32 %v4460, %v4488
    %4490 = vmatmul.bf16.gmra.mxu0 %v2719
    %v4491 = vpop.f32.mrf.mxu0
    %v4492 = vadd.f32 %v4463, %v4491
    %v4493 = vpop.f32.mrf.mxu0
    %v4494 = vadd.f32 %v4465, %v4493
    %4495 = vmatmul.bf16.gmra.mxu0 %v2725
    %v4496 = vpop.f32.mrf.mxu0
    %v4497 = vadd.f32 %v4468, %v4496
    %v4498 = vpop.f32.mrf.mxu0
    %v4499 = vadd.f32 %v4470, %v4498
    %4500 = vmatmul.bf16.gmra.mxu0 %v2731
    %v4501 = vpop.f32.mrf.mxu0
    %v4502 = vadd.f32 %v4473, %v4501
    %v4503 = vpop.f32.mrf.mxu0
    %v4504 = vadd.f32 %v4475, %v4503
    %4505 = vdwg.mxu0
    %4506 = vmatpush.bf16.msra.mxu0 %v3640
    %4507 = vmatpush.bf16.msra.mxu0 %v3636
    %4508 = vmatpush.bf16.msra.mxu0 %v3632
    %4509 = vmatpush.bf16.msra.mxu0 %v3628
    %4510 = vmatpush.bf16.msra.mxu0 %v3624
    %4511 = vmatpush.bf16.msra.mxu0 %v3620
    %4512 = vmatpush.bf16.msra.mxu0 %v3616
    %4513 = vmatpush.bf16.msra.mxu0 %v3612
    %4514 = vmatmul.bf16.gmra.mxu0 %v2714
    %v4515 = vpop.f32.mrf.mxu0
    %v4516 = vadd.f32 %v4487, %v4515
    %v4517 = vpop.f32.mrf.mxu0
    %v4518 = vadd.f32 %v4489, %v4517
    %4519 = vmatmul.bf16.gmra.mxu0 %v2720
    %v4520 = vpop.f32.mrf.mxu0
    %v4521 = vadd.f32 %v4492, %v4520
    %v4522 = vpop.f32.mrf.mxu0
    %v4523 = vadd.f32 %v4494, %v4522
    %4524 = vmatmul.bf16.gmra.mxu0 %v2726
    %v4525 = vpop.f32.mrf.mxu0
    %v4526 = vadd.f32 %v4497, %v4525
    %v4527 = vpop.f32.mrf.mxu0
    %v4528 = vadd.f32 %v4499, %v4527
    %4529 = vmatmul.bf16.gmra.mxu0 %v2732
    %v4530 = vpop.f32.mrf.mxu0
    %v4531 = vadd.f32 %v4502, %v4530
    %v4532 = vpop.f32.mrf.mxu0
    %v4533 = vadd.f32 %v4504, %v4532
    %4534 = vdwg.mxu0
    %4535 = vmatpush.bf16.msra.mxu0 %v3672
    %4536 = vmatpush.bf16.msra.mxu0 %v3668
    %4537 = vmatpush.bf16.msra.mxu0 %v3664
    %4538 = vmatpush.bf16.msra.mxu0 %v3660
    %4539 = vmatpush.bf16.msra.mxu0 %v3656
    %4540 = vmatpush.bf16.msra.mxu0 %v3652
    %4541 = vmatpush.bf16.msra.mxu0 %v3648
    %4542 = vmatpush.bf16.msra.mxu0 %v3644
    %4543 = vmatmul.bf16.gmra.mxu0 %v2715
    %v4544 = vpop.f32.mrf.mxu0
    %v4545 = vadd.f32 %v4516, %v4544
    %v4546 = vpop.f32.mrf.mxu0
    %v4547 = vadd.f32 %v4518, %v4546
    %4548 = vmatmul.bf16.gmra.mxu0 %v2721
    %v4549 = vpop.f32.mrf.mxu0
    %v4550 = vadd.f32 %v4521, %v4549
    %v4551 = vpop.f32.mrf.mxu0
    %v4552 = vadd.f32 %v4523, %v4551
    %4553 = vmatmul.bf16.gmra.mxu0 %v2727
    %v4554 = vpop.f32.mrf.mxu0
    %v4555 = vadd.f32 %v4526, %v4554
    %v4556 = vpop.f32.mrf.mxu0
    %v4557 = vadd.f32 %v4528, %v4556
    %4558 = vmatmul.bf16.gmra.mxu0 %v2733
    %v4559 = vpop.f32.mrf.mxu0
    %v4560 = vadd.f32 %v4531, %v4559
    %v4561 = vpop.f32.mrf.mxu0
    %v4562 = vadd.f32 %v4533, %v4561
    %4563 = vdwg.mxu0
    %4564 = vmatpush.bf16.msra.mxu0 %v3704
    %4565 = vmatpush.bf16.msra.mxu0 %v3700
    %4566 = vmatpush.bf16.msra.mxu0 %v3696
    %4567 = vmatpush.bf16.msra.mxu0 %v3692
    %4568 = vmatpush.bf16.msra.mxu0 %v3688
    %4569 = vmatpush.bf16.msra.mxu0 %v3684
    %4570 = vmatpush.bf16.msra.mxu0 %v3680
    %4571 = vmatpush.bf16.msra.mxu0 %v3676
    %4572 = vmatmul.bf16.gmra.mxu0 %v2716
    %v4573 = vpop.f32.mrf.mxu0
    %v4574 = vadd.f32 %v4545, %v4573
    %v4575 = vpop.f32.mrf.mxu0
    %v4576 = vadd.f32 %v4547, %v4575
    %4577 = vmatmul.bf16.gmra.mxu0 %v2722
    %v4578 = vpop.f32.mrf.mxu0
    %v4579 = vadd.f32 %v4550, %v4578
    %v4580 = vpop.f32.mrf.mxu0
    %v4581 = vadd.f32 %v4552, %v4580
    %4582 = vmatmul.bf16.gmra.mxu0 %v2728
    %v4583 = vpop.f32.mrf.mxu0
    %v4584 = vadd.f32 %v4555, %v4583
    %v4585 = vpop.f32.mrf.mxu0
    %v4586 = vadd.f32 %v4557, %v4585
    %4587 = vmatmul.bf16.gmra.mxu0 %v2734
    %v4588 = vpop.f32.mrf.mxu0
    %v4589 = vadd.f32 %v4560, %v4588
    %v4590 = vpop.f32.mrf.mxu0
    %v4591 = vadd.f32 %v4562, %v4590
    %4592 = vdwg.mxu0
    %v4593 = vmax.f32 %v4052, %v4400
    %v4594 = vmax.f32 %v4226, %v4574
    %v4595 = vmax.f32 %v4054, %v4402
    %v4596 = vmax.f32 %v4228, %v4576
    %v4597 = vmax.f32 %v4057, %v4405
    %v4598 = vmax.f32 %v4231, %v4579
    %v4599 = vmax.f32 %v4059, %v4407
    %v4600 = vmax.f32 %v4233, %v4581
    %v4601 = vmax.f32 %v4062, %v4410
    %v4602 = vmax.f32 %v4236, %v4584
    %v4603 = vmax.f32 %v4064, %v4412
    %v4604 = vmax.f32 %v4238, %v4586
    %v4605 = vmax.f32 %v4067, %v4415
    %v4606 = vmax.f32 %v4241, %v4589
    %v4607 = vmax.f32 %v4069, %v4417
    %v4608 = vmax.f32 %v4243, %v4591
    %v4625 = vrot.slane %v4594, 6
    %v4626 = vrot.slane %v4596, 6
    %v4627 = vrot.slane %v4598, 6
    %v4628 = vrot.slane %v4600, 6
    %v4629 = vrot.slane %v4602, 6
    %v4630 = vrot.slane %v4604, 6
    %v4631 = vrot.slane %v4606, 6
    %v4632 = vrot.slane %v4608, 6
    %v4633 = vsel %vm731, %v4593, %v4625
    %v4634 = vsel %vm733, %v4593, %v4625
    %v4635 = vrot.slane %v4634, 2
    %v4636 = vsel %vm736, %v4593, %v4625
    %v4637 = vrot.slane %v4636, 4
    %v4638 = vsel %vm739, %v4625, %v4593
    %v4639 = vrot.slane %v4638, 6
    %v4640 = vsel %vm731, %v4595, %v4626
    %v4641 = vsel %vm733, %v4595, %v4626
    %v4642 = vrot.slane %v4641, 2
    %v4643 = vsel %vm736, %v4595, %v4626
    %v4644 = vrot.slane %v4643, 4
    %v4645 = vsel %vm739, %v4626, %v4595
    %v4646 = vrot.slane %v4645, 6
    %v4647 = vsel %vm731, %v4597, %v4627
    %v4648 = vsel %vm733, %v4597, %v4627
    %v4649 = vrot.slane %v4648, 2
    %v4650 = vsel %vm736, %v4597, %v4627
    %v4651 = vrot.slane %v4650, 4
    %v4652 = vsel %vm739, %v4627, %v4597
    %v4653 = vrot.slane %v4652, 6
    %v4654 = vsel %vm731, %v4599, %v4628
    %v4655 = vsel %vm733, %v4599, %v4628
    %v4656 = vrot.slane %v4655, 2
    %v4657 = vsel %vm736, %v4599, %v4628
    %v4658 = vrot.slane %v4657, 4
    %v4659 = vsel %vm739, %v4628, %v4599
    %v4660 = vrot.slane %v4659, 6
    %v4661 = vsel %vm731, %v4601, %v4629
    %v4662 = vsel %vm733, %v4601, %v4629
    %v4663 = vrot.slane %v4662, 2
    %v4664 = vsel %vm736, %v4601, %v4629
    %v4665 = vrot.slane %v4664, 4
    %v4666 = vsel %vm739, %v4629, %v4601
    %v4667 = vrot.slane %v4666, 6
    %v4668 = vsel %vm731, %v4603, %v4630
    %v4669 = vsel %vm733, %v4603, %v4630
    %v4670 = vrot.slane %v4669, 2
    %v4671 = vsel %vm736, %v4603, %v4630
    %v4672 = vrot.slane %v4671, 4
    %v4673 = vsel %vm739, %v4630, %v4603
    %v4674 = vrot.slane %v4673, 6
    %v4675 = vsel %vm731, %v4605, %v4631
    %v4676 = vsel %vm733, %v4605, %v4631
    %v4677 = vrot.slane %v4676, 2
    %v4678 = vsel %vm736, %v4605, %v4631
    %v4679 = vrot.slane %v4678, 4
    %v4680 = vsel %vm739, %v4631, %v4605
    %v4681 = vrot.slane %v4680, 6
    %v4682 = vsel %vm731, %v4607, %v4632
    %v4683 = vsel %vm733, %v4607, %v4632
    %v4684 = vrot.slane %v4683, 2
    %v4685 = vsel %vm736, %v4607, %v4632
    %v4686 = vrot.slane %v4685, 4
    %v4687 = vsel %vm739, %v4632, %v4607
    %v4688 = vrot.slane %v4687, 6
    %4689 = vst [vmem:[#allocation1] ss:$4 sm:$0xff] %v4633
    %v4690 = vld.sshfl [vmem:[#allocation1] sm:$0xff pattern:$0x73625140]
    %v4691 = vld.sshfl [vmem:[#allocation1 + $0x8] sm:$0xff pattern:$0x73625140]
    %s4692 = scalar_lea.vmem [#allocation1], 32
    %4693 = vst [vmem:[%s4692] ss:$4 sm:$0xff] %v4635
    %v4694 = vld.sshfl [vmem:[#allocation1 + $0x20] sm:$0xff pattern:$0x73625140]
    %v4695 = vld.sshfl [vmem:[#allocation1 + $0x28] sm:$0xff pattern:$0x73625140]
    %4696 = vst [vmem:[#allocation1] ss:$4 sm:$0xff] %v4637
    %v4697 = vld.sshfl [vmem:[#allocation1] sm:$0xff pattern:$0x73625140]
    %v4698 = vld.sshfl [vmem:[#allocation1 + $0x8] sm:$0xff pattern:$0x73625140]
    %4699 = vst [vmem:[%s4692] ss:$4 sm:$0xff] %v4639
    %v4700 = vld.sshfl [vmem:[#allocation1 + $0x20] sm:$0xff pattern:$0x73625140]
    %v4701 = vld.sshfl [vmem:[#allocation1 + $0x28] sm:$0xff pattern:$0x73625140]
    %4702 = vst [vmem:[#allocation1] ss:$4 sm:$0xff] %v4640
    %v4703 = vld.sshfl [vmem:[#allocation1] sm:$0xff pattern:$0x73625140]
    %v4704 = vld.sshfl [vmem:[#allocation1 + $0x8] sm:$0xff pattern:$0x73625140]
    %4705 = vst [vmem:[%s4692] ss:$4 sm:$0xff] %v4642
    %v4706 = vld.sshfl [vmem:[#allocation1 + $0x20] sm:$0xff pattern:$0x73625140]
    %v4707 = vld.sshfl [vmem:[#allocation1 + $0x28] sm:$0xff pattern:$0x73625140]
    %4708 = vst [vmem:[#allocation1] ss:$4 sm:$0xff] %v4644
    %v4709 = vld.sshfl [vmem:[#allocation1] sm:$0xff pattern:$0x73625140]
    %v4710 = vld.sshfl [vmem:[#allocation1 + $0x8] sm:$0xff pattern:$0x73625140]
    %4711 = vst [vmem:[%s4692] ss:$4 sm:$0xff] %v4646
    %v4712 = vld.sshfl [vmem:[#allocation1 + $0x20] sm:$0xff pattern:$0x73625140]
    %v4713 = vld.sshfl [vmem:[#allocation1 + $0x28] sm:$0xff pattern:$0x73625140]
    %4714 = vst [vmem:[#allocation1] ss:$4 sm:$0xff] %v4647
    %v4715 = vld.sshfl [vmem:[#allocation1] sm:$0xff pattern:$0x73625140]
    %v4716 = vld.sshfl [vmem:[#allocation1 + $0x8] sm:$0xff pattern:$0x73625140]
    %4717 = vst [vmem:[%s4692] ss:$4 sm:$0xff] %v4649
    %v4718 = vld.sshfl [vmem:[#allocation1 + $0x20] sm:$0xff pattern:$0x73625140]
    %v4719 = vld.sshfl [vmem:[#allocation1 + $0x28] sm:$0xff pattern:$0x73625140]
    %4720 = vst [vmem:[#allocation1] ss:$4 sm:$0xff] %v4651
    %v4721 = vld.sshfl [vmem:[#allocation1] sm:$0xff pattern:$0x73625140]
    %v4722 = vld.sshfl [vmem:[#allocation1 + $0x8] sm:$0xff pattern:$0x73625140]
    %4723 = vst [vmem:[%s4692] ss:$4 sm:$0xff] %v4653
    %v4724 = vld.sshfl [vmem:[#allocation1 + $0x20] sm:$0xff pattern:$0x73625140]
    %v4725 = vld.sshfl [vmem:[#allocation1 + $0x28] sm:$0xff pattern:$0x73625140]
    %4726 = vst [vmem:[#allocation1] ss:$4 sm:$0xff] %v4654
    %v4727 = vld.sshfl [vmem:[#allocation1] sm:$0xff pattern:$0x73625140]
    %v4728 = vld.sshfl [vmem:[#allocation1 + $0x8] sm:$0xff pattern:$0x73625140]
    %4729 = vst [vmem:[%s4692] ss:$4 sm:$0xff] %v4656
    %v4730 = vld.sshfl [vmem:[#allocation1 + $0x20] sm:$0xff pattern:$0x73625140]
    %v4731 = vld.sshfl [vmem:[#allocation1 + $0x28] sm:$0xff pattern:$0x73625140]
    %4732 = vst [vmem:[#allocation1] ss:$4 sm:$0xff] %v4658
    %v4733 = vld.sshfl [vmem:[#allocation1] sm:$0xff pattern:$0x73625140]
    %v4734 = vld.sshfl [vmem:[#allocation1 + $0x8] sm:$0xff pattern:$0x73625140]
    %4735 = vst [vmem:[%s4692] ss:$4 sm:$0xff] %v4660
    %v4736 = vld.sshfl [vmem:[#allocation1 + $0x20] sm:$0xff pattern:$0x73625140]
    %v4737 = vld.sshfl [vmem:[#allocation1 + $0x28] sm:$0xff pattern:$0x73625140]
    %4738 = vst [vmem:[#allocation1] ss:$4 sm:$0xff] %v4661
    %v4739 = vld.sshfl [vmem:[#allocation1] sm:$0xff pattern:$0x73625140]
    %v4740 = vld.sshfl [vmem:[#allocation1 + $0x8] sm:$0xff pattern:$0x73625140]
    %4741 = vst [vmem:[%s4692] ss:$4 sm:$0xff] %v4663
    %v4742 = vld.sshfl [vmem:[#allocation1 + $0x20] sm:$0xff pattern:$0x73625140]
    %v4743 = vld.sshfl [vmem:[#allocation1 + $0x28] sm:$0xff pattern:$0x73625140]
    %4744 = vst [vmem:[#allocation1] ss:$4 sm:$0xff] %v4665
    %v4745 = vld.sshfl [vmem:[#allocation1] sm:$0xff pattern:$0x73625140]
    %v4746 = vld.sshfl [vmem:[#allocation1 + $0x8] sm:$0xff pattern:$0x73625140]
    %4747 = vst [vmem:[%s4692] ss:$4 sm:$0xff] %v4667
    %v4748 = vld.sshfl [vmem:[#allocation1 + $0x20] sm:$0xff pattern:$0x73625140]
    %v4749 = vld.sshfl [vmem:[#allocation1 + $0x28] sm:$0xff pattern:$0x73625140]
    %4750 = vst [vmem:[#allocation1] ss:$4 sm:$0xff] %v4668
    %v4751 = vld.sshfl [vmem:[#allocation1] sm:$0xff pattern:$0x73625140]
    %v4752 = vld.sshfl [vmem:[#allocation1 + $0x8] sm:$0xff pattern:$0x73625140]
    %4753 = vst [vmem:[%s4692] ss:$4 sm:$0xff] %v4670
    %v4754 = vld.sshfl [vmem:[#allocation1 + $0x20] sm:$0xff pattern:$0x73625140]
    %v4755 = vld.sshfl [vmem:[#allocation1 + $0x28] sm:$0xff pattern:$0x73625140]
    %4756 = vst [vmem:[#allocation1] ss:$4 sm:$0xff] %v4672
    %v4757 = vld.sshfl [vmem:[#allocation1] sm:$0xff pattern:$0x73625140]
    %v4758 = vld.sshfl [vmem:[#allocation1 + $0x8] sm:$0xff pattern:$0x73625140]
    %4759 = vst [vmem:[%s4692] ss:$4 sm:$0xff] %v4674
    %v4760 = vld.sshfl [vmem:[#allocation1 + $0x20] sm:$0xff pattern:$0x73625140]
    %v4761 = vld.sshfl [vmem:[#allocation1 + $0x28] sm:$0xff pattern:$0x73625140]
    %4762 = vst [vmem:[#allocation1] ss:$4 sm:$0xff] %v4675
    %v4763 = vld.sshfl [vmem:[#allocation1] sm:$0xff pattern:$0x73625140]
    %v4764 = vld.sshfl [vmem:[#allocation1 + $0x8] sm:$0xff pattern:$0x73625140]
    %4765 = vst [vmem:[%s4692] ss:$4 sm:$0xff] %v4677
    %v4766 = vld.sshfl [vmem:[#allocation1 + $0x20] sm:$0xff pattern:$0x73625140]
    %v4767 = vld.sshfl [vmem:[#allocation1 + $0x28] sm:$0xff pattern:$0x73625140]
    %4768 = vst [vmem:[#allocation1] ss:$4 sm:$0xff] %v4679
    %v4769 = vld.sshfl [vmem:[#allocation1] sm:$0xff pattern:$0x73625140]
    %v4770 = vld.sshfl [vmem:[#allocation1 + $0x8] sm:$0xff pattern:$0x73625140]
    %4771 = vst [vmem:[%s4692] ss:$4 sm:$0xff] %v4681
    %v4772 = vld.sshfl [vmem:[#allocation1 + $0x20] sm:$0xff pattern:$0x73625140]
    %v4773 = vld.sshfl [vmem:[#allocation1 + $0x28] sm:$0xff pattern:$0x73625140]
    %4774 = vst [vmem:[#allocation1] ss:$4 sm:$0xff] %v4682
    %v4775 = vld.sshfl [vmem:[#allocation1] sm:$0xff pattern:$0x73625140]
    %v4776 = vld.sshfl [vmem:[#allocation1 + $0x8] sm:$0xff pattern:$0x73625140]
    %4777 = vst [vmem:[%s4692] ss:$4 sm:$0xff] %v4684
    %v4778 = vld.sshfl [vmem:[#allocation1 + $0x20] sm:$0xff pattern:$0x73625140]
    %v4779 = vld.sshfl [vmem:[#allocation1 + $0x28] sm:$0xff pattern:$0x73625140]
    %4780 = vst [vmem:[#allocation1] ss:$4 sm:$0xff] %v4686
    %v4781 = vld.sshfl [vmem:[#allocation1] sm:$0xff pattern:$0x73625140]
    %v4782 = vld.sshfl [vmem:[#allocation1 + $0x8] sm:$0xff pattern:$0x73625140]
    %4783 = vst [vmem:[%s4692] ss:$4 sm:$0xff] %v4688
    %v4784 = vld.sshfl [vmem:[#allocation1 + $0x20] sm:$0xff pattern:$0x73625140]
    %v4785 = vld.sshfl [vmem:[#allocation1 + $0x28] sm:$0xff pattern:$0x73625140]
    %v4850 = vsel %vm731, %v4690, -inf
    %v4851 = vrot.slane %v4850, 4
    %v4852 = vmax.f32 %v4850, %v4851
    %v4853 = vrot.slane %v4852, 2
    %v4854 = vmax.f32 %v4852, %v4853
    %v4855 = vrot.slane %v4854, 1
    %v4856 = vmax.f32 %v4854, %v4855
    %v4857 = vsel %vm731, %v4691, -inf
    %v4858 = vrot.slane %v4857, 4
    %v4859 = vmax.f32 %v4857, %v4858
    %v4860 = vrot.slane %v4859, 2
    %v4861 = vmax.f32 %v4859, %v4860
    %v4862 = vrot.slane %v4861, 1
    %v4863 = vmax.f32 %v4861, %v4862
    %v4864 = vsel %vm731, %v4694, -inf
    %v4865 = vrot.slane %v4864, 4
    %v4866 = vmax.f32 %v4864, %v4865
    %v4867 = vrot.slane %v4866, 2
    %v4868 = vmax.f32 %v4866, %v4867
    %v4869 = vrot.slane %v4868, 1
    %v4870 = vmax.f32 %v4868, %v4869
    %v4871 = vsel %vm731, %v4695, -inf
    %v4872 = vrot.slane %v4871, 4
    %v4873 = vmax.f32 %v4871, %v4872
    %v4874 = vrot.slane %v4873, 2
    %v4875 = vmax.f32 %v4873, %v4874
    %v4876 = vrot.slane %v4875, 1
    %v4877 = vmax.f32 %v4875, %v4876
    %v4878 = vsel %vm731, %v4697, -inf
    %v4879 = vrot.slane %v4878, 4
    %v4880 = vmax.f32 %v4878, %v4879
    %v4881 = vrot.slane %v4880, 2
    %v4882 = vmax.f32 %v4880, %v4881
    %v4883 = vrot.slane %v4882, 1
    %v4884 = vmax.f32 %v4882, %v4883
    %v4885 = vsel %vm731, %v4698, -inf
    %v4886 = vrot.slane %v4885, 4
    %v4887 = vmax.f32 %v4885, %v4886
    %v4888 = vrot.slane %v4887, 2
    %v4889 = vmax.f32 %v4887, %v4888
    %v4890 = vrot.slane %v4889, 1
    %v4891 = vmax.f32 %v4889, %v4890
    %v4892 = vsel %vm731, %v4700, -inf
    %v4893 = vrot.slane %v4892, 4
    %v4894 = vmax.f32 %v4892, %v4893
    %v4895 = vrot.slane %v4894, 2
    %v4896 = vmax.f32 %v4894, %v4895
    %v4897 = vrot.slane %v4896, 1
    %v4898 = vmax.f32 %v4896, %v4897
    %v4899 = vsel %vm731, %v4701, -inf
    %v4900 = vrot.slane %v4899, 4
    %v4901 = vmax.f32 %v4899, %v4900
    %v4902 = vrot.slane %v4901, 2
    %v4903 = vmax.f32 %v4901, %v4902
    %v4904 = vrot.slane %v4903, 1
    %v4905 = vmax.f32 %v4903, %v4904
    %v4906 = vsel %vm731, %v4703, -inf
    %v4907 = vrot.slane %v4906, 4
    %v4908 = vmax.f32 %v4906, %v4907
    %v4909 = vrot.slane %v4908, 2
    %v4910 = vmax.f32 %v4908, %v4909
    %v4911 = vrot.slane %v4910, 1
    %v4912 = vmax.f32 %v4910, %v4911
    %v4913 = vsel %vm731, %v4704, -inf
    %v4914 = vrot.slane %v4913, 4
    %v4915 = vmax.f32 %v4913, %v4914
    %v4916 = vrot.slane %v4915, 2
    %v4917 = vmax.f32 %v4915, %v4916
    %v4918 = vrot.slane %v4917, 1
    %v4919 = vmax.f32 %v4917, %v4918
    %v4920 = vsel %vm731, %v4706, -inf
    %v4921 = vrot.slane %v4920, 4
    %v4922 = vmax.f32 %v4920, %v4921
    %v4923 = vrot.slane %v4922, 2
    %v4924 = vmax.f32 %v4922, %v4923
    %v4925 = vrot.slane %v4924, 1
    %v4926 = vmax.f32 %v4924, %v4925
    %v4927 = vsel %vm731, %v4707, -inf
    %v4928 = vrot.slane %v4927, 4
    %v4929 = vmax.f32 %v4927, %v4928
    %v4930 = vrot.slane %v4929, 2
    %v4931 = vmax.f32 %v4929, %v4930
    %v4932 = vrot.slane %v4931, 1
    %v4933 = vmax.f32 %v4931, %v4932
    %v4934 = vsel %vm731, %v4709, -inf
    %v4935 = vrot.slane %v4934, 4
    %v4936 = vmax.f32 %v4934, %v4935
    %v4937 = vrot.slane %v4936, 2
    %v4938 = vmax.f32 %v4936, %v4937
    %v4939 = vrot.slane %v4938, 1
    %v4940 = vmax.f32 %v4938, %v4939
    %v4941 = vsel %vm731, %v4710, -inf
    %v4942 = vrot.slane %v4941, 4
    %v4943 = vmax.f32 %v4941, %v4942
    %v4944 = vrot.slane %v4943, 2
    %v4945 = vmax.f32 %v4943, %v4944
    %v4946 = vrot.slane %v4945, 1
    %v4947 = vmax.f32 %v4945, %v4946
    %v4948 = vsel %vm731, %v4712, -inf
    %v4949 = vrot.slane %v4948, 4
    %v4950 = vmax.f32 %v4948, %v4949
    %v4951 = vrot.slane %v4950, 2
    %v4952 = vmax.f32 %v4950, %v4951
    %v4953 = vrot.slane %v4952, 1
    %v4954 = vmax.f32 %v4952, %v4953
    %v4955 = vsel %vm731, %v4713, -inf
    %v4956 = vrot.slane %v4955, 4
    %v4957 = vmax.f32 %v4955, %v4956
    %v4958 = vrot.slane %v4957, 2
    %v4959 = vmax.f32 %v4957, %v4958
    %v4960 = vrot.slane %v4959, 1
    %v4961 = vmax.f32 %v4959, %v4960
    %v4962 = vsel %vm731, %v4715, -inf
    %v4963 = vrot.slane %v4962, 4
    %v4964 = vmax.f32 %v4962, %v4963
    %v4965 = vrot.slane %v4964, 2
    %v4966 = vmax.f32 %v4964, %v4965
    %v4967 = vrot.slane %v4966, 1
    %v4968 = vmax.f32 %v4966, %v4967
    %v4969 = vsel %vm731, %v4716, -inf
    %v4970 = vrot.slane %v4969, 4
    %v4971 = vmax.f32 %v4969, %v4970
    %v4972 = vrot.slane %v4971, 2
    %v4973 = vmax.f32 %v4971, %v4972
    %v4974 = vrot.slane %v4973, 1
    %v4975 = vmax.f32 %v4973, %v4974
    %v4976 = vsel %vm731, %v4718, -inf
    %v4977 = vrot.slane %v4976, 4
    %v4978 = vmax.f32 %v4976, %v4977
    %v4979 = vrot.slane %v4978, 2
    %v4980 = vmax.f32 %v4978, %v4979
    %v4981 = vrot.slane %v4980, 1
    %v4982 = vmax.f32 %v4980, %v4981
    %v4983 = vsel %vm731, %v4719, -inf
    %v4984 = vrot.slane %v4983, 4
    %v4985 = vmax.f32 %v4983, %v4984
    %v4986 = vrot.slane %v4985, 2
    %v4987 = vmax.f32 %v4985, %v4986
    %v4988 = vrot.slane %v4987, 1
    %v4989 = vmax.f32 %v4987, %v4988
    %v4990 = vsel %vm731, %v4721, -inf
    %v4991 = vrot.slane %v4990, 4
    %v4992 = vmax.f32 %v4990, %v4991
    %v4993 = vrot.slane %v4992, 2
    %v4994 = vmax.f32 %v4992, %v4993
    %v4995 = vrot.slane %v4994, 1
    %v4996 = vmax.f32 %v4994, %v4995
    %v4997 = vsel %vm731, %v4722, -inf
    %v4998 = vrot.slane %v4997, 4
    %v4999 = vmax.f32 %v4997, %v4998
    %v5000 = vrot.slane %v4999, 2
    %v5001 = vmax.f32 %v4999, %v5000
    %v5002 = vrot.slane %v5001, 1
    %v5003 = vmax.f32 %v5001, %v5002
    %v5004 = vsel %vm731, %v4724, -inf
    %v5005 = vrot.slane %v5004, 4
    %v5006 = vmax.f32 %v5004, %v5005
    %v5007 = vrot.slane %v5006, 2
    %v5008 = vmax.f32 %v5006, %v5007
    %v5009 = vrot.slane %v5008, 1
    %v5010 = vmax.f32 %v5008, %v5009
    %v5011 = vsel %vm731, %v4725, -inf
    %v5012 = vrot.slane %v5011, 4
    %v5013 = vmax.f32 %v5011, %v5012
    %v5014 = vrot.slane %v5013, 2
    %v5015 = vmax.f32 %v5013, %v5014
    %v5016 = vrot.slane %v5015, 1
    %v5017 = vmax.f32 %v5015, %v5016
    %v5018 = vsel %vm731, %v4727, -inf
    %v5019 = vrot.slane %v5018, 4
    %v5020 = vmax.f32 %v5018, %v5019
    %v5021 = vrot.slane %v5020, 2
    %v5022 = vmax.f32 %v5020, %v5021
    %v5023 = vrot.slane %v5022, 1
    %v5024 = vmax.f32 %v5022, %v5023
    %v5025 = vsel %vm731, %v4728, -inf
    %v5026 = vrot.slane %v5025, 4
    %v5027 = vmax.f32 %v5025, %v5026
    %v5028 = vrot.slane %v5027, 2
    %v5029 = vmax.f32 %v5027, %v5028
    %v5030 = vrot.slane %v5029, 1
    %v5031 = vmax.f32 %v5029, %v5030
    %v5032 = vsel %vm731, %v4730, -inf
    %v5033 = vrot.slane %v5032, 4
    %v5034 = vmax.f32 %v5032, %v5033
    %v5035 = vrot.slane %v5034, 2
    %v5036 = vmax.f32 %v5034, %v5035
    %v5037 = vrot.slane %v5036, 1
    %v5038 = vmax.f32 %v5036, %v5037
    %v5039 = vsel %vm731, %v4731, -inf
    %v5040 = vrot.slane %v5039, 4
    %v5041 = vmax.f32 %v5039, %v5040
    %v5042 = vrot.slane %v5041, 2
    %v5043 = vmax.f32 %v5041, %v5042
    %v5044 = vrot.slane %v5043, 1
    %v5045 = vmax.f32 %v5043, %v5044
    %v5046 = vsel %vm731, %v4733, -inf
    %v5047 = vrot.slane %v5046, 4
    %v5048 = vmax.f32 %v5046, %v5047
    %v5049 = vrot.slane %v5048, 2
    %v5050 = vmax.f32 %v5048, %v5049
    %v5051 = vrot.slane %v5050, 1
    %v5052 = vmax.f32 %v5050, %v5051
    %v5053 = vsel %vm731, %v4734, -inf
    %v5054 = vrot.slane %v5053, 4
    %v5055 = vmax.f32 %v5053, %v5054
    %v5056 = vrot.slane %v5055, 2
    %v5057 = vmax.f32 %v5055, %v5056
    %v5058 = vrot.slane %v5057, 1
    %v5059 = vmax.f32 %v5057, %v5058
    %v5060 = vsel %vm731, %v4736, -inf
    %v5061 = vrot.slane %v5060, 4
    %v5062 = vmax.f32 %v5060, %v5061
    %v5063 = vrot.slane %v5062, 2
    %v5064 = vmax.f32 %v5062, %v5063
    %v5065 = vrot.slane %v5064, 1
    %v5066 = vmax.f32 %v5064, %v5065
    %v5067 = vsel %vm731, %v4737, -inf
    %v5068 = vrot.slane %v5067, 4
    %v5069 = vmax.f32 %v5067, %v5068
    %v5070 = vrot.slane %v5069, 2
    %v5071 = vmax.f32 %v5069, %v5070
    %v5072 = vrot.slane %v5071, 1
    %v5073 = vmax.f32 %v5071, %v5072
    %v5074 = vsel %vm731, %v4739, -inf
    %v5075 = vrot.slane %v5074, 4
    %v5076 = vmax.f32 %v5074, %v5075
    %v5077 = vrot.slane %v5076, 2
    %v5078 = vmax.f32 %v5076, %v5077
    %v5079 = vrot.slane %v5078, 1
    %v5080 = vmax.f32 %v5078, %v5079
    %v5081 = vsel %vm731, %v4740, -inf
    %v5082 = vrot.slane %v5081, 4
    %v5083 = vmax.f32 %v5081, %v5082
    %v5084 = vrot.slane %v5083, 2
    %v5085 = vmax.f32 %v5083, %v5084
    %v5086 = vrot.slane %v5085, 1
    %v5087 = vmax.f32 %v5085, %v5086
    %v5088 = vsel %vm731, %v4742, -inf
    %v5089 = vrot.slane %v5088, 4
    %v5090 = vmax.f32 %v5088, %v5089
    %v5091 = vrot.slane %v5090, 2
    %v5092 = vmax.f32 %v5090, %v5091
    %v5093 = vrot.slane %v5092, 1
    %v5094 = vmax.f32 %v5092, %v5093
    %v5095 = vsel %vm731, %v4743, -inf
    %v5096 = vrot.slane %v5095, 4
    %v5097 = vmax.f32 %v5095, %v5096
    %v5098 = vrot.slane %v5097, 2
    %v5099 = vmax.f32 %v5097, %v5098
    %v5100 = vrot.slane %v5099, 1
    %v5101 = vmax.f32 %v5099, %v5100
    %v5102 = vsel %vm731, %v4745, -inf
    %v5103 = vrot.slane %v5102, 4
    %v5104 = vmax.f32 %v5102, %v5103
    %v5105 = vrot.slane %v5104, 2
    %v5106 = vmax.f32 %v5104, %v5105
    %v5107 = vrot.slane %v5106, 1
    %v5108 = vmax.f32 %v5106, %v5107
    %v5109 = vsel %vm731, %v4746, -inf
    %v5110 = vrot.slane %v5109, 4
    %v5111 = vmax.f32 %v5109, %v5110
    %v5112 = vrot.slane %v5111, 2
    %v5113 = vmax.f32 %v5111, %v5112
    %v5114 = vrot.slane %v5113, 1
    %v5115 = vmax.f32 %v5113, %v5114
    %v5116 = vsel %vm731, %v4748, -inf
    %v5117 = vrot.slane %v5116, 4
    %v5118 = vmax.f32 %v5116, %v5117
    %v5119 = vrot.slane %v5118, 2
    %v5120 = vmax.f32 %v5118, %v5119
    %v5121 = vrot.slane %v5120, 1
    %v5122 = vmax.f32 %v5120, %v5121
    %v5123 = vsel %vm731, %v4749, -inf
    %v5124 = vrot.slane %v5123, 4
    %v5125 = vmax.f32 %v5123, %v5124
    %v5126 = vrot.slane %v5125, 2
    %v5127 = vmax.f32 %v5125, %v5126
    %v5128 = vrot.slane %v5127, 1
    %v5129 = vmax.f32 %v5127, %v5128
    %v5130 = vsel %vm731, %v4751, -inf
    %v5131 = vrot.slane %v5130, 4
    %v5132 = vmax.f32 %v5130, %v5131
    %v5133 = vrot.slane %v5132, 2
    %v5134 = vmax.f32 %v5132, %v5133
    %v5135 = vrot.slane %v5134, 1
    %v5136 = vmax.f32 %v5134, %v5135
    %v5137 = vsel %vm731, %v4752, -inf
    %v5138 = vrot.slane %v5137, 4
    %v5139 = vmax.f32 %v5137, %v5138
    %v5140 = vrot.slane %v5139, 2
    %v5141 = vmax.f32 %v5139, %v5140
    %v5142 = vrot.slane %v5141, 1
    %v5143 = vmax.f32 %v5141, %v5142
    %v5144 = vsel %vm731, %v4754, -inf
    %v5145 = vrot.slane %v5144, 4
    %v5146 = vmax.f32 %v5144, %v5145
    %v5147 = vrot.slane %v5146, 2
    %v5148 = vmax.f32 %v5146, %v5147
    %v5149 = vrot.slane %v5148, 1
    %v5150 = vmax.f32 %v5148, %v5149
    %v5151 = vsel %vm731, %v4755, -inf
    %v5152 = vrot.slane %v5151, 4
    %v5153 = vmax.f32 %v5151, %v5152
    %v5154 = vrot.slane %v5153, 2
    %v5155 = vmax.f32 %v5153, %v5154
    %v5156 = vrot.slane %v5155, 1
    %v5157 = vmax.f32 %v5155, %v5156
    %v5158 = vsel %vm731, %v4757, -inf
    %v5159 = vrot.slane %v5158, 4
    %v5160 = vmax.f32 %v5158, %v5159
    %v5161 = vrot.slane %v5160, 2
    %v5162 = vmax.f32 %v5160, %v5161
    %v5163 = vrot.slane %v5162, 1
    %v5164 = vmax.f32 %v5162, %v5163
    %v5165 = vsel %vm731, %v4758, -inf
    %v5166 = vrot.slane %v5165, 4
    %v5167 = vmax.f32 %v5165, %v5166
    %v5168 = vrot.slane %v5167, 2
    %v5169 = vmax.f32 %v5167, %v5168
    %v5170 = vrot.slane %v5169, 1
    %v5171 = vmax.f32 %v5169, %v5170
    %v5172 = vsel %vm731, %v4760, -inf
    %v5173 = vrot.slane %v5172, 4
    %v5174 = vmax.f32 %v5172, %v5173
    %v5175 = vrot.slane %v5174, 2
    %v5176 = vmax.f32 %v5174, %v5175
    %v5177 = vrot.slane %v5176, 1
    %v5178 = vmax.f32 %v5176, %v5177
    %v5179 = vsel %vm731, %v4761, -inf
    %v5180 = vrot.slane %v5179, 4
    %v5181 = vmax.f32 %v5179, %v5180
    %v5182 = vrot.slane %v5181, 2
    %v5183 = vmax.f32 %v5181, %v5182
    %v5184 = vrot.slane %v5183, 1
    %v5185 = vmax.f32 %v5183, %v5184
    %v5186 = vsel %vm731, %v4763, -inf
    %v5187 = vrot.slane %v5186, 4
    %v5188 = vmax.f32 %v5186, %v5187
    %v5189 = vrot.slane %v5188, 2
    %v5190 = vmax.f32 %v5188, %v5189
    %v5191 = vrot.slane %v5190, 1
    %v5192 = vmax.f32 %v5190, %v5191
    %v5193 = vsel %vm731, %v4764, -inf
    %v5194 = vrot.slane %v5193, 4
    %v5195 = vmax.f32 %v5193, %v5194
    %v5196 = vrot.slane %v5195, 2
    %v5197 = vmax.f32 %v5195, %v5196
    %v5198 = vrot.slane %v5197, 1
    %v5199 = vmax.f32 %v5197, %v5198
    %v5200 = vsel %vm731, %v4766, -inf
    %v5201 = vrot.slane %v5200, 4
    %v5202 = vmax.f32 %v5200, %v5201
    %v5203 = vrot.slane %v5202, 2
    %v5204 = vmax.f32 %v5202, %v5203
    %v5205 = vrot.slane %v5204, 1
    %v5206 = vmax.f32 %v5204, %v5205
    %v5207 = vsel %vm731, %v4767, -inf
    %v5208 = vrot.slane %v5207, 4
    %v5209 = vmax.f32 %v5207, %v5208
    %v5210 = vrot.slane %v5209, 2
    %v5211 = vmax.f32 %v5209, %v5210
    %v5212 = vrot.slane %v5211, 1
    %v5213 = vmax.f32 %v5211, %v5212
    %v5214 = vsel %vm731, %v4769, -inf
    %v5215 = vrot.slane %v5214, 4
    %v5216 = vmax.f32 %v5214, %v5215
    %v5217 = vrot.slane %v5216, 2
    %v5218 = vmax.f32 %v5216, %v5217
    %v5219 = vrot.slane %v5218, 1
    %v5220 = vmax.f32 %v5218, %v5219
    %v5221 = vsel %vm731, %v4770, -inf
    %v5222 = vrot.slane %v5221, 4
    %v5223 = vmax.f32 %v5221, %v5222
    %v5224 = vrot.slane %v5223, 2
    %v5225 = vmax.f32 %v5223, %v5224
    %v5226 = vrot.slane %v5225, 1
    %v5227 = vmax.f32 %v5225, %v5226
    %v5228 = vsel %vm731, %v4772, -inf
    %v5229 = vrot.slane %v5228, 4
    %v5230 = vmax.f32 %v5228, %v5229
    %v5231 = vrot.slane %v5230, 2
    %v5232 = vmax.f32 %v5230, %v5231
    %v5233 = vrot.slane %v5232, 1
    %v5234 = vmax.f32 %v5232, %v5233
    %v5235 = vsel %vm731, %v4773, -inf
    %v5236 = vrot.slane %v5235, 4
    %v5237 = vmax.f32 %v5235, %v5236
    %v5238 = vrot.slane %v5237, 2
    %v5239 = vmax.f32 %v5237, %v5238
    %v5240 = vrot.slane %v5239, 1
    %v5241 = vmax.f32 %v5239, %v5240
    %v5242 = vsel %vm731, %v4775, -inf
    %v5243 = vrot.slane %v5242, 4
    %v5244 = vmax.f32 %v5242, %v5243
    %v5245 = vrot.slane %v5244, 2
    %v5246 = vmax.f32 %v5244, %v5245
    %v5247 = vrot.slane %v5246, 1
    %v5248 = vmax.f32 %v5246, %v5247
    %v5249 = vsel %vm731, %v4776, -inf
    %v5250 = vrot.slane %v5249, 4
    %v5251 = vmax.f32 %v5249, %v5250
    %v5252 = vrot.slane %v5251, 2
    %v5253 = vmax.f32 %v5251, %v5252
    %v5254 = vrot.slane %v5253, 1
    %v5255 = vmax.f32 %v5253, %v5254
    %v5256 = vsel %vm731, %v4778, -inf
    %v5257 = vrot.slane %v5256, 4
    %v5258 = vmax.f32 %v5256, %v5257
    %v5259 = vrot.slane %v5258, 2
    %v5260 = vmax.f32 %v5258, %v5259
    %v5261 = vrot.slane %v5260, 1
    %v5262 = vmax.f32 %v5260, %v5261
    %v5263 = vsel %vm731, %v4779, -inf
    %v5264 = vrot.slane %v5263, 4
    %v5265 = vmax.f32 %v5263, %v5264
    %v5266 = vrot.slane %v5265, 2
    %v5267 = vmax.f32 %v5265, %v5266
    %v5268 = vrot.slane %v5267, 1
    %v5269 = vmax.f32 %v5267, %v5268
    %v5270 = vsel %vm731, %v4781, -inf
    %v5271 = vrot.slane %v5270, 4
    %v5272 = vmax.f32 %v5270, %v5271
    %v5273 = vrot.slane %v5272, 2
    %v5274 = vmax.f32 %v5272, %v5273
    %v5275 = vrot.slane %v5274, 1
    %v5276 = vmax.f32 %v5274, %v5275
    %v5277 = vsel %vm731, %v4782, -inf
    %v5278 = vrot.slane %v5277, 4
    %v5279 = vmax.f32 %v5277, %v5278
    %v5280 = vrot.slane %v5279, 2
    %v5281 = vmax.f32 %v5279, %v5280
    %v5282 = vrot.slane %v5281, 1
    %v5283 = vmax.f32 %v5281, %v5282
    %v5284 = vsel %vm731, %v4784, -inf
    %v5285 = vrot.slane %v5284, 4
    %v5286 = vmax.f32 %v5284, %v5285
    %v5287 = vrot.slane %v5286, 2
    %v5288 = vmax.f32 %v5286, %v5287
    %v5289 = vrot.slane %v5288, 1
    %v5290 = vmax.f32 %v5288, %v5289
    %v5291 = vsel %vm731, %v4785, -inf
    %v5292 = vrot.slane %v5291, 4
    %v5293 = vmax.f32 %v5291, %v5292
    %v5294 = vrot.slane %v5293, 2
    %v5295 = vmax.f32 %v5293, %v5294
    %v5296 = vrot.slane %v5295, 1
    %v5297 = vmax.f32 %v5295, %v5296
    %v5298 = vmax.f32 %v4856, 0.0
    %v5299 = vmax.f32 %v4863, 0.0
    %v5300 = vmax.f32 %v4870, 0.0
    %v5301 = vmax.f32 %v4877, 0.0
    %v5302 = vmax.f32 %v4884, 0.0
    %v5303 = vmax.f32 %v4891, 0.0
    %v5304 = vmax.f32 %v4898, 0.0
    %v5305 = vmax.f32 %v4905, 0.0
    %v5306 = vmax.f32 %v4912, 0.0
    %v5307 = vmax.f32 %v4919, 0.0
    %v5308 = vmax.f32 %v4926, 0.0
    %v5309 = vmax.f32 %v4933, 0.0
    %v5310 = vmax.f32 %v4940, 0.0
    %v5311 = vmax.f32 %v4947, 0.0
    %v5312 = vmax.f32 %v4954, 0.0
    %v5313 = vmax.f32 %v4961, 0.0
    %v5314 = vmax.f32 %v4968, 0.0
    %v5315 = vmax.f32 %v4975, 0.0
    %v5316 = vmax.f32 %v4982, 0.0
    %v5317 = vmax.f32 %v4989, 0.0
    %v5318 = vmax.f32 %v4996, 0.0
    %v5319 = vmax.f32 %v5003, 0.0
    %v5320 = vmax.f32 %v5010, 0.0
    %v5321 = vmax.f32 %v5017, 0.0
    %v5322 = vmax.f32 %v5024, 0.0
    %v5323 = vmax.f32 %v5031, 0.0
    %v5324 = vmax.f32 %v5038, 0.0
    %v5325 = vmax.f32 %v5045, 0.0
    %v5326 = vmax.f32 %v5052, 0.0
    %v5327 = vmax.f32 %v5059, 0.0
    %v5328 = vmax.f32 %v5066, 0.0
    %v5329 = vmax.f32 %v5073, 0.0
    %v5330 = vmax.f32 %v5080, 0.0
    %v5331 = vmax.f32 %v5087, 0.0
    %v5332 = vmax.f32 %v5094, 0.0
    %v5333 = vmax.f32 %v5101, 0.0
    %v5334 = vmax.f32 %v5108, 0.0
    %v5335 = vmax.f32 %v5115, 0.0
    %v5336 = vmax.f32 %v5122, 0.0
    %v5337 = vmax.f32 %v5129, 0.0
    %v5338 = vmax.f32 %v5136, 0.0
    %v5339 = vmax.f32 %v5143, 0.0
    %v5340 = vmax.f32 %v5150, 0.0
    %v5341 = vmax.f32 %v5157, 0.0
    %v5342 = vmax.f32 %v5164, 0.0
    %v5343 = vmax.f32 %v5171, 0.0
    %v5344 = vmax.f32 %v5178, 0.0
    %v5345 = vmax.f32 %v5185, 0.0
    %v5346 = vmax.f32 %v5192, 0.0
    %v5347 = vmax.f32 %v5199, 0.0
    %v5348 = vmax.f32 %v5206, 0.0
    %v5349 = vmax.f32 %v5213, 0.0
    %v5350 = vmax.f32 %v5220, 0.0
    %v5351 = vmax.f32 %v5227, 0.0
    %v5352 = vmax.f32 %v5234, 0.0
    %v5353 = vmax.f32 %v5241, 0.0
    %v5354 = vmax.f32 %v5248, 0.0
    %v5355 = vmax.f32 %v5255, 0.0
    %v5356 = vmax.f32 %v5262, 0.0
    %v5357 = vmax.f32 %v5269, 0.0
    %v5358 = vmax.f32 %v5276, 0.0
    %v5359 = vmax.f32 %v5283, 0.0
    %v5360 = vmax.f32 %v5290, 0.0
    %v5361 = vmax.f32 %v5297, 0.0
    %v5362 = vpack.c.bf16 %v5299, %v5298
    %v5363 = vpack.c.bf16 %v5301, %v5300
    %v5364 = vpack.c.bf16 %v5303, %v5302
    %v5365 = vpack.c.bf16 %v5305, %v5304
    %v5366 = vpack.c.bf16 %v5307, %v5306
    %v5367 = vpack.c.bf16 %v5309, %v5308
    %v5368 = vpack.c.bf16 %v5311, %v5310
    %v5369 = vpack.c.bf16 %v5313, %v5312
    %v5370 = vpack.c.bf16 %v5315, %v5314
    %v5371 = vpack.c.bf16 %v5317, %v5316
    %v5372 = vpack.c.bf16 %v5319, %v5318
    %v5373 = vpack.c.bf16 %v5321, %v5320
    %v5374 = vpack.c.bf16 %v5323, %v5322
    %v5375 = vpack.c.bf16 %v5325, %v5324
    %v5376 = vpack.c.bf16 %v5327, %v5326
    %v5377 = vpack.c.bf16 %v5329, %v5328
    %v5378 = vpack.c.bf16 %v5331, %v5330
    %v5379 = vpack.c.bf16 %v5333, %v5332
    %v5380 = vpack.c.bf16 %v5335, %v5334
    %v5381 = vpack.c.bf16 %v5337, %v5336
    %v5382 = vpack.c.bf16 %v5339, %v5338
    %v5383 = vpack.c.bf16 %v5341, %v5340
    %v5384 = vpack.c.bf16 %v5343, %v5342
    %v5385 = vpack.c.bf16 %v5345, %v5344
    %v5386 = vpack.c.bf16 %v5347, %v5346
    %v5387 = vpack.c.bf16 %v5349, %v5348
    %v5388 = vpack.c.bf16 %v5351, %v5350
    %v5389 = vpack.c.bf16 %v5353, %v5352
    %v5390 = vpack.c.bf16 %v5355, %v5354
    %v5391 = vpack.c.bf16 %v5357, %v5356
    %v5392 = vpack.c.bf16 %v5359, %v5358
    %v5393 = vpack.c.bf16 %v5361, %v5360
    %v5394 = vld [vmem:[%s6] sm:$0x1]
    %v5395 = vld [vmem:[%s5] sm:$0xf]
    %v5396 = vld [vmem:[%s5 + $0x4] sm:$0xf]
    %v5397 = vld [vmem:[%s5 + $0x8] sm:$0xf]
    %v5398 = vld [vmem:[%s5 + $0xc] sm:$0xf]
    %v5399 = vld [vmem:[%s5 + $0x10] sm:$0xf]
    %v5400 = vld [vmem:[%s5 + $0x14] sm:$0xf]
    %v5401 = vld [vmem:[%s5 + $0x18] sm:$0xf]
    %v5402 = vld [vmem:[%s5 + $0x1c] sm:$0xf]
    %v5403 = vld [vmem:[%s5 + $0x20] sm:$0xf]
    %v5404 = vld [vmem:[%s5 + $0x24] sm:$0xf]
    %v5405 = vld [vmem:[%s5 + $0x28] sm:$0xf]
    %v5406 = vld [vmem:[%s5 + $0x2c] sm:$0xf]
    %v5407 = vld [vmem:[%s5 + $0x30] sm:$0xf]
    %v5408 = vld [vmem:[%s5 + $0x34] sm:$0xf]
    %v5409 = vld [vmem:[%s5 + $0x38] sm:$0xf]
    %v5410 = vld [vmem:[%s5 + $0x3c] sm:$0xf]
    %v5411 = vld [vmem:[%s5 + $0x40] sm:$0xf]
    %v5412 = vld [vmem:[%s5 + $0x44] sm:$0xf]
    %v5413 = vld [vmem:[%s5 + $0x48] sm:$0xf]
    %v5414 = vld [vmem:[%s5 + $0x4c] sm:$0xf]
    %v5415 = vld [vmem:[%s5 + $0x50] sm:$0xf]
    %v5416 = vld [vmem:[%s5 + $0x54] sm:$0xf]
    %v5417 = vld [vmem:[%s5 + $0x58] sm:$0xf]
    %v5418 = vld [vmem:[%s5 + $0x5c] sm:$0xf]
    %v5419 = vld [vmem:[%s5 + $0x60] sm:$0xf]
    %v5420 = vld [vmem:[%s5 + $0x64] sm:$0xf]
    %v5421 = vld [vmem:[%s5 + $0x68] sm:$0xf]
    %v5422 = vld [vmem:[%s5 + $0x6c] sm:$0xf]
    %v5423 = vld [vmem:[%s5 + $0x70] sm:$0xf]
    %v5424 = vld [vmem:[%s5 + $0x74] sm:$0xf]
    %v5425 = vld [vmem:[%s5 + $0x78] sm:$0xf]
    %v5426 = vld [vmem:[%s5 + $0x7c] sm:$0xf]
    %v5435 = vperm.slane %v5362, 0
    %v5436 = vperm.slane %v5362, 4
    %v5437 = vperm.slane %v5366, 0
    %v5438 = vperm.slane %v5366, 4
    %v5439 = vperm.slane %v5370, 0
    %v5440 = vperm.slane %v5370, 4
    %v5441 = vperm.slane %v5374, 0
    %v5442 = vperm.slane %v5374, 4
    %v5443 = vperm.slane %v5378, 0
    %v5444 = vperm.slane %v5378, 4
    %v5445 = vperm.slane %v5382, 0
    %v5446 = vperm.slane %v5382, 4
    %v5447 = vperm.slane %v5386, 0
    %v5448 = vperm.slane %v5386, 4
    %v5449 = vperm.slane %v5390, 0
    %v5450 = vperm.slane %v5390, 4
    %v5451 = vunpack.c.l.b16 %v5435
    %v5452 = vunpack.c.l.b16 %v5436
    %v5453 = vunpack.c.l.b16 %v5437
    %v5454 = vunpack.c.l.b16 %v5438
    %v5455 = vunpack.c.l.b16 %v5439
    %v5456 = vunpack.c.l.b16 %v5440
    %v5457 = vunpack.c.l.b16 %v5441
    %v5458 = vunpack.c.l.b16 %v5442
    %v5459 = vunpack.c.l.b16 %v5443
    %v5460 = vunpack.c.l.b16 %v5444
    %v5461 = vunpack.c.l.b16 %v5445
    %v5462 = vunpack.c.l.b16 %v5446
    %v5463 = vunpack.c.l.b16 %v5447
    %v5464 = vunpack.c.l.b16 %v5448
    %v5465 = vunpack.c.l.b16 %v5449
    %v5466 = vunpack.c.l.b16 %v5450
    %v5467 = vsel %vm2454, %v5453, %v5451
    %v5468 = vsel %vm2304, %v5455, %v5467
    %v5469 = vsel %vm2306, %v5457, %v5468
    %v5470 = vsel %vm2308, %v5459, %v5469
    %v5471 = vsel %vm2310, %v5461, %v5470
    %v5472 = vsel %vm2312, %v5463, %v5471
    %v5473 = vsel %vm2314, %v5465, %v5472
    %v5474 = vsel %vm2454, %v5454, %v5452
    %v5475 = vsel %vm2304, %v5456, %v5474
    %v5476 = vsel %vm2306, %v5458, %v5475
    %v5477 = vsel %vm2308, %v5460, %v5476
    %v5478 = vsel %vm2310, %v5462, %v5477
    %v5479 = vsel %vm2312, %v5464, %v5478
    %v5480 = vsel %vm2314, %v5466, %v5479
    %v5481 = vpack.c.b16 %v5473, %v5473
    %v5482 = vpack.c.b16 %v5480, %v5480
    %v5517 = vunpack.c.l.b16 %v5395
    %v5518 = vunpack.c.l.b16 %v5396
    %v5519 = vunpack.c.l.b16 %v5397
    %v5520 = vunpack.c.l.b16 %v5398
    %v5521 = vunpack.c.l.b16 %v5399
    %v5522 = vunpack.c.l.b16 %v5400
    %v5523 = vunpack.c.l.b16 %v5401
    %v5524 = vunpack.c.l.b16 %v5402
    %v5525 = vunpack.c.l.b16 %v5403
    %v5526 = vunpack.c.l.b16 %v5404
    %v5527 = vunpack.c.l.b16 %v5405
    %v5528 = vunpack.c.l.b16 %v5406
    %v5529 = vunpack.c.l.b16 %v5407
    %v5530 = vunpack.c.l.b16 %v5408
    %v5531 = vunpack.c.l.b16 %v5409
    %v5532 = vunpack.c.l.b16 %v5410
    %v5533 = vunpack.c.l.b16 %v5411
    %v5534 = vunpack.c.l.b16 %v5412
    %v5535 = vunpack.c.l.b16 %v5413
    %v5536 = vunpack.c.l.b16 %v5414
    %v5537 = vunpack.c.l.b16 %v5415
    %v5538 = vunpack.c.l.b16 %v5416
    %v5539 = vunpack.c.l.b16 %v5417
    %v5540 = vunpack.c.l.b16 %v5418
    %v5541 = vunpack.c.l.b16 %v5419
    %v5542 = vunpack.c.l.b16 %v5420
    %v5543 = vunpack.c.l.b16 %v5421
    %v5544 = vunpack.c.l.b16 %v5422
    %v5545 = vunpack.c.l.b16 %v5423
    %v5546 = vunpack.c.l.b16 %v5424
    %v5547 = vunpack.c.l.b16 %v5425
    %v5548 = vunpack.c.l.b16 %v5426
    %v5549 = vpack.c.b16 %v5518, %v5517
    %v5550 = vpack.c.b16 %v5520, %v5519
    %v5551 = vpack.c.b16 %v5522, %v5521
    %v5552 = vpack.c.b16 %v5524, %v5523
    %v5553 = vpack.c.b16 %v5526, %v5525
    %v5554 = vpack.c.b16 %v5528, %v5527
    %v5555 = vpack.c.b16 %v5530, %v5529
    %v5556 = vpack.c.b16 %v5532, %v5531
    %v5557 = vpack.c.b16 %v5534, %v5533
    %v5558 = vpack.c.b16 %v5536, %v5535
    %v5559 = vpack.c.b16 %v5538, %v5537
    %v5560 = vpack.c.b16 %v5540, %v5539
    %v5561 = vpack.c.b16 %v5542, %v5541
    %v5562 = vpack.c.b16 %v5544, %v5543
    %v5563 = vpack.c.b16 %v5546, %v5545
    %v5564 = vpack.c.b16 %v5548, %v5547
    %5581 = vmatpush.bf16.msra.mxu0 %v5556
    %5582 = vmatpush.bf16.msra.mxu0 %v5555
    %5583 = vmatpush.bf16.msra.mxu0 %v5554
    %5584 = vmatpush.bf16.msra.mxu0 %v5553
    %5585 = vmatpush.bf16.msra.mxu0 %v5552
    %5586 = vmatpush.bf16.msra.mxu0 %v5551
    %5587 = vmatpush.bf16.msra.mxu0 %v5550
    %5588 = vmatpush.bf16.msra.mxu0 %v5549
    %5589 = vmatmul.bf16.gmra.mxu0 %v5481
    %v5590 = vpop.f32.mrf.mxu0
    %v5591 = vadd.f32 0.0, %v5590
    %v5592 = vpop.f32.mrf.mxu0
    %5593 = vdwg.mxu0
    %5594 = vmatpush.bf16.msra.mxu0 %v5564
    %5595 = vmatpush.bf16.msra.mxu0 %v5563
    %5596 = vmatpush.bf16.msra.mxu0 %v5562
    %5597 = vmatpush.bf16.msra.mxu0 %v5561
    %5598 = vmatpush.bf16.msra.mxu0 %v5560
    %5599 = vmatpush.bf16.msra.mxu0 %v5559
    %5600 = vmatpush.bf16.msra.mxu0 %v5558
    %5601 = vmatpush.bf16.msra.mxu0 %v5557
    %5602 = vmatmul.bf16.gmra.mxu0 %v5482
    %v5603 = vpop.f32.mrf.mxu0
    %v5604 = vadd.f32 %v5591, %v5603
    %v5605 = vpop.f32.mrf.mxu0
    %5606 = vdwg.mxu0
    %v5608 = vperm.slane %v5394, 0
    %v5610 = vadd.f32 %v5608, %v5604
    %s5611 = scalar_lea.vmem %s5, 128
    %v5612 = vld [vmem:[%s5611] sm:$0xf]
    %v5613 = vld [vmem:[%s5611 + $0x4] sm:$0xf]
    %v5614 = vld [vmem:[%s5611 + $0x8] sm:$0xf]
    %v5615 = vld [vmem:[%s5611 + $0xc] sm:$0xf]
    %v5616 = vld [vmem:[%s5611 + $0x10] sm:$0xf]
    %v5617 = vld [vmem:[%s5611 + $0x14] sm:$0xf]
    %v5618 = vld [vmem:[%s5611 + $0x18] sm:$0xf]
    %v5619 = vld [vmem:[%s5611 + $0x1c] sm:$0xf]
    %v5620 = vld [vmem:[%s5611 + $0x20] sm:$0xf]
    %v5621 = vld [vmem:[%s5611 + $0x24] sm:$0xf]
    %v5622 = vld [vmem:[%s5611 + $0x28] sm:$0xf]
    %v5623 = vld [vmem:[%s5611 + $0x2c] sm:$0xf]
    %v5624 = vld [vmem:[%s5611 + $0x30] sm:$0xf]
    %v5625 = vld [vmem:[%s5611 + $0x34] sm:$0xf]
    %v5626 = vld [vmem:[%s5611 + $0x38] sm:$0xf]
    %v5627 = vld [vmem:[%s5611 + $0x3c] sm:$0xf]
    %v5628 = vld [vmem:[%s5611 + $0x40] sm:$0xf]
    %v5629 = vld [vmem:[%s5611 + $0x44] sm:$0xf]
    %v5630 = vld [vmem:[%s5611 + $0x48] sm:$0xf]
    %v5631 = vld [vmem:[%s5611 + $0x4c] sm:$0xf]
    %v5632 = vld [vmem:[%s5611 + $0x50] sm:$0xf]
    %v5633 = vld [vmem:[%s5611 + $0x54] sm:$0xf]
    %v5634 = vld [vmem:[%s5611 + $0x58] sm:$0xf]
    %v5635 = vld [vmem:[%s5611 + $0x5c] sm:$0xf]
    %v5636 = vld [vmem:[%s5611 + $0x60] sm:$0xf]
    %v5637 = vld [vmem:[%s5611 + $0x64] sm:$0xf]
    %v5638 = vld [vmem:[%s5611 + $0x68] sm:$0xf]
    %v5639 = vld [vmem:[%s5611 + $0x6c] sm:$0xf]
    %v5640 = vld [vmem:[%s5611 + $0x70] sm:$0xf]
    %v5641 = vld [vmem:[%s5611 + $0x74] sm:$0xf]
    %v5642 = vld [vmem:[%s5611 + $0x78] sm:$0xf]
    %v5643 = vld [vmem:[%s5611 + $0x7c] sm:$0xf]
    %v5652 = vperm.slane %v5363, 0
    %v5653 = vperm.slane %v5363, 4
    %v5654 = vperm.slane %v5367, 0
    %v5655 = vperm.slane %v5367, 4
    %v5656 = vperm.slane %v5371, 0
    %v5657 = vperm.slane %v5371, 4
    %v5658 = vperm.slane %v5375, 0
    %v5659 = vperm.slane %v5375, 4
    %v5660 = vperm.slane %v5379, 0
    %v5661 = vperm.slane %v5379, 4
    %v5662 = vperm.slane %v5383, 0
    %v5663 = vperm.slane %v5383, 4
    %v5664 = vperm.slane %v5387, 0
    %v5665 = vperm.slane %v5387, 4
    %v5666 = vperm.slane %v5391, 0
    %v5667 = vperm.slane %v5391, 4
    %v5668 = vunpack.c.l.b16 %v5652
    %v5669 = vunpack.c.l.b16 %v5653
    %v5670 = vunpack.c.l.b16 %v5654
    %v5671 = vunpack.c.l.b16 %v5655
    %v5672 = vunpack.c.l.b16 %v5656
    %v5673 = vunpack.c.l.b16 %v5657
    %v5674 = vunpack.c.l.b16 %v5658
    %v5675 = vunpack.c.l.b16 %v5659
    %v5676 = vunpack.c.l.b16 %v5660
    %v5677 = vunpack.c.l.b16 %v5661
    %v5678 = vunpack.c.l.b16 %v5662
    %v5679 = vunpack.c.l.b16 %v5663
    %v5680 = vunpack.c.l.b16 %v5664
    %v5681 = vunpack.c.l.b16 %v5665
    %v5682 = vunpack.c.l.b16 %v5666
    %v5683 = vunpack.c.l.b16 %v5667
    %v5684 = vsel %vm2454, %v5670, %v5668
    %v5685 = vsel %vm2304, %v5672, %v5684
    %v5686 = vsel %vm2306, %v5674, %v5685
    %v5687 = vsel %vm2308, %v5676, %v5686
    %v5688 = vsel %vm2310, %v5678, %v5687
    %v5689 = vsel %vm2312, %v5680, %v5688
    %v5690 = vsel %vm2314, %v5682, %v5689
    %v5691 = vsel %vm2454, %v5671, %v5669
    %v5692 = vsel %vm2304, %v5673, %v5691
    %v5693 = vsel %vm2306, %v5675, %v5692
    %v5694 = vsel %vm2308, %v5677, %v5693
    %v5695 = vsel %vm2310, %v5679, %v5694
    %v5696 = vsel %vm2312, %v5681, %v5695
    %v5697 = vsel %vm2314, %v5683, %v5696
    %v5698 = vpack.c.b16 %v5690, %v5690
    %v5699 = vpack.c.b16 %v5697, %v5697
    %v5734 = vunpack.c.l.b16 %v5612
    %v5735 = vunpack.c.l.b16 %v5613
    %v5736 = vunpack.c.l.b16 %v5614
    %v5737 = vunpack.c.l.b16 %v5615
    %v5738 = vunpack.c.l.b16 %v5616
    %v5739 = vunpack.c.l.b16 %v5617
    %v5740 = vunpack.c.l.b16 %v5618
    %v5741 = vunpack.c.l.b16 %v5619
    %v5742 = vunpack.c.l.b16 %v5620
    %v5743 = vunpack.c.l.b16 %v5621
    %v5744 = vunpack.c.l.b16 %v5622
    %v5745 = vunpack.c.l.b16 %v5623
    %v5746 = vunpack.c.l.b16 %v5624
    %v5747 = vunpack.c.l.b16 %v5625
    %v5748 = vunpack.c.l.b16 %v5626
    %v5749 = vunpack.c.l.b16 %v5627
    %v5750 = vunpack.c.l.b16 %v5628
    %v5751 = vunpack.c.l.b16 %v5629
    %v5752 = vunpack.c.l.b16 %v5630
    %v5753 = vunpack.c.l.b16 %v5631
    %v5754 = vunpack.c.l.b16 %v5632
    %v5755 = vunpack.c.l.b16 %v5633
    %v5756 = vunpack.c.l.b16 %v5634
    %v5757 = vunpack.c.l.b16 %v5635
    %v5758 = vunpack.c.l.b16 %v5636
    %v5759 = vunpack.c.l.b16 %v5637
    %v5760 = vunpack.c.l.b16 %v5638
    %v5761 = vunpack.c.l.b16 %v5639
    %v5762 = vunpack.c.l.b16 %v5640
    %v5763 = vunpack.c.l.b16 %v5641
    %v5764 = vunpack.c.l.b16 %v5642
    %v5765 = vunpack.c.l.b16 %v5643
    %v5766 = vpack.c.b16 %v5735, %v5734
    %v5767 = vpack.c.b16 %v5737, %v5736
    %v5768 = vpack.c.b16 %v5739, %v5738
    %v5769 = vpack.c.b16 %v5741, %v5740
    %v5770 = vpack.c.b16 %v5743, %v5742
    %v5771 = vpack.c.b16 %v5745, %v5744
    %v5772 = vpack.c.b16 %v5747, %v5746
    %v5773 = vpack.c.b16 %v5749, %v5748
    %v5774 = vpack.c.b16 %v5751, %v5750
    %v5775 = vpack.c.b16 %v5753, %v5752
    %v5776 = vpack.c.b16 %v5755, %v5754
    %v5777 = vpack.c.b16 %v5757, %v5756
    %v5778 = vpack.c.b16 %v5759, %v5758
    %v5779 = vpack.c.b16 %v5761, %v5760
    %v5780 = vpack.c.b16 %v5763, %v5762
    %v5781 = vpack.c.b16 %v5765, %v5764
    %5798 = vmatpush.bf16.msra.mxu0 %v5773
    %5799 = vmatpush.bf16.msra.mxu0 %v5772
    %5800 = vmatpush.bf16.msra.mxu0 %v5771
    %5801 = vmatpush.bf16.msra.mxu0 %v5770
    %5802 = vmatpush.bf16.msra.mxu0 %v5769
    %5803 = vmatpush.bf16.msra.mxu0 %v5768
    %5804 = vmatpush.bf16.msra.mxu0 %v5767
    %5805 = vmatpush.bf16.msra.mxu0 %v5766
    %5806 = vmatmul.bf16.gmra.mxu0 %v5698
    %v5807 = vpop.f32.mrf.mxu0
    %v5808 = vadd.f32 0.0, %v5807
    %v5809 = vpop.f32.mrf.mxu0
    %5810 = vdwg.mxu0
    %5811 = vmatpush.bf16.msra.mxu0 %v5781
    %5812 = vmatpush.bf16.msra.mxu0 %v5780
    %5813 = vmatpush.bf16.msra.mxu0 %v5779
    %5814 = vmatpush.bf16.msra.mxu0 %v5778
    %5815 = vmatpush.bf16.msra.mxu0 %v5777
    %5816 = vmatpush.bf16.msra.mxu0 %v5776
    %5817 = vmatpush.bf16.msra.mxu0 %v5775
    %5818 = vmatpush.bf16.msra.mxu0 %v5774
    %5819 = vmatmul.bf16.gmra.mxu0 %v5699
    %v5820 = vpop.f32.mrf.mxu0
    %v5821 = vadd.f32 %v5808, %v5820
    %v5822 = vpop.f32.mrf.mxu0
    %5823 = vdwg.mxu0
    %v5824 = vadd.f32 %v5610, %v5821
    %s5825 = scalar_lea.vmem %s5, 256
    %v5826 = vld [vmem:[%s5825] sm:$0xf]
    %v5827 = vld [vmem:[%s5825 + $0x4] sm:$0xf]
    %v5828 = vld [vmem:[%s5825 + $0x8] sm:$0xf]
    %v5829 = vld [vmem:[%s5825 + $0xc] sm:$0xf]
    %v5830 = vld [vmem:[%s5825 + $0x10] sm:$0xf]
    %v5831 = vld [vmem:[%s5825 + $0x14] sm:$0xf]
    %v5832 = vld [vmem:[%s5825 + $0x18] sm:$0xf]
    %v5833 = vld [vmem:[%s5825 + $0x1c] sm:$0xf]
    %v5834 = vld [vmem:[%s5825 + $0x20] sm:$0xf]
    %v5835 = vld [vmem:[%s5825 + $0x24] sm:$0xf]
    %v5836 = vld [vmem:[%s5825 + $0x28] sm:$0xf]
    %v5837 = vld [vmem:[%s5825 + $0x2c] sm:$0xf]
    %v5838 = vld [vmem:[%s5825 + $0x30] sm:$0xf]
    %v5839 = vld [vmem:[%s5825 + $0x34] sm:$0xf]
    %v5840 = vld [vmem:[%s5825 + $0x38] sm:$0xf]
    %v5841 = vld [vmem:[%s5825 + $0x3c] sm:$0xf]
    %v5842 = vld [vmem:[%s5825 + $0x40] sm:$0xf]
    %v5843 = vld [vmem:[%s5825 + $0x44] sm:$0xf]
    %v5844 = vld [vmem:[%s5825 + $0x48] sm:$0xf]
    %v5845 = vld [vmem:[%s5825 + $0x4c] sm:$0xf]
    %v5846 = vld [vmem:[%s5825 + $0x50] sm:$0xf]
    %v5847 = vld [vmem:[%s5825 + $0x54] sm:$0xf]
    %v5848 = vld [vmem:[%s5825 + $0x58] sm:$0xf]
    %v5849 = vld [vmem:[%s5825 + $0x5c] sm:$0xf]
    %v5850 = vld [vmem:[%s5825 + $0x60] sm:$0xf]
    %v5851 = vld [vmem:[%s5825 + $0x64] sm:$0xf]
    %v5852 = vld [vmem:[%s5825 + $0x68] sm:$0xf]
    %v5853 = vld [vmem:[%s5825 + $0x6c] sm:$0xf]
    %v5854 = vld [vmem:[%s5825 + $0x70] sm:$0xf]
    %v5855 = vld [vmem:[%s5825 + $0x74] sm:$0xf]
    %v5856 = vld [vmem:[%s5825 + $0x78] sm:$0xf]
    %v5857 = vld [vmem:[%s5825 + $0x7c] sm:$0xf]
    %v5866 = vperm.slane %v5364, 0
    %v5867 = vperm.slane %v5364, 4
    %v5868 = vperm.slane %v5368, 0
    %v5869 = vperm.slane %v5368, 4
    %v5870 = vperm.slane %v5372, 0
    %v5871 = vperm.slane %v5372, 4
    %v5872 = vperm.slane %v5376, 0
    %v5873 = vperm.slane %v5376, 4
    %v5874 = vperm.slane %v5380, 0
    %v5875 = vperm.slane %v5380, 4
    %v5876 = vperm.slane %v5384, 0
    %v5877 = vperm.slane %v5384, 4
    %v5878 = vperm.slane %v5388, 0
    %v5879 = vperm.slane %v5388, 4
    %v5880 = vperm.slane %v5392, 0
    %v5881 = vperm.slane %v5392, 4
    %v5882 = vunpack.c.l.b16 %v5866
    %v5883 = vunpack.c.l.b16 %v5867
    %v5884 = vunpack.c.l.b16 %v5868
    %v5885 = vunpack.c.l.b16 %v5869
    %v5886 = vunpack.c.l.b16 %v5870
    %v5887 = vunpack.c.l.b16 %v5871
    %v5888 = vunpack.c.l.b16 %v5872
    %v5889 = vunpack.c.l.b16 %v5873
    %v5890 = vunpack.c.l.b16 %v5874
    %v5891 = vunpack.c.l.b16 %v5875
    %v5892 = vunpack.c.l.b16 %v5876
    %v5893 = vunpack.c.l.b16 %v5877
    %v5894 = vunpack.c.l.b16 %v5878
    %v5895 = vunpack.c.l.b16 %v5879
    %v5896 = vunpack.c.l.b16 %v5880
    %v5897 = vunpack.c.l.b16 %v5881
    %v5898 = vsel %vm2454, %v5884, %v5882
    %v5899 = vsel %vm2304, %v5886, %v5898
    %v5900 = vsel %vm2306, %v5888, %v5899
    %v5901 = vsel %vm2308, %v5890, %v5900
    %v5902 = vsel %vm2310, %v5892, %v5901
    %v5903 = vsel %vm2312, %v5894, %v5902
    %v5904 = vsel %vm2314, %v5896, %v5903
    %v5905 = vsel %vm2454, %v5885, %v5883
    %v5906 = vsel %vm2304, %v5887, %v5905
    %v5907 = vsel %vm2306, %v5889, %v5906
    %v5908 = vsel %vm2308, %v5891, %v5907
    %v5909 = vsel %vm2310, %v5893, %v5908
    %v5910 = vsel %vm2312, %v5895, %v5909
    %v5911 = vsel %vm2314, %v5897, %v5910
    %v5912 = vpack.c.b16 %v5904, %v5904
    %v5913 = vpack.c.b16 %v5911, %v5911
    %v5948 = vunpack.c.l.b16 %v5826
    %v5949 = vunpack.c.l.b16 %v5827
    %v5950 = vunpack.c.l.b16 %v5828
    %v5951 = vunpack.c.l.b16 %v5829
    %v5952 = vunpack.c.l.b16 %v5830
    %v5953 = vunpack.c.l.b16 %v5831
    %v5954 = vunpack.c.l.b16 %v5832
    %v5955 = vunpack.c.l.b16 %v5833
    %v5956 = vunpack.c.l.b16 %v5834
    %v5957 = vunpack.c.l.b16 %v5835
    %v5958 = vunpack.c.l.b16 %v5836
    %v5959 = vunpack.c.l.b16 %v5837
    %v5960 = vunpack.c.l.b16 %v5838
    %v5961 = vunpack.c.l.b16 %v5839
    %v5962 = vunpack.c.l.b16 %v5840
    %v5963 = vunpack.c.l.b16 %v5841
    %v5964 = vunpack.c.l.b16 %v5842
    %v5965 = vunpack.c.l.b16 %v5843
    %v5966 = vunpack.c.l.b16 %v5844
    %v5967 = vunpack.c.l.b16 %v5845
    %v5968 = vunpack.c.l.b16 %v5846
    %v5969 = vunpack.c.l.b16 %v5847
    %v5970 = vunpack.c.l.b16 %v5848
    %v5971 = vunpack.c.l.b16 %v5849
    %v5972 = vunpack.c.l.b16 %v5850
    %v5973 = vunpack.c.l.b16 %v5851
    %v5974 = vunpack.c.l.b16 %v5852
    %v5975 = vunpack.c.l.b16 %v5853
    %v5976 = vunpack.c.l.b16 %v5854
    %v5977 = vunpack.c.l.b16 %v5855
    %v5978 = vunpack.c.l.b16 %v5856
    %v5979 = vunpack.c.l.b16 %v5857
    %v5980 = vpack.c.b16 %v5949, %v5948
    %v5981 = vpack.c.b16 %v5951, %v5950
    %v5982 = vpack.c.b16 %v5953, %v5952
    %v5983 = vpack.c.b16 %v5955, %v5954
    %v5984 = vpack.c.b16 %v5957, %v5956
    %v5985 = vpack.c.b16 %v5959, %v5958
    %v5986 = vpack.c.b16 %v5961, %v5960
    %v5987 = vpack.c.b16 %v5963, %v5962
    %v5988 = vpack.c.b16 %v5965, %v5964
    %v5989 = vpack.c.b16 %v5967, %v5966
    %v5990 = vpack.c.b16 %v5969, %v5968
    %v5991 = vpack.c.b16 %v5971, %v5970
    %v5992 = vpack.c.b16 %v5973, %v5972
    %v5993 = vpack.c.b16 %v5975, %v5974
    %v5994 = vpack.c.b16 %v5977, %v5976
    %v5995 = vpack.c.b16 %v5979, %v5978
    %6012 = vmatpush.bf16.msra.mxu0 %v5987
    %6013 = vmatpush.bf16.msra.mxu0 %v5986
    %6014 = vmatpush.bf16.msra.mxu0 %v5985
    %6015 = vmatpush.bf16.msra.mxu0 %v5984
    %6016 = vmatpush.bf16.msra.mxu0 %v5983
    %6017 = vmatpush.bf16.msra.mxu0 %v5982
    %6018 = vmatpush.bf16.msra.mxu0 %v5981
    %6019 = vmatpush.bf16.msra.mxu0 %v5980
    %6020 = vmatmul.bf16.gmra.mxu0 %v5912
    %v6021 = vpop.f32.mrf.mxu0
    %v6022 = vadd.f32 0.0, %v6021
    %v6023 = vpop.f32.mrf.mxu0
    %6024 = vdwg.mxu0
    %6025 = vmatpush.bf16.msra.mxu0 %v5995
    %6026 = vmatpush.bf16.msra.mxu0 %v5994
    %6027 = vmatpush.bf16.msra.mxu0 %v5993
    %6028 = vmatpush.bf16.msra.mxu0 %v5992
    %6029 = vmatpush.bf16.msra.mxu0 %v5991
    %6030 = vmatpush.bf16.msra.mxu0 %v5990
    %6031 = vmatpush.bf16.msra.mxu0 %v5989
    %6032 = vmatpush.bf16.msra.mxu0 %v5988
    %6033 = vmatmul.bf16.gmra.mxu0 %v5913
    %v6034 = vpop.f32.mrf.mxu0
    %v6035 = vadd.f32 %v6022, %v6034
    %v6036 = vpop.f32.mrf.mxu0
    %6037 = vdwg.mxu0
    %v6038 = vadd.f32 %v5824, %v6035
    %s6039 = scalar_lea.vmem %s5, 384
    %v6040 = vld [vmem:[%s6039] sm:$0xf]
    %v6041 = vld [vmem:[%s6039 + $0x4] sm:$0xf]
    %v6042 = vld [vmem:[%s6039 + $0x8] sm:$0xf]
    %v6043 = vld [vmem:[%s6039 + $0xc] sm:$0xf]
    %v6044 = vld [vmem:[%s6039 + $0x10] sm:$0xf]
    %v6045 = vld [vmem:[%s6039 + $0x14] sm:$0xf]
    %v6046 = vld [vmem:[%s6039 + $0x18] sm:$0xf]
    %v6047 = vld [vmem:[%s6039 + $0x1c] sm:$0xf]
    %v6048 = vld [vmem:[%s6039 + $0x20] sm:$0xf]
    %v6049 = vld [vmem:[%s6039 + $0x24] sm:$0xf]
    %v6050 = vld [vmem:[%s6039 + $0x28] sm:$0xf]
    %v6051 = vld [vmem:[%s6039 + $0x2c] sm:$0xf]
    %v6052 = vld [vmem:[%s6039 + $0x30] sm:$0xf]
    %v6053 = vld [vmem:[%s6039 + $0x34] sm:$0xf]
    %v6054 = vld [vmem:[%s6039 + $0x38] sm:$0xf]
    %v6055 = vld [vmem:[%s6039 + $0x3c] sm:$0xf]
    %v6056 = vld [vmem:[%s6039 + $0x40] sm:$0xf]
    %v6057 = vld [vmem:[%s6039 + $0x44] sm:$0xf]
    %v6058 = vld [vmem:[%s6039 + $0x48] sm:$0xf]
    %v6059 = vld [vmem:[%s6039 + $0x4c] sm:$0xf]
    %v6060 = vld [vmem:[%s6039 + $0x50] sm:$0xf]
    %v6061 = vld [vmem:[%s6039 + $0x54] sm:$0xf]
    %v6062 = vld [vmem:[%s6039 + $0x58] sm:$0xf]
    %v6063 = vld [vmem:[%s6039 + $0x5c] sm:$0xf]
    %v6064 = vld [vmem:[%s6039 + $0x60] sm:$0xf]
    %v6065 = vld [vmem:[%s6039 + $0x64] sm:$0xf]
    %v6066 = vld [vmem:[%s6039 + $0x68] sm:$0xf]
    %v6067 = vld [vmem:[%s6039 + $0x6c] sm:$0xf]
    %v6068 = vld [vmem:[%s6039 + $0x70] sm:$0xf]
    %v6069 = vld [vmem:[%s6039 + $0x74] sm:$0xf]
    %v6070 = vld [vmem:[%s6039 + $0x78] sm:$0xf]
    %v6071 = vld [vmem:[%s6039 + $0x7c] sm:$0xf]
    %v6080 = vperm.slane %v5365, 0
    %v6081 = vperm.slane %v5365, 4
    %v6082 = vperm.slane %v5369, 0
    %v6083 = vperm.slane %v5369, 4
    %v6084 = vperm.slane %v5373, 0
    %v6085 = vperm.slane %v5373, 4
    %v6086 = vperm.slane %v5377, 0
    %v6087 = vperm.slane %v5377, 4
    %v6088 = vperm.slane %v5381, 0
    %v6089 = vperm.slane %v5381, 4
    %v6090 = vperm.slane %v5385, 0
    %v6091 = vperm.slane %v5385, 4
    %v6092 = vperm.slane %v5389, 0
    %v6093 = vperm.slane %v5389, 4
    %v6094 = vperm.slane %v5393, 0
    %v6095 = vperm.slane %v5393, 4
    %v6096 = vunpack.c.l.b16 %v6080
    %v6097 = vunpack.c.l.b16 %v6081
    %v6098 = vunpack.c.l.b16 %v6082
    %v6099 = vunpack.c.l.b16 %v6083
    %v6100 = vunpack.c.l.b16 %v6084
    %v6101 = vunpack.c.l.b16 %v6085
    %v6102 = vunpack.c.l.b16 %v6086
    %v6103 = vunpack.c.l.b16 %v6087
    %v6104 = vunpack.c.l.b16 %v6088
    %v6105 = vunpack.c.l.b16 %v6089
    %v6106 = vunpack.c.l.b16 %v6090
    %v6107 = vunpack.c.l.b16 %v6091
    %v6108 = vunpack.c.l.b16 %v6092
    %v6109 = vunpack.c.l.b16 %v6093
    %v6110 = vunpack.c.l.b16 %v6094
    %v6111 = vunpack.c.l.b16 %v6095
    %v6112 = vsel %vm2454, %v6098, %v6096
    %v6113 = vsel %vm2304, %v6100, %v6112
    %v6114 = vsel %vm2306, %v6102, %v6113
    %v6115 = vsel %vm2308, %v6104, %v6114
    %v6116 = vsel %vm2310, %v6106, %v6115
    %v6117 = vsel %vm2312, %v6108, %v6116
    %v6118 = vsel %vm2314, %v6110, %v6117
    %v6119 = vsel %vm2454, %v6099, %v6097
    %v6120 = vsel %vm2304, %v6101, %v6119
    %v6121 = vsel %vm2306, %v6103, %v6120
    %v6122 = vsel %vm2308, %v6105, %v6121
    %v6123 = vsel %vm2310, %v6107, %v6122
    %v6124 = vsel %vm2312, %v6109, %v6123
    %v6125 = vsel %vm2314, %v6111, %v6124
    %v6126 = vpack.c.b16 %v6118, %v6118
    %v6127 = vpack.c.b16 %v6125, %v6125
    %v6162 = vunpack.c.l.b16 %v6040
    %v6163 = vunpack.c.l.b16 %v6041
    %v6164 = vunpack.c.l.b16 %v6042
    %v6165 = vunpack.c.l.b16 %v6043
    %v6166 = vunpack.c.l.b16 %v6044
    %v6167 = vunpack.c.l.b16 %v6045
    %v6168 = vunpack.c.l.b16 %v6046
    %v6169 = vunpack.c.l.b16 %v6047
    %v6170 = vunpack.c.l.b16 %v6048
    %v6171 = vunpack.c.l.b16 %v6049
    %v6172 = vunpack.c.l.b16 %v6050
    %v6173 = vunpack.c.l.b16 %v6051
    %v6174 = vunpack.c.l.b16 %v6052
    %v6175 = vunpack.c.l.b16 %v6053
    %v6176 = vunpack.c.l.b16 %v6054
    %v6177 = vunpack.c.l.b16 %v6055
    %v6178 = vunpack.c.l.b16 %v6056
    %v6179 = vunpack.c.l.b16 %v6057
    %v6180 = vunpack.c.l.b16 %v6058
    %v6181 = vunpack.c.l.b16 %v6059
    %v6182 = vunpack.c.l.b16 %v6060
    %v6183 = vunpack.c.l.b16 %v6061
    %v6184 = vunpack.c.l.b16 %v6062
    %v6185 = vunpack.c.l.b16 %v6063
    %v6186 = vunpack.c.l.b16 %v6064
    %v6187 = vunpack.c.l.b16 %v6065
    %v6188 = vunpack.c.l.b16 %v6066
    %v6189 = vunpack.c.l.b16 %v6067
    %v6190 = vunpack.c.l.b16 %v6068
    %v6191 = vunpack.c.l.b16 %v6069
    %v6192 = vunpack.c.l.b16 %v6070
    %v6193 = vunpack.c.l.b16 %v6071
    %v6194 = vpack.c.b16 %v6163, %v6162
    %v6195 = vpack.c.b16 %v6165, %v6164
    %v6196 = vpack.c.b16 %v6167, %v6166
    %v6197 = vpack.c.b16 %v6169, %v6168
    %v6198 = vpack.c.b16 %v6171, %v6170
    %v6199 = vpack.c.b16 %v6173, %v6172
    %v6200 = vpack.c.b16 %v6175, %v6174
    %v6201 = vpack.c.b16 %v6177, %v6176
    %v6202 = vpack.c.b16 %v6179, %v6178
    %v6203 = vpack.c.b16 %v6181, %v6180
    %v6204 = vpack.c.b16 %v6183, %v6182
    %v6205 = vpack.c.b16 %v6185, %v6184
    %v6206 = vpack.c.b16 %v6187, %v6186
    %v6207 = vpack.c.b16 %v6189, %v6188
    %v6208 = vpack.c.b16 %v6191, %v6190
    %v6209 = vpack.c.b16 %v6193, %v6192
    %6226 = vmatpush.bf16.msra.mxu0 %v6201
    %6227 = vmatpush.bf16.msra.mxu0 %v6200
    %6228 = vmatpush.bf16.msra.mxu0 %v6199
    %6229 = vmatpush.bf16.msra.mxu0 %v6198
    %6230 = vmatpush.bf16.msra.mxu0 %v6197
    %6231 = vmatpush.bf16.msra.mxu0 %v6196
    %6232 = vmatpush.bf16.msra.mxu0 %v6195
    %6233 = vmatpush.bf16.msra.mxu0 %v6194
    %6234 = vmatmul.bf16.gmra.mxu0 %v6126
    %v6235 = vpop.f32.mrf.mxu0
    %v6236 = vadd.f32 0.0, %v6235
    %v6237 = vpop.f32.mrf.mxu0
    %6238 = vdwg.mxu0
    %6239 = vmatpush.bf16.msra.mxu0 %v6209
    %6240 = vmatpush.bf16.msra.mxu0 %v6208
    %6241 = vmatpush.bf16.msra.mxu0 %v6207
    %6242 = vmatpush.bf16.msra.mxu0 %v6206
    %6243 = vmatpush.bf16.msra.mxu0 %v6205
    %6244 = vmatpush.bf16.msra.mxu0 %v6204
    %6245 = vmatpush.bf16.msra.mxu0 %v6203
    %6246 = vmatpush.bf16.msra.mxu0 %v6202
    %6247 = vmatmul.bf16.gmra.mxu0 %v6127
    %v6248 = vpop.f32.mrf.mxu0
    %v6249 = vadd.f32 %v6236, %v6248
    %v6250 = vpop.f32.mrf.mxu0
    %6251 = vdwg.mxu0
    %v6252 = vadd.f32 %v6038, %v6249
    %v6253 = vmax.f32 %v6252, 0.0
    %v6254 = vld [vmem:[%s7] sm:$0xff]
    %v6255 = vld [vmem:[%s7 + $0x8] sm:$0xff]
    %v6256 = vld [vmem:[%s7 + $0x10] sm:$0xff]
    %v6257 = vld [vmem:[%s7 + $0x18] sm:$0xff]
    %v6258 = vld [vmem:[%s7 + $0x20] sm:$0xff]
    %v6259 = vld [vmem:[%s7 + $0x28] sm:$0xff]
    %v6260 = vld [vmem:[%s7 + $0x30] sm:$0xff]
    %v6261 = vld [vmem:[%s7 + $0x38] sm:$0xff]
    %v6262 = vld [vmem:[%s8] sm:$0x1]
    %v6264 = vperm.slane %v6262, 0
    %vm6266 = vcmask 523264
    %v6268 = vsel %vm6266, %v6253, 0
    %6270 = vmatpush.msra.mxu0 0.0
    %6271 = vmatpush.msra.mxu0 0.0
    %6272 = vmatpush.msra.mxu0 0.0
    %6273 = vmatpush.msra.mxu0 0.0
    %6274 = vmatpush.msra.mxu0 0.0
    %6275 = vmatpush.msra.mxu0 0.0
    %6276 = vmatpush.msra.mxu0 0.0
    %6277 = vmatpush.msra.mxu0 0.0
    %6278 = vmatpush.msra.mxu0 %v6261
    %6279 = vmatpush.msra.mxu0 %v6260
    %6280 = vmatpush.msra.mxu0 %v6259
    %6281 = vmatpush.msra.mxu0 %v6258
    %6282 = vmatpush.msra.mxu0 %v6257
    %6283 = vmatpush.msra.mxu0 %v6256
    %6284 = vmatpush.msra.mxu0 %v6255
    %6285 = vmatpush.msra.mxu0 %v6254
    %6286 = vmatmul.f32.gmra.mxu0 %v6268
    %v6287 = vpop.f32.mrf.mxu0
    %v6288 = vadd.f32 %v6264, %v6287
    %6289 = vdwg.mxu0
    %vm6290 = vcmask 80896
    %v6291 = vsel %vm6290, %v6288, -inf
    %6292 = vmax.xlane.f32.xlu0 %v6291
    %v6293 = vpop.xlane.xlu0 %6292
    %v6294 = vsub.f32 %v6288, %v6293
    %v6295 = vmul.f32 %v6294, 1.442695
    %v6296 = vpow.pop %v6295
    %v6297 = vsel %vm6290, %v6296, 0.0
    %6298 = vadd.xlane.f32.xlu0 %v6297
    %v6299 = vpop.xlane.xlu0 %6298
    %v6300 = vlog2.pop %v6299
    %v6301 = vmul.f32 %v6300, 0.6931472
    %v6302 = vadd.f32 %v6293, %v6301
    %v6303 = vsub.f32 %v6288, %v6302
    %6304 = vst.msk [vmem:[%s9] sm:$0xff] %vm6290, %v6303
    // Predicated region
    $region42: #{cnn_forward.1} parent=1 // pred_check
      _
    $region43: #{cnn_forward.1} parent=1 // pred_check_branch
      %6306 = sbr.rel (0) target = $region45
    $region44: #{cnn_forward.1} parent=1 // pred_region
      _
    $region45: #{cnn_forward.1} parent=1 // pred_fallthru
      _
    // Predicated region
    $region46: #{cnn_forward.1} parent=1 // pred_check
      _
    $region47: #{cnn_forward.1} parent=1 // pred_check_branch
      %6308 = sbr.rel (0) target = $region49
    $region48: #{cnn_forward.1} parent=1 // pred_region
      _
    $region49: #{cnn_forward.1} parent=1 // pred_fallthru
      _
    %6309 = vsyncpa [#allocation3], 1

</llo_original>
